<compile_context>
chip_gen: v5e
topology: v5e:2x2
jax: 0.10.0
libtpu: 0.0.40
codegen_flags: <defaults>
</compile_context>

<pallas_src>
import jax
import jax.numpy as jnp
from jax import lax
from jax.experimental import pallas as pl
from jax.experimental.pallas import tpu as pltpu

LANE = 128


def _round_up(x, m):
    return (x + m - 1) // m * m


def _im2col_3x3(xp, H, W):
    """xp: (H+2, W+2, C) -> (H*W, 9*C); tap order (dy, dx, c) matches a
    (3, 3, C, P) -> (9*C, P) weight reshape."""
    C = xp.shape[-1]
    cols = jnp.concatenate(
        [xp[dy:dy + H, dx:dx + W, :] for dy in range(3) for dx in range(3)],
        axis=-1,
    )
    return cols.reshape(H * W, 9 * C)


def basic_block_kernel(xpad_ref, w1_ref, b1_ref, w2_ref, b2_ref, out_ref,
                       mid_ref):
    # xpad_ref : (1, H+2, W+2, C)  bf16, spatially zero-padded, channel-padded
    # w1_ref   : (9*C, P)          bf16, BN1 scale folded in
    # b1_ref   : (1, P)            f32 folded BN1 bias
    # w2_ref   : (9*P, P)          bf16, BN2 scale folded in
    # b2_ref   : (1, P)            f32 folded BN2 bias
    # out_ref  : (1, H, W, P)      f32
    # mid_ref  : (H+2, W+2, P)     bf16 VMEM scratch (padded conv1 output)
    Hp, Wp = xpad_ref.shape[1], xpad_ref.shape[2]
    H, W = Hp - 2, Wp - 2
    C = xpad_ref.shape[3]
    P = w1_ref.shape[1]

    xp = xpad_ref[0]                                     # (Hp, Wp, C) bf16

    # ---- conv1 (3x3, pad 1) as ONE deep matmul on the MXU ----
    cols1 = _im2col_3x3(xp, H, W)                        # (H*W, 9*C) bf16
    acc1 = jnp.dot(cols1, w1_ref[...], preferred_element_type=jnp.float32)

    # ---- BN1 bias (scale already in the weights) + ReLU ----
    out1 = jnp.maximum(acc1 + b1_ref[...], 0.0)          # (H*W, P) f32

    # Re-zero only the 1-pixel border of the persistent scratch; the interior
    # is fully overwritten every grid step.
    zrow = jnp.zeros((1, Wp, P), dtype=mid_ref.dtype)
    zcol = jnp.zeros((Hp, 1, P), dtype=mid_ref.dtype)
    mid_ref[0:1, :, :] = zrow
    mid_ref[Hp - 1:Hp, :, :] = zrow
    mid_ref[:, 0:1, :] = zcol
    mid_ref[:, Wp - 1:Wp, :] = zcol
    mid_ref[1:H + 1, 1:W + 1, :] = out1.reshape(H, W, P).astype(mid_ref.dtype)

    # ---- conv2 (3x3, pad 1) as ONE deep matmul ----
    mid = mid_ref[...]                                   # (Hp, Wp, P) bf16
    cols2 = _im2col_3x3(mid, H, W)                       # (H*W, 9*P) bf16
    acc2 = jnp.dot(cols2, w2_ref[...], preferred_element_type=jnp.float32)

    # ---- BN2 bias + residual add + ReLU (identity path: C == P, stride 1) ----
    identity = xp[1:H + 1, 1:W + 1, :].reshape(H * W, C).astype(jnp.float32)
    res = jnp.maximum(acc2 + b2_ref[...] + identity, 0.0)
    out_ref[0] = res.reshape(H, W, P).astype(out_ref.dtype)


def basic_block_nhwc(x_nhwc, w1_hwio, g1, beta1, m1, v1,
                     w2_hwio, g2, beta2, m2, v2, eps=1e-5):
    """x_nhwc: (N, H, W, Cin) f32.  Weights HWIO.  BN params per-channel (P,)."""
    N, H, W, Cin = x_nhwc.shape
    P = w1_hwio.shape[-1]
    assert Cin == P, "identity path requires inplanes == planes (no downsample)"
    assert w2_hwio.shape == (3, 3, P, P)

    Cp = _round_up(Cin, LANE)       # lane-dense channel padding
    Pp = _round_up(P, LANE)

    f32 = jnp.float32
    # eval-mode BN fold: y * s + (beta - m * s); scale goes into the weights.
    s1 = (g1 / jnp.sqrt(v1 + eps)).astype(f32)
    b1 = (beta1 - m1 * s1).astype(f32)
    s2 = (g2 / jnp.sqrt(v2 + eps)).astype(f32)
    b2 = (beta2 - m2 * s2).astype(f32)

    w1p = jnp.pad(w1_hwio.astype(f32) * s1[None, None, None, :],
                  ((0, 0), (0, 0), (0, Cp - Cin), (0, Pp - P)))
    w2p = jnp.pad(w2_hwio.astype(f32) * s2[None, None, None, :],
                  ((0, 0), (0, 0), (0, Pp - P), (0, Pp - P)))
    w1f = w1p.reshape(9 * Cp, Pp).astype(jnp.bfloat16)   # (dy, dx, c) K-order
    w2f = w2p.reshape(9 * Pp, Pp).astype(jnp.bfloat16)
    b1f = jnp.pad(b1, (0, Pp - P)).reshape(1, Pp)
    b2f = jnp.pad(b2, (0, Pp - P)).reshape(1, Pp)

    # spatial pad=1, channel pad to lane width, bf16 activations in HBM
    xpad = jnp.pad(x_nhwc.astype(jnp.bfloat16),
                   ((0, 0), (1, 1), (1, 1), (0, Cp - Cin)))
    Hp, Wp = H + 2, W + 2

    grid_spec = pltpu.PrefetchScalarGridSpec(
        num_scalar_prefetch=0,
        grid=(N,),
        in_specs=[
            pl.BlockSpec((1, Hp, Wp, Cp), lambda n: (n, 0, 0, 0)),
            pl.BlockSpec((9 * Cp, Pp), lambda n: (0, 0)),
            pl.BlockSpec((1, Pp), lambda n: (0, 0)),
            pl.BlockSpec((9 * Pp, Pp), lambda n: (0, 0)),
            pl.BlockSpec((1, Pp), lambda n: (0, 0)),
        ],
        out_specs=pl.BlockSpec((1, H, W, Pp), lambda n: (n, 0, 0, 0)),
        scratch_shapes=[pltpu.VMEM((Hp, Wp, Pp), jnp.bfloat16)],
    )

    out = pl.pallas_call(
        basic_block_kernel,
        out_shape=jax.ShapeDtypeStruct((N, H, W, Pp), jnp.float32),
        grid_spec=grid_spec,
        compiler_params=pltpu.CompilerParams(
            dimension_semantics=("parallel",)),
    )(xpad, w1f, b1f, w2f, b2f)
    return out[..., :P]


def basic_block_nchw(x_nchw, conv1_w_oihw, g1, beta1, m1, v1,
                     conv2_w_oihw, g2, beta2, m2, v2, eps=1e-5):
    """Matches the PyTorch BasicBlock interface: NCHW input, OIHW weights."""
    x_nhwc = jnp.transpose(x_nchw, (0, 2, 3, 1))
    w1 = jnp.transpose(conv1_w_oihw, (2, 3, 1, 0))       # OIHW -> HWIO
    w2 = jnp.transpose(conv2_w_oihw, (2, 3, 1, 0))
    out = basic_block_nhwc(x_nhwc, w1, g1, beta1, m1, v1,
                           w2, g2, beta2, m2, v2, eps)
    return jnp.transpose(out, (0, 3, 1, 2))


def _reference_nhwc(x, w1, g1, beta1, m1, v1, w2, g2, beta2, m2, v2, eps=1e-5):
    dn = ('NHWC', 'HWIO', 'NHWC')

    def bn(y, g, b, m, v):
        return (y - m) / jnp.sqrt(v + eps) * g + b

    out = lax.conv_general_dilated(x, w1, (1, 1), 'SAME', dimension_numbers=dn)
    out = jnp.maximum(bn(out, g1, beta1, m1, v1), 0.0)
    out = lax.conv_general_dilated(out, w2, (1, 1), 'SAME', dimension_numbers=dn)
    out = bn(out, g2, beta2, m2, v2)
    return jnp.maximum(out + x, 0.0)


if __name__ == "__main__":
    key = jax.random.PRNGKey(0)
    N, H, W = 2, 16, 16
    inplanes = planes = 8   # identity path: inplanes == planes, stride 1

    keys = jax.random.split(key, 11)
    x_nchw = jax.random.normal(keys[0], (N, inplanes, H, W), dtype=jnp.float32)
    w1_oihw = jax.random.normal(keys[1], (planes, inplanes, 3, 3),
                                dtype=jnp.float32) * 0.1
    w2_oihw = jax.random.normal(keys[2], (planes, planes, 3, 3),
                                dtype=jnp.float32) * 0.1
    g1 = 1.0 + 0.1 * jax.random.normal(keys[3], (planes,), dtype=jnp.float32)
    beta1 = 0.1 * jax.random.normal(keys[4], (planes,), dtype=jnp.float32)
    m1 = 0.1 * jax.random.normal(keys[5], (planes,), dtype=jnp.float32)
    v1 = jnp.abs(jax.random.normal(keys[6], (planes,), dtype=jnp.float32)) + 0.5
    g2 = 1.0 + 0.1 * jax.random.normal(keys[7], (planes,), dtype=jnp.float32)
    beta2 = 0.1 * jax.random.normal(keys[8], (planes,), dtype=jnp.float32)
    m2 = 0.1 * jax.random.normal(keys[9], (planes,), dtype=jnp.float32)
    v2 = jnp.abs(jax.random.normal(keys[10], (planes,), dtype=jnp.float32)) + 0.5

    out = basic_block_nchw(x_nchw, w1_oihw, g1, beta1, m1, v1,
                           w2_oihw, g2, beta2, m2, v2)
    out = jax.block_until_ready(out)

    # f32 lax reference; kernel uses bf16 matmul operands -> loosened tolerance.
    x_nhwc = jnp.transpose(x_nchw, (0, 2, 3, 1))
    w1_hwio = jnp.transpose(w1_oihw, (2, 3, 1, 0))
    w2_hwio = jnp.transpose(w2_oihw, (2, 3, 1, 0))
    ref = jnp.transpose(
        _reference_nhwc(x_nhwc, w1_hwio, g1, beta1, m1, v1,
                        w2_hwio, g2, beta2, m2, v2),
        (0, 3, 1, 2))

    assert out.shape == x_nchw.shape
    err = float(jnp.max(jnp.abs(out - ref)))
    assert err < 5e-2, f"mismatch vs lax reference: max abs err {err}"
    print("KERNEL_OK")
</pallas_src>

<mosaic_0001>
module attributes {stable_mosaic.version = 11 : i64} {
  func.func @basic_block_kernel(%arg0: i32, %arg1: memref<1x18x18x128xbf16, #tpu.memory_space<vmem>>, %arg2: memref<1152x128xbf16, #tpu.memory_space<vmem>>, %arg3: memref<1x128xf32, #tpu.memory_space<vmem>>, %arg4: memref<1152x128xbf16, #tpu.memory_space<vmem>>, %arg5: memref<1x128xf32, #tpu.memory_space<vmem>>, %arg6: memref<1x16x16x128xf32, #tpu.memory_space<vmem>>, %arg7: memref<18x18x128xbf16, #tpu.memory_space<vmem>>) attributes {dimension_semantics = [#tpu.dimension_semantics<parallel>], iteration_bounds = array<i64: 2>, scalar_prefetch = 0 : i64, scratch_operands = 1 : i64, tpu.core_type = #tpu.core_type<tc>, window_params = [{transform_indices = @transform_0, window_bounds = array<i64: 1, 18, 18, 128>}, {pipeline_mode = #tpu.pipeline_mode<synchronous>, transform_indices = @transform_1, window_bounds = array<i64: 1152, 128>}, {pipeline_mode = #tpu.pipeline_mode<synchronous>, transform_indices = @transform_2, window_bounds = array<i64: 1, 128>}, {pipeline_mode = #tpu.pipeline_mode<synchronous>, transform_indices = @transform_3, window_bounds = array<i64: 1152, 128>}, {pipeline_mode = #tpu.pipeline_mode<synchronous>, transform_indices = @transform_4, window_bounds = array<i64: 1, 128>}, {transform_indices = @transform_5, window_bounds = array<i64: 1, 16, 16, 128>}]} {
    %c0 = arith.constant 0 : index
    %c0_0 = arith.constant 0 : index
    %c0_1 = arith.constant 0 : index
    %c0_2 = arith.constant 0 : index
    %0 = vector.load %arg1[%c0, %c0_0, %c0_1, %c0_2] : memref<1x18x18x128xbf16, #tpu.memory_space<vmem>>, vector<1x18x18x128xbf16>
    %1 = vector.shape_cast %0 : vector<1x18x18x128xbf16> to vector<18x18x128xbf16>
    %2 = vector.extract_strided_slice %1 {offsets = [0, 0, 0], sizes = [16, 16, 128], strides = [1, 1, 1]} : vector<18x18x128xbf16> to vector<16x16x128xbf16>
    %3 = vector.extract_strided_slice %1 {offsets = [0, 1, 0], sizes = [16, 16, 128], strides = [1, 1, 1]} : vector<18x18x128xbf16> to vector<16x16x128xbf16>
    %4 = vector.extract_strided_slice %1 {offsets = [0, 2, 0], sizes = [16, 16, 128], strides = [1, 1, 1]} : vector<18x18x128xbf16> to vector<16x16x128xbf16>
    %5 = vector.extract_strided_slice %1 {offsets = [1, 0, 0], sizes = [16, 16, 128], strides = [1, 1, 1]} : vector<18x18x128xbf16> to vector<16x16x128xbf16>
    %6 = vector.extract_strided_slice %1 {offsets = [1, 1, 0], sizes = [16, 16, 128], strides = [1, 1, 1]} : vector<18x18x128xbf16> to vector<16x16x128xbf16>
    %7 = vector.extract_strided_slice %1 {offsets = [1, 2, 0], sizes = [16, 16, 128], strides = [1, 1, 1]} : vector<18x18x128xbf16> to vector<16x16x128xbf16>
    %8 = vector.extract_strided_slice %1 {offsets = [2, 0, 0], sizes = [16, 16, 128], strides = [1, 1, 1]} : vector<18x18x128xbf16> to vector<16x16x128xbf16>
    %9 = vector.extract_strided_slice %1 {offsets = [2, 1, 0], sizes = [16, 16, 128], strides = [1, 1, 1]} : vector<18x18x128xbf16> to vector<16x16x128xbf16>
    %10 = vector.extract_strided_slice %1 {offsets = [2, 2, 0], sizes = [16, 16, 128], strides = [1, 1, 1]} : vector<18x18x128xbf16> to vector<16x16x128xbf16>
    %11 = tpu.concatenate %2, %3, %4, %5, %6, %7, %8, %9, %10 in 2 : vector<16x16x128xbf16>, vector<16x16x128xbf16>, vector<16x16x128xbf16>, vector<16x16x128xbf16>, vector<16x16x128xbf16>, vector<16x16x128xbf16>, vector<16x16x128xbf16>, vector<16x16x128xbf16>, vector<16x16x128xbf16> -> vector<16x16x1152xbf16>
    %12 = vector.shape_cast %11 : vector<16x16x1152xbf16> to vector<256x1152xbf16>
    %c0_3 = arith.constant 0 : index
    %c0_4 = arith.constant 0 : index
    %13 = vector.load %arg2[%c0_3, %c0_4] : memref<1152x128xbf16, #tpu.memory_space<vmem>>, vector<1152x128xbf16>
    %cst = arith.constant dense<0.000000e+00> : vector<256x128xf32>
    %14 = tpu.matmul %12, %13, %cst {dimension_numbers = #tpu.dot_dimension_numbers<[1], [0], [0], [1], [0, 0, 1, 1], [], []>} : vector<256x1152xbf16>, vector<1152x128xbf16>, vector<256x128xf32> -> vector<256x128xf32>
    %c0_5 = arith.constant 0 : index
    %c0_6 = arith.constant 0 : index
    %15 = vector.load %arg3[%c0_5, %c0_6] : memref<1x128xf32, #tpu.memory_space<vmem>>, vector<1x128xf32>
    %16 = vector.broadcast %15 : vector<1x128xf32> to vector<256x128xf32>
    %17 = arith.addf %14, %16 : vector<256x128xf32>
    %cst_7 = arith.constant 0.000000e+00 : f32
    %18 = vector.broadcast %cst_7 : f32 to vector<256x128xf32>
    %19 = arith.maximumf %17, %18 : vector<256x128xf32>
    %cst_8 = arith.constant 0.000000e+00 : bf16
    %20 = vector.broadcast %cst_8 : bf16 to vector<1x18x128xbf16>
    %cst_9 = arith.constant 0.000000e+00 : bf16
    %21 = vector.broadcast %cst_9 : bf16 to vector<18x1x128xbf16>
    %c0_10 = arith.constant 0 : index
    %c0_11 = arith.constant 0 : index
    %c0_12 = arith.constant 0 : index
    %22 = vector.load %arg7[%c0_10, %c0_11, %c0_12] : memref<18x18x128xbf16, #tpu.memory_space<vmem>>, vector<1x18x128xbf16>
    tpu.vector_store %arg7[%c0_10, %c0_11, %c0_12], %20 {strides = array<i32>} : memref<18x18x128xbf16, #tpu.memory_space<vmem>>, vector<1x18x128xbf16>,
    %c17 = arith.constant 17 : index
    %c0_13 = arith.constant 0 : index
    %c0_14 = arith.constant 0 : index
    %23 = vector.load %arg7[%c17, %c0_13, %c0_14] : memref<18x18x128xbf16, #tpu.memory_space<vmem>>, vector<1x18x128xbf16>
    tpu.vector_store %arg7[%c17, %c0_13, %c0_14], %20 {strides = array<i32>} : memref<18x18x128xbf16, #tpu.memory_space<vmem>>, vector<1x18x128xbf16>,
    %c0_15 = arith.constant 0 : index
    %c0_16 = arith.constant 0 : index
    %c0_17 = arith.constant 0 : index
    %24 = vector.load %arg7[%c0_15, %c0_16, %c0_17] : memref<18x18x128xbf16, #tpu.memory_space<vmem>>, vector<18x1x128xbf16>
    tpu.vector_store %arg7[%c0_15, %c0_16, %c0_17], %21 {strides = array<i32>} : memref<18x18x128xbf16, #tpu.memory_space<vmem>>, vector<18x1x128xbf16>,
    %c0_18 = arith.constant 0 : index
    %c17_19 = arith.constant 17 : index
    %c0_20 = arith.constant 0 : index
    %25 = vector.load %arg7[%c0_18, %c17_19, %c0_20] : memref<18x18x128xbf16, #tpu.memory_space<vmem>>, vector<18x1x128xbf16>
    tpu.vector_store %arg7[%c0_18, %c17_19, %c0_20], %21 {strides = array<i32>} : memref<18x18x128xbf16, #tpu.memory_space<vmem>>, vector<18x1x128xbf16>,
    %26 = vector.shape_cast %19 : vector<256x128xf32> to vector<16x16x128xf32>
    %27 = arith.truncf %26 : vector<16x16x128xf32> to vector<16x16x128xbf16>
    %c1 = arith.constant 1 : index
    %c1_21 = arith.constant 1 : index
    %c0_22 = arith.constant 0 : index
    %28 = vector.load %arg7[%c1, %c1_21, %c0_22] : memref<18x18x128xbf16, #tpu.memory_space<vmem>>, vector<16x16x128xbf16>
    tpu.vector_store %arg7[%c1, %c1_21, %c0_22], %27 {strides = array<i32>} : memref<18x18x128xbf16, #tpu.memory_space<vmem>>, vector<16x16x128xbf16>,
    %c0_23 = arith.constant 0 : index
    %c0_24 = arith.constant 0 : index
    %c0_25 = arith.constant 0 : index
    %29 = vector.load %arg7[%c0_23, %c0_24, %c0_25] : memref<18x18x128xbf16, #tpu.memory_space<vmem>>, vector<18x18x128xbf16>
    %30 = vector.extract_strided_slice %29 {offsets = [0, 0, 0], sizes = [16, 16, 128], strides = [1, 1, 1]} : vector<18x18x128xbf16> to vector<16x16x128xbf16>
    %31 = vector.extract_strided_slice %29 {offsets = [0, 1, 0], sizes = [16, 16, 128], strides = [1, 1, 1]} : vector<18x18x128xbf16> to vector<16x16x128xbf16>
    %32 = vector.extract_strided_slice %29 {offsets = [0, 2, 0], sizes = [16, 16, 128], strides = [1, 1, 1]} : vector<18x18x128xbf16> to vector<16x16x128xbf16>
    %33 = vector.extract_strided_slice %29 {offsets = [1, 0, 0], sizes = [16, 16, 128], strides = [1, 1, 1]} : vector<18x18x128xbf16> to vector<16x16x128xbf16>
    %34 = vector.extract_strided_slice %29 {offsets = [1, 1, 0], sizes = [16, 16, 128], strides = [1, 1, 1]} : vector<18x18x128xbf16> to vector<16x16x128xbf16>
    %35 = vector.extract_strided_slice %29 {offsets = [1, 2, 0], sizes = [16, 16, 128], strides = [1, 1, 1]} : vector<18x18x128xbf16> to vector<16x16x128xbf16>
    %36 = vector.extract_strided_slice %29 {offsets = [2, 0, 0], sizes = [16, 16, 128], strides = [1, 1, 1]} : vector<18x18x128xbf16> to vector<16x16x128xbf16>
    %37 = vector.extract_strided_slice %29 {offsets = [2, 1, 0], sizes = [16, 16, 128], strides = [1, 1, 1]} : vector<18x18x128xbf16> to vector<16x16x128xbf16>
    %38 = vector.extract_strided_slice %29 {offsets = [2, 2, 0], sizes = [16, 16, 128], strides = [1, 1, 1]} : vector<18x18x128xbf16> to vector<16x16x128xbf16>
    %39 = tpu.concatenate %30, %31, %32, %33, %34, %35, %36, %37, %38 in 2 : vector<16x16x128xbf16>, vector<16x16x128xbf16>, vector<16x16x128xbf16>, vector<16x16x128xbf16>, vector<16x16x128xbf16>, vector<16x16x128xbf16>, vector<16x16x128xbf16>, vector<16x16x128xbf16>, vector<16x16x128xbf16> -> vector<16x16x1152xbf16>
    %40 = vector.shape_cast %39 : vector<16x16x1152xbf16> to vector<256x1152xbf16>
    %c0_26 = arith.constant 0 : index
    %c0_27 = arith.constant 0 : index
    %41 = vector.load %arg4[%c0_26, %c0_27] : memref<1152x128xbf16, #tpu.memory_space<vmem>>, vector<1152x128xbf16>
    %cst_28 = arith.constant dense<0.000000e+00> : vector<256x128xf32>
    %42 = tpu.matmul %40, %41, %cst_28 {dimension_numbers = #tpu.dot_dimension_numbers<[1], [0], [0], [1], [0, 0, 1, 1], [], []>} : vector<256x1152xbf16>, vector<1152x128xbf16>, vector<256x128xf32> -> vector<256x128xf32>
    %43 = vector.extract_strided_slice %1 {offsets = [1, 1, 0], sizes = [16, 16, 128], strides = [1, 1, 1]} : vector<18x18x128xbf16> to vector<16x16x128xbf16>
    %44 = vector.shape_cast %43 : vector<16x16x128xbf16> to vector<256x128xbf16>
    %45 = arith.extf %44 : vector<256x128xbf16> to vector<256x128xf32>
    %c0_29 = arith.constant 0 : index
    %c0_30 = arith.constant 0 : index
    %46 = vector.load %arg5[%c0_29, %c0_30] : memref<1x128xf32, #tpu.memory_space<vmem>>, vector<1x128xf32>
    %47 = vector.broadcast %46 : vector<1x128xf32> to vector<256x128xf32>
    %48 = arith.addf %42, %47 : vector<256x128xf32>
    %49 = arith.addf %48, %45 : vector<256x128xf32>
    %cst_31 = arith.constant 0.000000e+00 : f32
    %50 = vector.broadcast %cst_31 : f32 to vector<256x128xf32>
    %51 = arith.maximumf %49, %50 : vector<256x128xf32>
    %52 = vector.shape_cast %51 : vector<256x128xf32> to vector<16x16x128xf32>
    %c0_32 = arith.constant 0 : index
    %c0_33 = arith.constant 0 : index
    %c0_34 = arith.constant 0 : index
    %c0_35 = arith.constant 0 : index
    %53 = vector.load %arg6[%c0_32, %c0_33, %c0_34, %c0_35] : memref<1x16x16x128xf32, #tpu.memory_space<vmem>>, vector<1x16x16x128xf32>
    %54 = vector.shape_cast %53 : vector<1x16x16x128xf32> to vector<16x16x128xf32>
    %55 = vector.shape_cast %52 : vector<16x16x128xf32> to vector<1x16x16x128xf32>
    tpu.vector_store %arg6[%c0_32, %c0_33, %c0_34, %c0_35], %55 {strides = array<i32>} : memref<1x16x16x128xf32, #tpu.memory_space<vmem>>, vector<1x16x16x128xf32>,
    return
  }
  func.func @transform_0(%arg0: i32) -> (i32, i32, i32, i32) {
    %c0_i32 = arith.constant 0 : i32
    %c0_i32_0 = arith.constant 0 : i32
    %c0_i32_1 = arith.constant 0 : i32
    %c0_i32_2 = arith.constant 0 : i32
    return %arg0, %c0_i32, %c0_i32_0, %c0_i32_1 : i32, i32, i32, i32
  }
  func.func @transform_1(%arg0: i32) -> (i32, i32) {
    %c0_i32 = arith.constant 0 : i32
    %c0_i32_0 = arith.constant 0 : i32
    %c0_i32_1 = arith.constant 0 : i32
    return %c0_i32, %c0_i32_0 : i32, i32
  }
  func.func @transform_2(%arg0: i32) -> (i32, i32) {
    %c0_i32 = arith.constant 0 : i32
    %c0_i32_0 = arith.constant 0 : i32
    %c0_i32_1 = arith.constant 0 : i32
    return %c0_i32, %c0_i32_0 : i32, i32
  }
  func.func @transform_3(%arg0: i32) -> (i32, i32) {
    %c0_i32 = arith.constant 0 : i32
    %c0_i32_0 = arith.constant 0 : i32
    %c0_i32_1 = arith.constant 0 : i32
    return %c0_i32, %c0_i32_0 : i32, i32
  }
  func.func @transform_4(%arg0: i32) -> (i32, i32) {
    %c0_i32 = arith.constant 0 : i32
    %c0_i32_0 = arith.constant 0 : i32
    %c0_i32_1 = arith.constant 0 : i32
    return %c0_i32, %c0_i32_0 : i32, i32
  }
  func.func @transform_5(%arg0: i32) -> (i32, i32, i32, i32) {
    %c0_i32 = arith.constant 0 : i32
    %c0_i32_0 = arith.constant 0 : i32
    %c0_i32_1 = arith.constant 0 : i32
    %c0_i32_2 = arith.constant 0 : i32
    return %arg0, %c0_i32, %c0_i32_0, %c0_i32_1 : i32, i32, i32, i32
  }
}

</mosaic_0001>

<llo_original>
// kernel: tpu_custom_call.1
$region0: #{tpu_custom_call.1}
  #allocation0 [shape = 'u32[]', space=smem, size = 0x4, offset = 0x4, fixed_abs, tag = 'smem constant byte address 0x4 - core index']
  #allocation1 [shape = 'u32[72,128]{1,0:T(1,128)}', space=vmem, size = 0x9000, scoped, tag = 'internal scratch']
  #allocation2 [shape = 'bf16[18,18,128]{2,1,0:T(8,128)(2,1)}', space=vmem, size = 0x1b000, scoped, tag = 'scratch operand']
  %s0 = inlined_call_operand.vmem [shape: bf16[2,18,18,128], index: 0, kind: input, shape index: {}]
  %s1 = inlined_call_operand.vmem [shape: bf16[1152,128], index: 1, kind: input, shape index: {}]
  %s2 = inlined_call_operand.vmem [shape: f32[1,128], index: 2, kind: input, shape index: {}]
  %s3 = inlined_call_operand.hbm [shape: bf16[1152,128], index: 3, kind: input, shape index: {}]
  %s4 = inlined_call_operand.vmem [shape: f32[1,128], index: 4, kind: input, shape index: {}]
  %s5 = inlined_call_operand.hbm [shape: f32[2,16,16,128], index: 5, kind: output, shape index: {}]
  %s6 = sld [smem:[#allocation0]]
  $region57: #{tpu_custom_call.1} parent=0
    _
  %s8 = ssub.s32 1, %s6
  %s9 = scalar_select 0, %s8, %s6
  $region1: #{tpu_custom_call.1} parent=0
    #allocation3 [shape = 'u8[294912]{0}', space=vmem, size = 0x48000, scoped, tag = 'input window, operand 3, single buffered']
    #allocation4 [shape = 's32[2]{0}', space=sflag, size = 0x8, scoped, tag = 'scoped memory for tpu_custom_call.1']
    #allocation5 [shape = 's32[2]{0}', space=sflag, size = 0x8, scoped, tag = 'scoped memory for tpu_custom_call.1']
    #allocation6 [shape = 'u8[262144]{0}', space=vmem, size = 0x40000, scoped, tag = 'output window, operand 0']
    %10 = vsyncpa [#allocation4], 0
    %11 = vsyncpa [#allocation5], 0
    %s12 = scalar_lea.sflag [#allocation5], 1
    %13 = vsyncpa %s12, 0
    loop: start=0, step=1, limit=4
    $region2: #{tpu_custom_call.1} parent=1 // loop_pre_header
      _
    $region3: #{tpu_custom_call.1} parent=1 // loop_header
      %s15 = sphi 0, %s19
      %p16 = scmp.ge.s32.totalorder %s15, 4
      %s25 = sphi 0, %s27
      %s28 = sphi 0, %s25
      %s29 = sphi 0, %s28
      %s45 = sphi 0, %s29
      %s49 = sphi 0, %s49
      %s51 = sphi 0, %s49
      %s52 = sphi 0, %s51
      %s66 = sphi 0, %s52
      %s70 = sphi 0, %s70
      %s72 = sphi 0, %s70
      %s73 = sphi 0, %s72
      %s87 = sphi 0, %s73
      %s91 = sphi 0, %s91
      %s93 = sphi 0, %s91
      %s94 = sphi 0, %s93
      %s108 = sphi 0, %s94
      %s112 = sphi 0, %s112
      %s114 = sphi 0, %s112
      %s115 = sphi 0, %s114
      %s129 = sphi 0, %s115
      %s135 = sphi 0, %s137
      %s138 = sphi 0, %s135
      %s139 = sphi 0, %s138
      %s155 = sphi 0, %s139
    $region4: #{tpu_custom_call.1} parent=1 // loop_header_branch
      %18 = sbr.rel (%p16) target = $region8
    $region5: #{tpu_custom_call.1} parent=1 // loop_body
      %s20 = ssub.s32 %s15, 1
      %s21 = ssub.s32 %s15, 2
      %s22 = sadd.s32 %s15, 1
      %s23 = ssub.s32 %s15, %s22
      %p24 = scmp.eq.s32.totalorder %s23, 0
      %s26 = sadd.s32 %s25, 1
      %s27 = scalar_select %p24, %s25, %s26
      %p30 = pneg %p24
      %p31 = scmp.eq.s32.totalorder %s15, 1
      %p32 = por %p30, %p31
      %p33 = scmp.ne.s32.totalorder %s25, %s28
      %p34 = scmp.eq.s32.totalorder %s15, 0
      %p35 = por %p33, %p34
      %p36 = scmp.ne.s32.totalorder %s25, %s28
      %p37 = scmp.eq.s32.totalorder %s20, 1
      %p38 = por %p36, %p37
      %p39 = scmp.ne.s32.totalorder %s28, %s29
      %p40 = scmp.eq.s32.totalorder %s20, 0
      %p41 = por %p39, %p40
      %p42 = scmp.ne.s32.totalorder %s28, %s29
      %p43 = scmp.eq.s32.totalorder %s21, 1
      %p44 = por %p42, %p43
      %p46 = scmp.ne.s32.totalorder %s29, %s45
      %p47 = scmp.eq.s32.totalorder %s21, 0
      %p48 = por %p46, %p47
      %s50 = sadd.s32 %s49, 1
      %p53 = scmp.eq.s32.totalorder %s15, 1
      %p54 = scmp.ne.s32.totalorder %s49, %s51
      %p55 = scmp.eq.s32.totalorder %s15, 0
      %p56 = por %p54, %p55
      %p57 = scmp.ne.s32.totalorder %s49, %s51
      %p58 = scmp.eq.s32.totalorder %s20, 1
      %p59 = por %p57, %p58
      %p60 = scmp.ne.s32.totalorder %s51, %s52
      %p61 = scmp.eq.s32.totalorder %s20, 0
      %p62 = por %p60, %p61
      %p63 = scmp.ne.s32.totalorder %s51, %s52
      %p64 = scmp.eq.s32.totalorder %s21, 1
      %p65 = por %p63, %p64
      %p67 = scmp.ne.s32.totalorder %s52, %s66
      %p68 = scmp.eq.s32.totalorder %s21, 0
      %p69 = por %p67, %p68
      %s71 = sadd.s32 %s70, 1
      %p74 = scmp.eq.s32.totalorder %s15, 1
      %p75 = scmp.ne.s32.totalorder %s70, %s72
      %p76 = scmp.eq.s32.totalorder %s15, 0
      %p77 = por %p75, %p76
      %p78 = scmp.ne.s32.totalorder %s70, %s72
      %p79 = scmp.eq.s32.totalorder %s20, 1
      %p80 = por %p78, %p79
      %p81 = scmp.ne.s32.totalorder %s72, %s73
      %p82 = scmp.eq.s32.totalorder %s20, 0
      %p83 = por %p81, %p82
      %p84 = scmp.ne.s32.totalorder %s72, %s73
      %p85 = scmp.eq.s32.totalorder %s21, 1
      %p86 = por %p84, %p85
      %p88 = scmp.ne.s32.totalorder %s73, %s87
      %p89 = scmp.eq.s32.totalorder %s21, 0
      %p90 = por %p88, %p89
      %s92 = sadd.s32 %s91, 1
      %p95 = scmp.eq.s32.totalorder %s15, 1
      %p96 = scmp.ne.s32.totalorder %s91, %s93
      %p97 = scmp.eq.s32.totalorder %s15, 0
      %p98 = por %p96, %p97
      %p99 = scmp.ne.s32.totalorder %s91, %s93
      %p100 = scmp.eq.s32.totalorder %s20, 1
      %p101 = por %p99, %p100
      %p102 = scmp.ne.s32.totalorder %s93, %s94
      %p103 = scmp.eq.s32.totalorder %s20, 0
      %p104 = por %p102, %p103
      %p105 = scmp.ne.s32.totalorder %s93, %s94
      %p106 = scmp.eq.s32.totalorder %s21, 1
      %p107 = por %p105, %p106
      %p109 = scmp.ne.s32.totalorder %s94, %s108
      %p110 = scmp.eq.s32.totalorder %s21, 0
      %p111 = por %p109, %p110
      %s113 = sadd.s32 %s112, 1
      %p116 = scmp.eq.s32.totalorder %s15, 1
      %p117 = scmp.ne.s32.totalorder %s112, %s114
      %p118 = scmp.eq.s32.totalorder %s15, 0
      %p119 = por %p117, %p118
      %p120 = scmp.ne.s32.totalorder %s112, %s114
      %p121 = scmp.eq.s32.totalorder %s20, 1
      %p122 = por %p120, %p121
      %p123 = scmp.ne.s32.totalorder %s114, %s115
      %p124 = scmp.eq.s32.totalorder %s20, 0
      %p125 = por %p123, %p124
      %p126 = scmp.ne.s32.totalorder %s114, %s115
      %p127 = scmp.eq.s32.totalorder %s21, 1
      %p128 = por %p126, %p127
      %p130 = scmp.ne.s32.totalorder %s115, %s129
      %p131 = scmp.eq.s32.totalorder %s21, 0
      %p132 = por %p130, %p131
      %s133 = ssub.s32 %s15, %s22
      %p134 = scmp.eq.s32.totalorder %s133, 0
      %s136 = sadd.s32 %s135, 1
      %s137 = scalar_select %p134, %s135, %s136
      %p140 = pneg %p134
      %p141 = scmp.eq.s32.totalorder %s15, 1
      %p142 = por %p140, %p141
      %p143 = scmp.ne.s32.totalorder %s135, %s138
      %p144 = scmp.eq.s32.totalorder %s15, 0
      %p145 = por %p143, %p144
      %p146 = scmp.ne.s32.totalorder %s135, %s138
      %p147 = scmp.eq.s32.totalorder %s20, 1
      %p148 = por %p146, %p147
      %p149 = scmp.ne.s32.totalorder %s138, %s139
      %p150 = scmp.eq.s32.totalorder %s20, 0
      %p151 = por %p149, %p150
      %p152 = scmp.ne.s32.totalorder %s138, %s139
      %p153 = scmp.eq.s32.totalorder %s21, 1
      %p154 = por %p152, %p153
      %p156 = scmp.ne.s32.totalorder %s139, %s155
      %p157 = scmp.eq.s32.totalorder %s21, 0
      %p158 = por %p156, %p157
      %p159 = scmp.le.s32.totalorder 1, %s15
      %p160 = scmp.lt.s32.totalorder %s15, 3
      %p161 = pnand %p159, %p160
      %p162 = pneg %p161
      // Predicated region
      $region9: #{tpu_custom_call.1} parent=5 // pred_check
        _
      $region10: #{tpu_custom_call.1} parent=5 // pred_check_branch
        %164 = sbr.rel (%p161) target = $region12
      $region11: #{tpu_custom_call.1} parent=5 // pred_region
        %s165 = ssub.s32 %s15, 1
        // Predicated region
        $region13: #{tpu_custom_call.1} parent=11 // pred_check
          %p166 = pneg %p62
        $region14: #{tpu_custom_call.1} parent=11 // pred_check_branch
          %168 = sbr.rel (%p166) target = $region16
        $region15: #{tpu_custom_call.1} parent=11 // pred_region
          _
        $region16: #{tpu_custom_call.1} parent=11 // pred_fallthru
          _
        // Predicated region
        $region17: #{tpu_custom_call.1} parent=11 // pred_check
          %p169 = pneg %p83
        $region18: #{tpu_custom_call.1} parent=11 // pred_check_branch
          %171 = sbr.rel (%p169) target = $region20
        $region19: #{tpu_custom_call.1} parent=11 // pred_region
          _
        $region20: #{tpu_custom_call.1} parent=11 // pred_fallthru
          _
        // Predicated region
        $region21: #{tpu_custom_call.1} parent=11 // pred_check
          %p172 = pneg %p104
        $region22: #{tpu_custom_call.1} parent=11 // pred_check_branch
          %174 = sbr.rel (%p172) target = $region24
        $region23: #{tpu_custom_call.1} parent=11 // pred_region
          %176 = vsyncadd [#allocation4], 0
          %s177 = sshll.u32 %s3, 4
          %s178 = int_to_ptr.hbm [resolvable:$true] %s177
          %s179 = sshll.u32 [#allocation3], 4
          %s180 = int_to_ptr.vmem [resolvable:$true] %s179
          %185 = dma.hbm_to_vmem [thread:$0]  %s178, 9216, %s180, [#allocation4], 64, 64, 4
        $region24: #{tpu_custom_call.1} parent=11 // pred_fallthru
          _
        // Predicated region
        $region25: #{tpu_custom_call.1} parent=11 // pred_check
          %p186 = pneg %p125
        $region26: #{tpu_custom_call.1} parent=11 // pred_check_branch
          %188 = sbr.rel (%p186) target = $region28
        $region27: #{tpu_custom_call.1} parent=11 // pred_region
          _
        $region28: #{tpu_custom_call.1} parent=11 // pred_fallthru
          _
      $region12: #{tpu_custom_call.1} parent=5 // pred_fallthru
        _
      %p189 = scmp.lt.s32.totalorder %s15, 2
      // Predicated region
      $region29: #{tpu_custom_call.1} parent=5 // pred_check
        %p190 = pneg %p189
      $region30: #{tpu_custom_call.1} parent=5 // pred_check_branch
        %192 = sbr.rel (%p190) target = $region32
      $region31: #{tpu_custom_call.1} parent=5 // pred_region
        // Predicated region
        $region33: #{tpu_custom_call.1} parent=31 // pred_check
          %p193 = pneg %p35
        $region34: #{tpu_custom_call.1} parent=31 // pred_check_branch
          %195 = sbr.rel (%p193) target = $region36
        $region35: #{tpu_custom_call.1} parent=31 // pred_region
          %p196 = scmp.lt.s32.totalorder %s15, 1
          %s197 = scalar_select %p196, %s15, 1
          %s198 = smul.addr %s197, 54
          %s199 = smul.addr %s198, 4
          %s200 = scalar_lea.vmem %s0, %s199
        $region36: #{tpu_custom_call.1} parent=31 // pred_fallthru
          _
      $region32: #{tpu_custom_call.1} parent=5 // pred_fallthru
        _
      %p201 = scmp.le.s32.totalorder 1, %s15
      %p202 = scmp.lt.s32.totalorder %s15, 3
      %p203 = pnand %p201, %p202
      %p204 = pneg %p203
      // Predicated region
      $region37: #{tpu_custom_call.1} parent=5 // pred_check
        _
      $region38: #{tpu_custom_call.1} parent=5 // pred_check_branch
        %206 = sbr.rel (%p203) target = $region40
      $region39: #{tpu_custom_call.1} parent=5 // pred_region
        %s207 = ssub.s32 %s15, 1
        // Predicated region
        $region41: #{tpu_custom_call.1} parent=39 // pred_check
          %p208 = pneg %p104
        $region42: #{tpu_custom_call.1} parent=39 // pred_check_branch
          %210 = sbr.rel (%p208) target = $region44
        $region43: #{tpu_custom_call.1} parent=39 // pred_region
          %212 = dma.done [#allocation4], 9216
        $region44: #{tpu_custom_call.1} parent=39 // pred_fallthru
          _
        %p213 = scmp.lt.s32.totalorder %s20, 1
        %s214 = scalar_select %p213, %s20, 1
        %s215 = smul.addr %s214, 54
        %s216 = smul.addr %s215, 4
        %s217 = scalar_lea.vmem %s0, %s216
        %p218 = pneg %p41
        %p219 = pneg %p38
        %p220 = pneg %p62
        %p221 = pneg %p59
        %p222 = pneg %p83
        %p223 = pneg %p80
        %p224 = pneg %p104
        %p225 = pneg %p101
        %p226 = pneg %p125
        %p227 = pneg %p122
        %p228 = pneg %p151
        %p229 = pneg %p148
        %s230 = sand.u32 %s138, 1
        %s231 = scalar_lea.sflag [#allocation5], %s230
        %s232 = sand.u32 %s138, 1
        %s233 = smul.addr %s232, 256
        %s234 = scalar_lea.vmem [#allocation6], %s233
        %p235 = scmp.lt.s32.totalorder %s20, 1
        %s236 = scalar_select %p235, %s20, 1
        %s237 = smul.addr %s236, 54
        %s238 = smul.addr %s237, 4
        %s239 = scalar_lea.vmem %s0, %s238
        %v241 = vld [vmem:[%s239] sm:$0xf]
        %v242 = vld [vmem:[%s239 + $0x4] sm:$0xf]
        %v243 = vld [vmem:[%s239 + $0x8] sm:$0x1]
        %v244 = vld [vmem:[%s239 + $0xc] sm:$0xf]
        %v245 = vld [vmem:[%s239 + $0x10] sm:$0xf]
        %v246 = vld [vmem:[%s239 + $0x14] sm:$0x1]
        %v247 = vld [vmem:[%s239 + $0x18] sm:$0xf]
        %v248 = vld [vmem:[%s239 + $0x1c] sm:$0xf]
        %v249 = vld [vmem:[%s239 + $0x20] sm:$0x1]
        %v250 = vld [vmem:[%s239 + $0x24] sm:$0xf]
        %v251 = vld [vmem:[%s239 + $0x28] sm:$0xf]
        %v252 = vld [vmem:[%s239 + $0x2c] sm:$0x1]
        %v253 = vld [vmem:[%s239 + $0x30] sm:$0xf]
        %v254 = vld [vmem:[%s239 + $0x34] sm:$0xf]
        %v255 = vld [vmem:[%s239 + $0x38] sm:$0x1]
        %v256 = vld [vmem:[%s239 + $0x3c] sm:$0xf]
        %v257 = vld [vmem:[%s239 + $0x40] sm:$0xf]
        %v258 = vld [vmem:[%s239 + $0x44] sm:$0x1]
        %v259 = vld [vmem:[%s239 + $0x48] sm:$0xf]
        %v260 = vld [vmem:[%s239 + $0x4c] sm:$0xf]
        %v261 = vld [vmem:[%s239 + $0x50] sm:$0x1]
        %v262 = vld [vmem:[%s239 + $0x54] sm:$0xf]
        %v263 = vld [vmem:[%s239 + $0x58] sm:$0xf]
        %v264 = vld [vmem:[%s239 + $0x5c] sm:$0x1]
        %v265 = vld [vmem:[%s239 + $0x60] sm:$0xf]
        %v266 = vld [vmem:[%s239 + $0x64] sm:$0xf]
        %v267 = vld [vmem:[%s239 + $0x68] sm:$0x1]
        %v268 = vld [vmem:[%s239 + $0x6c] sm:$0xf]
        %v269 = vld [vmem:[%s239 + $0x70] sm:$0xf]
        %v270 = vld [vmem:[%s239 + $0x74] sm:$0x1]
        %v271 = vld [vmem:[%s239 + $0x78] sm:$0xf]
        %v272 = vld [vmem:[%s239 + $0x7c] sm:$0xf]
        %v273 = vld [vmem:[%s239 + $0x80] sm:$0x1]
        %v274 = vld [vmem:[%s239 + $0x84] sm:$0xf]
        %v275 = vld [vmem:[%s239 + $0x88] sm:$0xf]
        %v276 = vld [vmem:[%s239 + $0x8c] sm:$0x1]
        %v277 = vld [vmem:[%s239 + $0x90] sm:$0xf]
        %v278 = vld [vmem:[%s239 + $0x94] sm:$0xf]
        %v279 = vld [vmem:[%s239 + $0x98] sm:$0x1]
        %v280 = vld [vmem:[%s239 + $0x9c] sm:$0xf]
        %v281 = vld [vmem:[%s239 + $0xa0] sm:$0xf]
        %v282 = vld [vmem:[%s239 + $0xa4] sm:$0x1]
        %v283 = vld [vmem:[%s239 + $0xa8] sm:$0xf]
        %v284 = vld [vmem:[%s239 + $0xac] sm:$0xf]
        %v285 = vld [vmem:[%s239 + $0xb0] sm:$0x1]
        %v286 = vld [vmem:[%s239 + $0xb4] sm:$0xf]
        %v287 = vld [vmem:[%s239 + $0xb8] sm:$0xf]
        %v288 = vld [vmem:[%s239 + $0xbc] sm:$0x1]
        %v289 = vld [vmem:[%s239 + $0xc0] sm:$0xf]
        %v290 = vld [vmem:[%s239 + $0xc4] sm:$0xf]
        %v291 = vld [vmem:[%s239 + $0xc8] sm:$0x1]
        %v292 = vld [vmem:[%s239 + $0xcc] sm:$0xf]
        %v293 = vld [vmem:[%s239 + $0xd0] sm:$0xf]
        %v294 = vld [vmem:[%s239 + $0xd4] sm:$0x1]
        %v327 = vunpack.c.l.b16 %v241
        %v328 = vunpack.c.l.b16 %v242
        %v329 = vunpack.c.l.b16 %v244
        %v330 = vunpack.c.l.b16 %v245
        %v331 = vunpack.c.l.b16 %v247
        %v332 = vunpack.c.l.b16 %v248
        %v333 = vunpack.c.l.b16 %v250
        %v334 = vunpack.c.l.b16 %v251
        %v335 = vunpack.c.l.b16 %v253
        %v336 = vunpack.c.l.b16 %v254
        %v337 = vunpack.c.l.b16 %v256
        %v338 = vunpack.c.l.b16 %v257
        %v339 = vunpack.c.l.b16 %v259
        %v340 = vunpack.c.l.b16 %v260
        %v341 = vunpack.c.l.b16 %v262
        %v342 = vunpack.c.l.b16 %v263
        %v343 = vunpack.c.l.b16 %v265
        %v344 = vunpack.c.l.b16 %v266
        %v345 = vunpack.c.l.b16 %v268
        %v346 = vunpack.c.l.b16 %v269
        %v347 = vunpack.c.l.b16 %v271
        %v348 = vunpack.c.l.b16 %v272
        %v349 = vunpack.c.l.b16 %v274
        %v350 = vunpack.c.l.b16 %v275
        %v351 = vunpack.c.l.b16 %v277
        %v352 = vunpack.c.l.b16 %v278
        %v353 = vunpack.c.l.b16 %v280
        %v354 = vunpack.c.l.b16 %v281
        %v355 = vunpack.c.l.b16 %v283
        %v356 = vunpack.c.l.b16 %v284
        %v357 = vunpack.c.l.b16 %v286
        %v358 = vunpack.c.l.b16 %v287
        %v359 = vpack.c.b16 %v328, %v327
        %v360 = vpack.c.b16 %v330, %v329
        %v361 = vpack.c.b16 %v332, %v331
        %v362 = vpack.c.b16 %v334, %v333
        %v363 = vpack.c.b16 %v336, %v335
        %v364 = vpack.c.b16 %v338, %v337
        %v365 = vpack.c.b16 %v340, %v339
        %v366 = vpack.c.b16 %v342, %v341
        %v367 = vpack.c.b16 %v344, %v343
        %v368 = vpack.c.b16 %v346, %v345
        %v369 = vpack.c.b16 %v348, %v347
        %v370 = vpack.c.b16 %v350, %v349
        %v371 = vpack.c.b16 %v352, %v351
        %v372 = vpack.c.b16 %v354, %v353
        %v373 = vpack.c.b16 %v356, %v355
        %v374 = vpack.c.b16 %v358, %v357
        %v407 = vunpack.c.l.b16 %v243
        %v408 = vunpack.c.l.b16 %v246
        %v409 = vunpack.c.l.b16 %v249
        %v410 = vunpack.c.l.b16 %v252
        %v411 = vunpack.c.l.b16 %v255
        %v412 = vunpack.c.l.b16 %v258
        %v413 = vunpack.c.l.b16 %v261
        %v414 = vunpack.c.l.b16 %v264
        %v415 = vunpack.c.l.b16 %v267
        %v416 = vunpack.c.l.b16 %v270
        %v417 = vunpack.c.l.b16 %v273
        %v418 = vunpack.c.l.b16 %v276
        %v419 = vunpack.c.l.b16 %v279
        %v420 = vunpack.c.l.b16 %v282
        %v421 = vunpack.c.l.b16 %v285
        %v422 = vunpack.c.l.b16 %v288
        %v423 = vpack.c.b16 %v407, %v407
        %v424 = vpack.c.b16 %v408, %v408
        %v425 = vpack.c.b16 %v409, %v409
        %v426 = vpack.c.b16 %v410, %v410
        %v427 = vpack.c.b16 %v411, %v411
        %v428 = vpack.c.b16 %v412, %v412
        %v429 = vpack.c.b16 %v413, %v413
        %v430 = vpack.c.b16 %v414, %v414
        %v431 = vpack.c.b16 %v415, %v415
        %v432 = vpack.c.b16 %v416, %v416
        %v433 = vpack.c.b16 %v417, %v417
        %v434 = vpack.c.b16 %v418, %v418
        %v435 = vpack.c.b16 %v419, %v419
        %v436 = vpack.c.b16 %v420, %v420
        %v437 = vpack.c.b16 %v421, %v421
        %v438 = vpack.c.b16 %v422, %v422
        %vm439 = vsmask.f32 7424
        %v441 = vshrl.u32 %v359, 16
        %v443 = vshll.u32 %v359, 16
        %v445 = vrot.slane %v443, 1
        %v446 = vor.u32 %v441, %v445
        %v448 = vshll.u32 %v423, 16
        %v450 = vrot.slane %v448, 1
        %v451 = vsel %vm439, %v446, %v450
        %v453 = vshrl.u32 %v360, 16
        %v455 = vshll.u32 %v360, 16
        %v457 = vrot.slane %v455, 1
        %v458 = vor.u32 %v453, %v457
        %v460 = vshll.u32 %v424, 16
        %v462 = vrot.slane %v460, 1
        %v463 = vsel %vm439, %v458, %v462
        %v465 = vshrl.u32 %v361, 16
        %v467 = vshll.u32 %v361, 16
        %v469 = vrot.slane %v467, 1
        %v470 = vor.u32 %v465, %v469
        %v472 = vshll.u32 %v425, 16
        %v474 = vrot.slane %v472, 1
        %v475 = vsel %vm439, %v470, %v474
        %v477 = vshrl.u32 %v362, 16
        %v479 = vshll.u32 %v362, 16
        %v481 = vrot.slane %v479, 1
        %v482 = vor.u32 %v477, %v481
        %v484 = vshll.u32 %v426, 16
        %v486 = vrot.slane %v484, 1
        %v487 = vsel %vm439, %v482, %v486
        %v489 = vshrl.u32 %v363, 16
        %v491 = vshll.u32 %v363, 16
        %v493 = vrot.slane %v491, 1
        %v494 = vor.u32 %v489, %v493
        %v496 = vshll.u32 %v427, 16
        %v498 = vrot.slane %v496, 1
        %v499 = vsel %vm439, %v494, %v498
        %v501 = vshrl.u32 %v364, 16
        %v503 = vshll.u32 %v364, 16
        %v505 = vrot.slane %v503, 1
        %v506 = vor.u32 %v501, %v505
        %v508 = vshll.u32 %v428, 16
        %v510 = vrot.slane %v508, 1
        %v511 = vsel %vm439, %v506, %v510
        %v513 = vshrl.u32 %v365, 16
        %v515 = vshll.u32 %v365, 16
        %v517 = vrot.slane %v515, 1
        %v518 = vor.u32 %v513, %v517
        %v520 = vshll.u32 %v429, 16
        %v522 = vrot.slane %v520, 1
        %v523 = vsel %vm439, %v518, %v522
        %v525 = vshrl.u32 %v366, 16
        %v527 = vshll.u32 %v366, 16
        %v529 = vrot.slane %v527, 1
        %v530 = vor.u32 %v525, %v529
        %v532 = vshll.u32 %v430, 16
        %v534 = vrot.slane %v532, 1
        %v535 = vsel %vm439, %v530, %v534
        %v537 = vshrl.u32 %v367, 16
        %v539 = vshll.u32 %v367, 16
        %v541 = vrot.slane %v539, 1
        %v542 = vor.u32 %v537, %v541
        %v544 = vshll.u32 %v431, 16
        %v546 = vrot.slane %v544, 1
        %v547 = vsel %vm439, %v542, %v546
        %v549 = vshrl.u32 %v368, 16
        %v551 = vshll.u32 %v368, 16
        %v553 = vrot.slane %v551, 1
        %v554 = vor.u32 %v549, %v553
        %v556 = vshll.u32 %v432, 16
        %v558 = vrot.slane %v556, 1
        %v559 = vsel %vm439, %v554, %v558
        %v561 = vshrl.u32 %v369, 16
        %v563 = vshll.u32 %v369, 16
        %v565 = vrot.slane %v563, 1
        %v566 = vor.u32 %v561, %v565
        %v568 = vshll.u32 %v433, 16
        %v570 = vrot.slane %v568, 1
        %v571 = vsel %vm439, %v566, %v570
        %v573 = vshrl.u32 %v370, 16
        %v575 = vshll.u32 %v370, 16
        %v577 = vrot.slane %v575, 1
        %v578 = vor.u32 %v573, %v577
        %v580 = vshll.u32 %v434, 16
        %v582 = vrot.slane %v580, 1
        %v583 = vsel %vm439, %v578, %v582
        %v585 = vshrl.u32 %v371, 16
        %v587 = vshll.u32 %v371, 16
        %v589 = vrot.slane %v587, 1
        %v590 = vor.u32 %v585, %v589
        %v592 = vshll.u32 %v435, 16
        %v594 = vrot.slane %v592, 1
        %v595 = vsel %vm439, %v590, %v594
        %v597 = vshrl.u32 %v372, 16
        %v599 = vshll.u32 %v372, 16
        %v601 = vrot.slane %v599, 1
        %v602 = vor.u32 %v597, %v601
        %v604 = vshll.u32 %v436, 16
        %v606 = vrot.slane %v604, 1
        %v607 = vsel %vm439, %v602, %v606
        %v609 = vshrl.u32 %v373, 16
        %v611 = vshll.u32 %v373, 16
        %v613 = vrot.slane %v611, 1
        %v614 = vor.u32 %v609, %v613
        %v616 = vshll.u32 %v437, 16
        %v618 = vrot.slane %v616, 1
        %v619 = vsel %vm439, %v614, %v618
        %v621 = vshrl.u32 %v374, 16
        %v623 = vshll.u32 %v374, 16
        %v625 = vrot.slane %v623, 1
        %v626 = vor.u32 %v621, %v625
        %v628 = vshll.u32 %v438, 16
        %v630 = vrot.slane %v628, 1
        %v631 = vsel %vm439, %v626, %v630
        %vm648 = vcmask 1046528
        %v649 = vrot.slane %v359, 1
        %v650 = vrot.slane %v423, 1
        %v651 = vsel %vm648, %v649, %v650
        %v652 = vrot.slane %v360, 1
        %v653 = vrot.slane %v424, 1
        %v654 = vsel %vm648, %v652, %v653
        %v655 = vrot.slane %v361, 1
        %v656 = vrot.slane %v425, 1
        %v657 = vsel %vm648, %v655, %v656
        %v658 = vrot.slane %v362, 1
        %v659 = vrot.slane %v426, 1
        %v660 = vsel %vm648, %v658, %v659
        %v661 = vrot.slane %v363, 1
        %v662 = vrot.slane %v427, 1
        %v663 = vsel %vm648, %v661, %v662
        %v664 = vrot.slane %v364, 1
        %v665 = vrot.slane %v428, 1
        %v666 = vsel %vm648, %v664, %v665
        %v667 = vrot.slane %v365, 1
        %v668 = vrot.slane %v429, 1
        %v669 = vsel %vm648, %v667, %v668
        %v670 = vrot.slane %v366, 1
        %v671 = vrot.slane %v430, 1
        %v672 = vsel %vm648, %v670, %v671
        %v673 = vrot.slane %v367, 1
        %v674 = vrot.slane %v431, 1
        %v675 = vsel %vm648, %v673, %v674
        %v676 = vrot.slane %v368, 1
        %v677 = vrot.slane %v432, 1
        %v678 = vsel %vm648, %v676, %v677
        %v679 = vrot.slane %v369, 1
        %v680 = vrot.slane %v433, 1
        %v681 = vsel %vm648, %v679, %v680
        %v682 = vrot.slane %v370, 1
        %v683 = vrot.slane %v434, 1
        %v684 = vsel %vm648, %v682, %v683
        %v685 = vrot.slane %v371, 1
        %v686 = vrot.slane %v435, 1
        %v687 = vsel %vm648, %v685, %v686
        %v688 = vrot.slane %v372, 1
        %v689 = vrot.slane %v436, 1
        %v690 = vsel %vm648, %v688, %v689
        %v691 = vrot.slane %v373, 1
        %v692 = vrot.slane %v437, 1
        %v693 = vsel %vm648, %v691, %v692
        %v694 = vrot.slane %v374, 1
        %v695 = vrot.slane %v438, 1
        %v696 = vsel %vm648, %v694, %v695
        %v715 = vunpack.c.l.b16 %v289
        %v716 = vunpack.c.l.b16 %v290
        %v717 = vpack.c.b16 %v716, %v715
        %v720 = vunpack.c.l.b16 %v291
        %v721 = vpack.c.b16 %v720, %v720
        %v723 = vshrl.u32 %v717, 16
        %v725 = vshll.u32 %v717, 16
        %v727 = vrot.slane %v725, 1
        %v728 = vor.u32 %v723, %v727
        %v730 = vshll.u32 %v721, 16
        %v732 = vrot.slane %v730, 1
        %v733 = vsel %vm439, %v728, %v732
        %v735 = vrot.slane %v717, 1
        %v736 = vrot.slane %v721, 1
        %v737 = vsel %vm648, %v735, %v736
        %v741 = vunpack.c.l.b16 %v292
        %v742 = vunpack.c.l.b16 %v293
        %v743 = vpack.c.b16 %v742, %v741
        %v746 = vunpack.c.l.b16 %v294
        %v747 = vpack.c.b16 %v746, %v746
        %v749 = vshrl.u32 %v743, 16
        %v751 = vshll.u32 %v743, 16
        %v753 = vrot.slane %v751, 1
        %v754 = vor.u32 %v749, %v753
        %v756 = vshll.u32 %v747, 16
        %v758 = vrot.slane %v756, 1
        %v759 = vsel %vm439, %v754, %v758
        %v761 = vrot.slane %v743, 1
        %v762 = vrot.slane %v747, 1
        %v763 = vsel %vm648, %v761, %v762
        %v765 = vld [vmem:[%s1] sm:$0xf]
        %v766 = vld [vmem:[%s1 + $0x4] sm:$0xf]
        %v767 = vld [vmem:[%s1 + $0x8] sm:$0xf]
        %v768 = vld [vmem:[%s1 + $0xc] sm:$0xf]
        %v769 = vld [vmem:[%s1 + $0x10] sm:$0xf]
        %v770 = vld [vmem:[%s1 + $0x14] sm:$0xf]
        %v771 = vld [vmem:[%s1 + $0x18] sm:$0xf]
        %v772 = vld [vmem:[%s1 + $0x1c] sm:$0xf]
        %v773 = vld [vmem:[%s1 + $0x20] sm:$0xf]
        %v774 = vld [vmem:[%s1 + $0x24] sm:$0xf]
        %v775 = vld [vmem:[%s1 + $0x28] sm:$0xf]
        %v776 = vld [vmem:[%s1 + $0x2c] sm:$0xf]
        %v777 = vld [vmem:[%s1 + $0x30] sm:$0xf]
        %v778 = vld [vmem:[%s1 + $0x34] sm:$0xf]
        %v779 = vld [vmem:[%s1 + $0x38] sm:$0xf]
        %v780 = vld [vmem:[%s1 + $0x3c] sm:$0xf]
        %v781 = vld [vmem:[%s1 + $0x40] sm:$0xf]
        %v782 = vld [vmem:[%s1 + $0x44] sm:$0xf]
        %v783 = vld [vmem:[%s1 + $0x48] sm:$0xf]
        %v784 = vld [vmem:[%s1 + $0x4c] sm:$0xf]
        %v785 = vld [vmem:[%s1 + $0x50] sm:$0xf]
        %v786 = vld [vmem:[%s1 + $0x54] sm:$0xf]
        %v787 = vld [vmem:[%s1 + $0x58] sm:$0xf]
        %v788 = vld [vmem:[%s1 + $0x5c] sm:$0xf]
        %v789 = vld [vmem:[%s1 + $0x60] sm:$0xf]
        %v790 = vld [vmem:[%s1 + $0x64] sm:$0xf]
        %v791 = vld [vmem:[%s1 + $0x68] sm:$0xf]
        %v792 = vld [vmem:[%s1 + $0x6c] sm:$0xf]
        %v793 = vld [vmem:[%s1 + $0x70] sm:$0xf]
        %v794 = vld [vmem:[%s1 + $0x74] sm:$0xf]
        %v795 = vld [vmem:[%s1 + $0x78] sm:$0xf]
        %v796 = vld [vmem:[%s1 + $0x7c] sm:$0xf]
        %v797 = vld [vmem:[%s1 + $0x80] sm:$0xf]
        %v798 = vld [vmem:[%s1 + $0x84] sm:$0xf]
        %v799 = vld [vmem:[%s1 + $0x88] sm:$0xf]
        %v800 = vld [vmem:[%s1 + $0x8c] sm:$0xf]
        %v801 = vld [vmem:[%s1 + $0x90] sm:$0xf]
        %v802 = vld [vmem:[%s1 + $0x94] sm:$0xf]
        %v803 = vld [vmem:[%s1 + $0x98] sm:$0xf]
        %v804 = vld [vmem:[%s1 + $0x9c] sm:$0xf]
        %v805 = vld [vmem:[%s1 + $0xa0] sm:$0xf]
        %v806 = vld [vmem:[%s1 + $0xa4] sm:$0xf]
        %v807 = vld [vmem:[%s1 + $0xa8] sm:$0xf]
        %v808 = vld [vmem:[%s1 + $0xac] sm:$0xf]
        %v809 = vld [vmem:[%s1 + $0xb0] sm:$0xf]
        %v810 = vld [vmem:[%s1 + $0xb4] sm:$0xf]
        %v811 = vld [vmem:[%s1 + $0xb8] sm:$0xf]
        %v812 = vld [vmem:[%s1 + $0xbc] sm:$0xf]
        %v813 = vld [vmem:[%s1 + $0xc0] sm:$0xf]
        %v814 = vld [vmem:[%s1 + $0xc4] sm:$0xf]
        %v815 = vld [vmem:[%s1 + $0xc8] sm:$0xf]
        %v816 = vld [vmem:[%s1 + $0xcc] sm:$0xf]
        %v817 = vld [vmem:[%s1 + $0xd0] sm:$0xf]
        %v818 = vld [vmem:[%s1 + $0xd4] sm:$0xf]
        %v819 = vld [vmem:[%s1 + $0xd8] sm:$0xf]
        %v820 = vld [vmem:[%s1 + $0xdc] sm:$0xf]
        %v821 = vld [vmem:[%s1 + $0xe0] sm:$0xf]
        %v822 = vld [vmem:[%s1 + $0xe4] sm:$0xf]
        %v823 = vld [vmem:[%s1 + $0xe8] sm:$0xf]
        %v824 = vld [vmem:[%s1 + $0xec] sm:$0xf]
        %v825 = vld [vmem:[%s1 + $0xf0] sm:$0xf]
        %v826 = vld [vmem:[%s1 + $0xf4] sm:$0xf]
        %v827 = vld [vmem:[%s1 + $0xf8] sm:$0xf]
        %v828 = vld [vmem:[%s1 + $0xfc] sm:$0xf]
        %v829 = vld [vmem:[%s1 + $0x100] sm:$0xf]
        %v830 = vld [vmem:[%s1 + $0x104] sm:$0xf]
        %v831 = vld [vmem:[%s1 + $0x108] sm:$0xf]
        %v832 = vld [vmem:[%s1 + $0x10c] sm:$0xf]
        %v833 = vld [vmem:[%s1 + $0x110] sm:$0xf]
        %v834 = vld [vmem:[%s1 + $0x114] sm:$0xf]
        %v835 = vld [vmem:[%s1 + $0x118] sm:$0xf]
        %v836 = vld [vmem:[%s1 + $0x11c] sm:$0xf]
        %v837 = vld [vmem:[%s1 + $0x120] sm:$0xf]
        %v838 = vld [vmem:[%s1 + $0x124] sm:$0xf]
        %v839 = vld [vmem:[%s1 + $0x128] sm:$0xf]
        %v840 = vld [vmem:[%s1 + $0x12c] sm:$0xf]
        %v841 = vld [vmem:[%s1 + $0x130] sm:$0xf]
        %v842 = vld [vmem:[%s1 + $0x134] sm:$0xf]
        %v843 = vld [vmem:[%s1 + $0x138] sm:$0xf]
        %v844 = vld [vmem:[%s1 + $0x13c] sm:$0xf]
        %v845 = vld [vmem:[%s1 + $0x140] sm:$0xf]
        %v846 = vld [vmem:[%s1 + $0x144] sm:$0xf]
        %v847 = vld [vmem:[%s1 + $0x148] sm:$0xf]
        %v848 = vld [vmem:[%s1 + $0x14c] sm:$0xf]
        %v849 = vld [vmem:[%s1 + $0x150] sm:$0xf]
        %v850 = vld [vmem:[%s1 + $0x154] sm:$0xf]
        %v851 = vld [vmem:[%s1 + $0x158] sm:$0xf]
        %v852 = vld [vmem:[%s1 + $0x15c] sm:$0xf]
        %v853 = vld [vmem:[%s1 + $0x160] sm:$0xf]
        %v854 = vld [vmem:[%s1 + $0x164] sm:$0xf]
        %v855 = vld [vmem:[%s1 + $0x168] sm:$0xf]
        %v856 = vld [vmem:[%s1 + $0x16c] sm:$0xf]
        %v857 = vld [vmem:[%s1 + $0x170] sm:$0xf]
        %v858 = vld [vmem:[%s1 + $0x174] sm:$0xf]
        %v859 = vld [vmem:[%s1 + $0x178] sm:$0xf]
        %v860 = vld [vmem:[%s1 + $0x17c] sm:$0xf]
        %v861 = vld [vmem:[%s1 + $0x180] sm:$0xf]
        %v862 = vld [vmem:[%s1 + $0x184] sm:$0xf]
        %v863 = vld [vmem:[%s1 + $0x188] sm:$0xf]
        %v864 = vld [vmem:[%s1 + $0x18c] sm:$0xf]
        %v865 = vld [vmem:[%s1 + $0x190] sm:$0xf]
        %v866 = vld [vmem:[%s1 + $0x194] sm:$0xf]
        %v867 = vld [vmem:[%s1 + $0x198] sm:$0xf]
        %v868 = vld [vmem:[%s1 + $0x19c] sm:$0xf]
        %v869 = vld [vmem:[%s1 + $0x1a0] sm:$0xf]
        %v870 = vld [vmem:[%s1 + $0x1a4] sm:$0xf]
        %v871 = vld [vmem:[%s1 + $0x1a8] sm:$0xf]
        %v872 = vld [vmem:[%s1 + $0x1ac] sm:$0xf]
        %v873 = vld [vmem:[%s1 + $0x1b0] sm:$0xf]
        %v874 = vld [vmem:[%s1 + $0x1b4] sm:$0xf]
        %v875 = vld [vmem:[%s1 + $0x1b8] sm:$0xf]
        %v876 = vld [vmem:[%s1 + $0x1bc] sm:$0xf]
        %v877 = vld [vmem:[%s1 + $0x1c0] sm:$0xf]
        %v878 = vld [vmem:[%s1 + $0x1c4] sm:$0xf]
        %v879 = vld [vmem:[%s1 + $0x1c8] sm:$0xf]
        %v880 = vld [vmem:[%s1 + $0x1cc] sm:$0xf]
        %v881 = vld [vmem:[%s1 + $0x1d0] sm:$0xf]
        %v882 = vld [vmem:[%s1 + $0x1d4] sm:$0xf]
        %v883 = vld [vmem:[%s1 + $0x1d8] sm:$0xf]
        %v884 = vld [vmem:[%s1 + $0x1dc] sm:$0xf]
        %v885 = vld [vmem:[%s1 + $0x1e0] sm:$0xf]
        %v886 = vld [vmem:[%s1 + $0x1e4] sm:$0xf]
        %v887 = vld [vmem:[%s1 + $0x1e8] sm:$0xf]
        %v888 = vld [vmem:[%s1 + $0x1ec] sm:$0xf]
        %v889 = vld [vmem:[%s1 + $0x1f0] sm:$0xf]
        %v890 = vld [vmem:[%s1 + $0x1f4] sm:$0xf]
        %v891 = vld [vmem:[%s1 + $0x1f8] sm:$0xf]
        %v892 = vld [vmem:[%s1 + $0x1fc] sm:$0xf]
        %v893 = vld [vmem:[%s1 + $0x200] sm:$0xf]
        %v894 = vld [vmem:[%s1 + $0x204] sm:$0xf]
        %v895 = vld [vmem:[%s1 + $0x208] sm:$0xf]
        %v896 = vld [vmem:[%s1 + $0x20c] sm:$0xf]
        %v897 = vld [vmem:[%s1 + $0x210] sm:$0xf]
        %v898 = vld [vmem:[%s1 + $0x214] sm:$0xf]
        %v899 = vld [vmem:[%s1 + $0x218] sm:$0xf]
        %v900 = vld [vmem:[%s1 + $0x21c] sm:$0xf]
        %v901 = vld [vmem:[%s1 + $0x220] sm:$0xf]
        %v902 = vld [vmem:[%s1 + $0x224] sm:$0xf]
        %v903 = vld [vmem:[%s1 + $0x228] sm:$0xf]
        %v904 = vld [vmem:[%s1 + $0x22c] sm:$0xf]
        %v905 = vld [vmem:[%s1 + $0x230] sm:$0xf]
        %v906 = vld [vmem:[%s1 + $0x234] sm:$0xf]
        %v907 = vld [vmem:[%s1 + $0x238] sm:$0xf]
        %v908 = vld [vmem:[%s1 + $0x23c] sm:$0xf]
        %v909 = vld [vmem:[%s2] sm:$0x1]
        %v911 = vperm.slane %v909, 0
        %v1057 = vunpack.c.l.b16 %v765
        %v1058 = vunpack.c.l.b16 %v766
        %v1059 = vunpack.c.l.b16 %v767
        %v1060 = vunpack.c.l.b16 %v768
        %v1061 = vunpack.c.l.b16 %v769
        %v1062 = vunpack.c.l.b16 %v770
        %v1063 = vunpack.c.l.b16 %v771
        %v1064 = vunpack.c.l.b16 %v772
        %v1065 = vunpack.c.l.b16 %v773
        %v1066 = vunpack.c.l.b16 %v774
        %v1067 = vunpack.c.l.b16 %v775
        %v1068 = vunpack.c.l.b16 %v776
        %v1069 = vunpack.c.l.b16 %v777
        %v1070 = vunpack.c.l.b16 %v778
        %v1071 = vunpack.c.l.b16 %v779
        %v1072 = vunpack.c.l.b16 %v780
        %v1073 = vunpack.c.l.b16 %v781
        %v1074 = vunpack.c.l.b16 %v782
        %v1075 = vunpack.c.l.b16 %v783
        %v1076 = vunpack.c.l.b16 %v784
        %v1077 = vunpack.c.l.b16 %v785
        %v1078 = vunpack.c.l.b16 %v786
        %v1079 = vunpack.c.l.b16 %v787
        %v1080 = vunpack.c.l.b16 %v788
        %v1081 = vunpack.c.l.b16 %v789
        %v1082 = vunpack.c.l.b16 %v790
        %v1083 = vunpack.c.l.b16 %v791
        %v1084 = vunpack.c.l.b16 %v792
        %v1085 = vunpack.c.l.b16 %v793
        %v1086 = vunpack.c.l.b16 %v794
        %v1087 = vunpack.c.l.b16 %v795
        %v1088 = vunpack.c.l.b16 %v796
        %v1089 = vunpack.c.l.b16 %v797
        %v1090 = vunpack.c.l.b16 %v798
        %v1091 = vunpack.c.l.b16 %v799
        %v1092 = vunpack.c.l.b16 %v800
        %v1093 = vunpack.c.l.b16 %v801
        %v1094 = vunpack.c.l.b16 %v802
        %v1095 = vunpack.c.l.b16 %v803
        %v1096 = vunpack.c.l.b16 %v804
        %v1097 = vunpack.c.l.b16 %v805
        %v1098 = vunpack.c.l.b16 %v806
        %v1099 = vunpack.c.l.b16 %v807
        %v1100 = vunpack.c.l.b16 %v808
        %v1101 = vunpack.c.l.b16 %v809
        %v1102 = vunpack.c.l.b16 %v810
        %v1103 = vunpack.c.l.b16 %v811
        %v1104 = vunpack.c.l.b16 %v812
        %v1105 = vunpack.c.l.b16 %v813
        %v1106 = vunpack.c.l.b16 %v814
        %v1107 = vunpack.c.l.b16 %v815
        %v1108 = vunpack.c.l.b16 %v816
        %v1109 = vunpack.c.l.b16 %v817
        %v1110 = vunpack.c.l.b16 %v818
        %v1111 = vunpack.c.l.b16 %v819
        %v1112 = vunpack.c.l.b16 %v820
        %v1113 = vunpack.c.l.b16 %v821
        %v1114 = vunpack.c.l.b16 %v822
        %v1115 = vunpack.c.l.b16 %v823
        %v1116 = vunpack.c.l.b16 %v824
        %v1117 = vunpack.c.l.b16 %v825
        %v1118 = vunpack.c.l.b16 %v826
        %v1119 = vunpack.c.l.b16 %v827
        %v1120 = vunpack.c.l.b16 %v828
        %v1121 = vunpack.c.l.b16 %v829
        %v1122 = vunpack.c.l.b16 %v830
        %v1123 = vunpack.c.l.b16 %v831
        %v1124 = vunpack.c.l.b16 %v832
        %v1125 = vunpack.c.l.b16 %v833
        %v1126 = vunpack.c.l.b16 %v834
        %v1127 = vunpack.c.l.b16 %v835
        %v1128 = vunpack.c.l.b16 %v836
        %v1129 = vunpack.c.l.b16 %v837
        %v1130 = vunpack.c.l.b16 %v838
        %v1131 = vunpack.c.l.b16 %v839
        %v1132 = vunpack.c.l.b16 %v840
        %v1133 = vunpack.c.l.b16 %v841
        %v1134 = vunpack.c.l.b16 %v842
        %v1135 = vunpack.c.l.b16 %v843
        %v1136 = vunpack.c.l.b16 %v844
        %v1137 = vunpack.c.l.b16 %v845
        %v1138 = vunpack.c.l.b16 %v846
        %v1139 = vunpack.c.l.b16 %v847
        %v1140 = vunpack.c.l.b16 %v848
        %v1141 = vunpack.c.l.b16 %v849
        %v1142 = vunpack.c.l.b16 %v850
        %v1143 = vunpack.c.l.b16 %v851
        %v1144 = vunpack.c.l.b16 %v852
        %v1145 = vunpack.c.l.b16 %v853
        %v1146 = vunpack.c.l.b16 %v854
        %v1147 = vunpack.c.l.b16 %v855
        %v1148 = vunpack.c.l.b16 %v856
        %v1149 = vunpack.c.l.b16 %v857
        %v1150 = vunpack.c.l.b16 %v858
        %v1151 = vunpack.c.l.b16 %v859
        %v1152 = vunpack.c.l.b16 %v860
        %v1153 = vunpack.c.l.b16 %v861
        %v1154 = vunpack.c.l.b16 %v862
        %v1155 = vunpack.c.l.b16 %v863
        %v1156 = vunpack.c.l.b16 %v864
        %v1157 = vunpack.c.l.b16 %v865
        %v1158 = vunpack.c.l.b16 %v866
        %v1159 = vunpack.c.l.b16 %v867
        %v1160 = vunpack.c.l.b16 %v868
        %v1161 = vunpack.c.l.b16 %v869
        %v1162 = vunpack.c.l.b16 %v870
        %v1163 = vunpack.c.l.b16 %v871
        %v1164 = vunpack.c.l.b16 %v872
        %v1165 = vunpack.c.l.b16 %v873
        %v1166 = vunpack.c.l.b16 %v874
        %v1167 = vunpack.c.l.b16 %v875
        %v1168 = vunpack.c.l.b16 %v876
        %v1169 = vunpack.c.l.b16 %v877
        %v1170 = vunpack.c.l.b16 %v878
        %v1171 = vunpack.c.l.b16 %v879
        %v1172 = vunpack.c.l.b16 %v880
        %v1173 = vunpack.c.l.b16 %v881
        %v1174 = vunpack.c.l.b16 %v882
        %v1175 = vunpack.c.l.b16 %v883
        %v1176 = vunpack.c.l.b16 %v884
        %v1177 = vunpack.c.l.b16 %v885
        %v1178 = vunpack.c.l.b16 %v886
        %v1179 = vunpack.c.l.b16 %v887
        %v1180 = vunpack.c.l.b16 %v888
        %v1181 = vunpack.c.l.b16 %v889
        %v1182 = vunpack.c.l.b16 %v890
        %v1183 = vunpack.c.l.b16 %v891
        %v1184 = vunpack.c.l.b16 %v892
        %v1185 = vunpack.c.l.b16 %v893
        %v1186 = vunpack.c.l.b16 %v894
        %v1187 = vunpack.c.l.b16 %v895
        %v1188 = vunpack.c.l.b16 %v896
        %v1189 = vunpack.c.l.b16 %v897
        %v1190 = vunpack.c.l.b16 %v898
        %v1191 = vunpack.c.l.b16 %v899
        %v1192 = vunpack.c.l.b16 %v900
        %v1193 = vunpack.c.l.b16 %v901
        %v1194 = vunpack.c.l.b16 %v902
        %v1195 = vunpack.c.l.b16 %v903
        %v1196 = vunpack.c.l.b16 %v904
        %v1197 = vunpack.c.l.b16 %v905
        %v1198 = vunpack.c.l.b16 %v906
        %v1199 = vunpack.c.l.b16 %v907
        %v1200 = vunpack.c.l.b16 %v908
        %v1201 = vpack.c.b16 %v1058, %v1057
        %v1202 = vpack.c.b16 %v1060, %v1059
        %v1203 = vpack.c.b16 %v1062, %v1061
        %v1204 = vpack.c.b16 %v1064, %v1063
        %v1205 = vpack.c.b16 %v1066, %v1065
        %v1206 = vpack.c.b16 %v1068, %v1067
        %v1207 = vpack.c.b16 %v1070, %v1069
        %v1208 = vpack.c.b16 %v1072, %v1071
        %v1209 = vpack.c.b16 %v1074, %v1073
        %v1210 = vpack.c.b16 %v1076, %v1075
        %v1211 = vpack.c.b16 %v1078, %v1077
        %v1212 = vpack.c.b16 %v1080, %v1079
        %v1213 = vpack.c.b16 %v1082, %v1081
        %v1214 = vpack.c.b16 %v1084, %v1083
        %v1215 = vpack.c.b16 %v1086, %v1085
        %v1216 = vpack.c.b16 %v1088, %v1087
        %v1217 = vpack.c.b16 %v1090, %v1089
        %v1218 = vpack.c.b16 %v1092, %v1091
        %v1219 = vpack.c.b16 %v1094, %v1093
        %v1220 = vpack.c.b16 %v1096, %v1095
        %v1221 = vpack.c.b16 %v1098, %v1097
        %v1222 = vpack.c.b16 %v1100, %v1099
        %v1223 = vpack.c.b16 %v1102, %v1101
        %v1224 = vpack.c.b16 %v1104, %v1103
        %v1225 = vpack.c.b16 %v1106, %v1105
        %v1226 = vpack.c.b16 %v1108, %v1107
        %v1227 = vpack.c.b16 %v1110, %v1109
        %v1228 = vpack.c.b16 %v1112, %v1111
        %v1229 = vpack.c.b16 %v1114, %v1113
        %v1230 = vpack.c.b16 %v1116, %v1115
        %v1231 = vpack.c.b16 %v1118, %v1117
        %v1232 = vpack.c.b16 %v1120, %v1119
        %v1233 = vpack.c.b16 %v1122, %v1121
        %v1234 = vpack.c.b16 %v1124, %v1123
        %v1235 = vpack.c.b16 %v1126, %v1125
        %v1236 = vpack.c.b16 %v1128, %v1127
        %v1237 = vpack.c.b16 %v1130, %v1129
        %v1238 = vpack.c.b16 %v1132, %v1131
        %v1239 = vpack.c.b16 %v1134, %v1133
        %v1240 = vpack.c.b16 %v1136, %v1135
        %v1241 = vpack.c.b16 %v1138, %v1137
        %v1242 = vpack.c.b16 %v1140, %v1139
        %v1243 = vpack.c.b16 %v1142, %v1141
        %v1244 = vpack.c.b16 %v1144, %v1143
        %v1245 = vpack.c.b16 %v1146, %v1145
        %v1246 = vpack.c.b16 %v1148, %v1147
        %v1247 = vpack.c.b16 %v1150, %v1149
        %v1248 = vpack.c.b16 %v1152, %v1151
        %v1249 = vpack.c.b16 %v1154, %v1153
        %v1250 = vpack.c.b16 %v1156, %v1155
        %v1251 = vpack.c.b16 %v1158, %v1157
        %v1252 = vpack.c.b16 %v1160, %v1159
        %v1253 = vpack.c.b16 %v1162, %v1161
        %v1254 = vpack.c.b16 %v1164, %v1163
        %v1255 = vpack.c.b16 %v1166, %v1165
        %v1256 = vpack.c.b16 %v1168, %v1167
        %v1257 = vpack.c.b16 %v1170, %v1169
        %v1258 = vpack.c.b16 %v1172, %v1171
        %v1259 = vpack.c.b16 %v1174, %v1173
        %v1260 = vpack.c.b16 %v1176, %v1175
        %v1261 = vpack.c.b16 %v1178, %v1177
        %v1262 = vpack.c.b16 %v1180, %v1179
        %v1263 = vpack.c.b16 %v1182, %v1181
        %v1264 = vpack.c.b16 %v1184, %v1183
        %v1265 = vpack.c.b16 %v1186, %v1185
        %v1266 = vpack.c.b16 %v1188, %v1187
        %v1267 = vpack.c.b16 %v1190, %v1189
        %v1268 = vpack.c.b16 %v1192, %v1191
        %v1269 = vpack.c.b16 %v1194, %v1193
        %v1270 = vpack.c.b16 %v1196, %v1195
        %v1271 = vpack.c.b16 %v1198, %v1197
        %v1272 = vpack.c.b16 %v1200, %v1199
        %1345 = vmatpush.bf16.msra.mxu0 %v1208
        %1346 = vmatpush.bf16.msra.mxu0 %v1207
        %1347 = vmatpush.bf16.msra.mxu0 %v1206
        %1348 = vmatpush.bf16.msra.mxu0 %v1205
        %1349 = vmatpush.bf16.msra.mxu0 %v1204
        %1350 = vmatpush.bf16.msra.mxu0 %v1203
        %1351 = vmatpush.bf16.msra.mxu0 %v1202
        %1352 = vmatpush.bf16.msra.mxu0 %v1201
        %1353 = vmatmul.bf16.gmra.mxu0 %v359
        %v1354 = vpop.f32.mrf.mxu0
        %v1355 = vadd.f32 %v911, %v1354
        %v1356 = vpop.f32.mrf.mxu0
        %v1357 = vadd.f32 %v911, %v1356
        %1358 = vmatmul.bf16.gmra.mxu0 %v360
        %v1359 = vpop.f32.mrf.mxu0
        %v1360 = vadd.f32 %v911, %v1359
        %v1361 = vpop.f32.mrf.mxu0
        %v1362 = vadd.f32 %v911, %v1361
        %1363 = vmatmul.bf16.gmra.mxu0 %v361
        %v1364 = vpop.f32.mrf.mxu0
        %v1365 = vadd.f32 %v911, %v1364
        %v1366 = vpop.f32.mrf.mxu0
        %v1367 = vadd.f32 %v911, %v1366
        %1368 = vmatmul.bf16.gmra.mxu0 %v362
        %v1369 = vpop.f32.mrf.mxu0
        %v1370 = vadd.f32 %v911, %v1369
        %v1371 = vpop.f32.mrf.mxu0
        %v1372 = vadd.f32 %v911, %v1371
        %1373 = vmatmul.bf16.gmra.mxu0 %v363
        %v1374 = vpop.f32.mrf.mxu0
        %v1375 = vadd.f32 %v911, %v1374
        %v1376 = vpop.f32.mrf.mxu0
        %v1377 = vadd.f32 %v911, %v1376
        %1378 = vmatmul.bf16.gmra.mxu0 %v364
        %v1379 = vpop.f32.mrf.mxu0
        %v1380 = vadd.f32 %v911, %v1379
        %v1381 = vpop.f32.mrf.mxu0
        %v1382 = vadd.f32 %v911, %v1381
        %1383 = vmatmul.bf16.gmra.mxu0 %v365
        %v1384 = vpop.f32.mrf.mxu0
        %v1385 = vadd.f32 %v911, %v1384
        %v1386 = vpop.f32.mrf.mxu0
        %v1387 = vadd.f32 %v911, %v1386
        %1388 = vmatmul.bf16.gmra.mxu0 %v366
        %v1389 = vpop.f32.mrf.mxu0
        %v1390 = vadd.f32 %v911, %v1389
        %v1391 = vpop.f32.mrf.mxu0
        %v1392 = vadd.f32 %v911, %v1391
        %1393 = vmatmul.bf16.gmra.mxu0 %v367
        %v1394 = vpop.f32.mrf.mxu0
        %v1395 = vadd.f32 %v911, %v1394
        %v1396 = vpop.f32.mrf.mxu0
        %v1397 = vadd.f32 %v911, %v1396
        %1398 = vmatmul.bf16.gmra.mxu0 %v368
        %v1399 = vpop.f32.mrf.mxu0
        %v1400 = vadd.f32 %v911, %v1399
        %v1401 = vpop.f32.mrf.mxu0
        %v1402 = vadd.f32 %v911, %v1401
        %1403 = vmatmul.bf16.gmra.mxu0 %v369
        %v1404 = vpop.f32.mrf.mxu0
        %v1405 = vadd.f32 %v911, %v1404
        %v1406 = vpop.f32.mrf.mxu0
        %v1407 = vadd.f32 %v911, %v1406
        %1408 = vmatmul.bf16.gmra.mxu0 %v370
        %v1409 = vpop.f32.mrf.mxu0
        %v1410 = vadd.f32 %v911, %v1409
        %v1411 = vpop.f32.mrf.mxu0
        %v1412 = vadd.f32 %v911, %v1411
        %1413 = vmatmul.bf16.gmra.mxu0 %v371
        %v1414 = vpop.f32.mrf.mxu0
        %v1415 = vadd.f32 %v911, %v1414
        %v1416 = vpop.f32.mrf.mxu0
        %v1417 = vadd.f32 %v911, %v1416
        %1418 = vmatmul.bf16.gmra.mxu0 %v372
        %v1419 = vpop.f32.mrf.mxu0
        %v1420 = vadd.f32 %v911, %v1419
        %v1421 = vpop.f32.mrf.mxu0
        %v1422 = vadd.f32 %v911, %v1421
        %1423 = vmatmul.bf16.gmra.mxu0 %v373
        %v1424 = vpop.f32.mrf.mxu0
        %v1425 = vadd.f32 %v911, %v1424
        %v1426 = vpop.f32.mrf.mxu0
        %v1427 = vadd.f32 %v911, %v1426
        %1428 = vmatmul.bf16.gmra.mxu0 %v374
        %v1429 = vpop.f32.mrf.mxu0
        %v1430 = vadd.f32 %v911, %v1429
        %v1431 = vpop.f32.mrf.mxu0
        %v1432 = vadd.f32 %v911, %v1431
        %1433 = vdwg.mxu0
        %1434 = vmatpush.bf16.msra.mxu0 %v1216
        %1435 = vmatpush.bf16.msra.mxu0 %v1215
        %1436 = vmatpush.bf16.msra.mxu0 %v1214
        %1437 = vmatpush.bf16.msra.mxu0 %v1213
        %1438 = vmatpush.bf16.msra.mxu0 %v1212
        %1439 = vmatpush.bf16.msra.mxu0 %v1211
        %1440 = vmatpush.bf16.msra.mxu0 %v1210
        %1441 = vmatpush.bf16.msra.mxu0 %v1209
        %1442 = vmatmul.bf16.gmra.mxu0 %v451
        %v1443 = vpop.f32.mrf.mxu0
        %v1444 = vadd.f32 %v1355, %v1443
        %v1445 = vpop.f32.mrf.mxu0
        %v1446 = vadd.f32 %v1357, %v1445
        %1447 = vmatmul.bf16.gmra.mxu0 %v463
        %v1448 = vpop.f32.mrf.mxu0
        %v1449 = vadd.f32 %v1360, %v1448
        %v1450 = vpop.f32.mrf.mxu0
        %v1451 = vadd.f32 %v1362, %v1450
        %1452 = vmatmul.bf16.gmra.mxu0 %v475
        %v1453 = vpop.f32.mrf.mxu0
        %v1454 = vadd.f32 %v1365, %v1453
        %v1455 = vpop.f32.mrf.mxu0
        %v1456 = vadd.f32 %v1367, %v1455
        %1457 = vmatmul.bf16.gmra.mxu0 %v487
        %v1458 = vpop.f32.mrf.mxu0
        %v1459 = vadd.f32 %v1370, %v1458
        %v1460 = vpop.f32.mrf.mxu0
        %v1461 = vadd.f32 %v1372, %v1460
        %1462 = vmatmul.bf16.gmra.mxu0 %v499
        %v1463 = vpop.f32.mrf.mxu0
        %v1464 = vadd.f32 %v1375, %v1463
        %v1465 = vpop.f32.mrf.mxu0
        %v1466 = vadd.f32 %v1377, %v1465
        %1467 = vmatmul.bf16.gmra.mxu0 %v511
        %v1468 = vpop.f32.mrf.mxu0
        %v1469 = vadd.f32 %v1380, %v1468
        %v1470 = vpop.f32.mrf.mxu0
        %v1471 = vadd.f32 %v1382, %v1470
        %1472 = vmatmul.bf16.gmra.mxu0 %v523
        %v1473 = vpop.f32.mrf.mxu0
        %v1474 = vadd.f32 %v1385, %v1473
        %v1475 = vpop.f32.mrf.mxu0
        %v1476 = vadd.f32 %v1387, %v1475
        %1477 = vmatmul.bf16.gmra.mxu0 %v535
        %v1478 = vpop.f32.mrf.mxu0
        %v1479 = vadd.f32 %v1390, %v1478
        %v1480 = vpop.f32.mrf.mxu0
        %v1481 = vadd.f32 %v1392, %v1480
        %1482 = vmatmul.bf16.gmra.mxu0 %v547
        %v1483 = vpop.f32.mrf.mxu0
        %v1484 = vadd.f32 %v1395, %v1483
        %v1485 = vpop.f32.mrf.mxu0
        %v1486 = vadd.f32 %v1397, %v1485
        %1487 = vmatmul.bf16.gmra.mxu0 %v559
        %v1488 = vpop.f32.mrf.mxu0
        %v1489 = vadd.f32 %v1400, %v1488
        %v1490 = vpop.f32.mrf.mxu0
        %v1491 = vadd.f32 %v1402, %v1490
        %1492 = vmatmul.bf16.gmra.mxu0 %v571
        %v1493 = vpop.f32.mrf.mxu0
        %v1494 = vadd.f32 %v1405, %v1493
        %v1495 = vpop.f32.mrf.mxu0
        %v1496 = vadd.f32 %v1407, %v1495
        %1497 = vmatmul.bf16.gmra.mxu0 %v583
        %v1498 = vpop.f32.mrf.mxu0
        %v1499 = vadd.f32 %v1410, %v1498
        %v1500 = vpop.f32.mrf.mxu0
        %v1501 = vadd.f32 %v1412, %v1500
        %1502 = vmatmul.bf16.gmra.mxu0 %v595
        %v1503 = vpop.f32.mrf.mxu0
        %v1504 = vadd.f32 %v1415, %v1503
        %v1505 = vpop.f32.mrf.mxu0
        %v1506 = vadd.f32 %v1417, %v1505
        %1507 = vmatmul.bf16.gmra.mxu0 %v607
        %v1508 = vpop.f32.mrf.mxu0
        %v1509 = vadd.f32 %v1420, %v1508
        %v1510 = vpop.f32.mrf.mxu0
        %v1511 = vadd.f32 %v1422, %v1510
        %1512 = vmatmul.bf16.gmra.mxu0 %v619
        %v1513 = vpop.f32.mrf.mxu0
        %v1514 = vadd.f32 %v1425, %v1513
        %v1515 = vpop.f32.mrf.mxu0
        %v1516 = vadd.f32 %v1427, %v1515
        %1517 = vmatmul.bf16.gmra.mxu0 %v631
        %v1518 = vpop.f32.mrf.mxu0
        %v1519 = vadd.f32 %v1430, %v1518
        %v1520 = vpop.f32.mrf.mxu0
        %v1521 = vadd.f32 %v1432, %v1520
        %1522 = vdwg.mxu0
        %1523 = vmatpush.bf16.msra.mxu0 %v1224
        %1524 = vmatpush.bf16.msra.mxu0 %v1223
        %1525 = vmatpush.bf16.msra.mxu0 %v1222
        %1526 = vmatpush.bf16.msra.mxu0 %v1221
        %1527 = vmatpush.bf16.msra.mxu0 %v1220
        %1528 = vmatpush.bf16.msra.mxu0 %v1219
        %1529 = vmatpush.bf16.msra.mxu0 %v1218
        %1530 = vmatpush.bf16.msra.mxu0 %v1217
        %1531 = vmatmul.bf16.gmra.mxu0 %v651
        %v1532 = vpop.f32.mrf.mxu0
        %v1533 = vadd.f32 %v1444, %v1532
        %v1534 = vpop.f32.mrf.mxu0
        %v1535 = vadd.f32 %v1446, %v1534
        %1536 = vmatmul.bf16.gmra.mxu0 %v654
        %v1537 = vpop.f32.mrf.mxu0
        %v1538 = vadd.f32 %v1449, %v1537
        %v1539 = vpop.f32.mrf.mxu0
        %v1540 = vadd.f32 %v1451, %v1539
        %1541 = vmatmul.bf16.gmra.mxu0 %v657
        %v1542 = vpop.f32.mrf.mxu0
        %v1543 = vadd.f32 %v1454, %v1542
        %v1544 = vpop.f32.mrf.mxu0
        %v1545 = vadd.f32 %v1456, %v1544
        %1546 = vmatmul.bf16.gmra.mxu0 %v660
        %v1547 = vpop.f32.mrf.mxu0
        %v1548 = vadd.f32 %v1459, %v1547
        %v1549 = vpop.f32.mrf.mxu0
        %v1550 = vadd.f32 %v1461, %v1549
        %1551 = vmatmul.bf16.gmra.mxu0 %v663
        %v1552 = vpop.f32.mrf.mxu0
        %v1553 = vadd.f32 %v1464, %v1552
        %v1554 = vpop.f32.mrf.mxu0
        %v1555 = vadd.f32 %v1466, %v1554
        %1556 = vmatmul.bf16.gmra.mxu0 %v666
        %v1557 = vpop.f32.mrf.mxu0
        %v1558 = vadd.f32 %v1469, %v1557
        %v1559 = vpop.f32.mrf.mxu0
        %v1560 = vadd.f32 %v1471, %v1559
        %1561 = vmatmul.bf16.gmra.mxu0 %v669
        %v1562 = vpop.f32.mrf.mxu0
        %v1563 = vadd.f32 %v1474, %v1562
        %v1564 = vpop.f32.mrf.mxu0
        %v1565 = vadd.f32 %v1476, %v1564
        %1566 = vmatmul.bf16.gmra.mxu0 %v672
        %v1567 = vpop.f32.mrf.mxu0
        %v1568 = vadd.f32 %v1479, %v1567
        %v1569 = vpop.f32.mrf.mxu0
        %v1570 = vadd.f32 %v1481, %v1569
        %1571 = vmatmul.bf16.gmra.mxu0 %v675
        %v1572 = vpop.f32.mrf.mxu0
        %v1573 = vadd.f32 %v1484, %v1572
        %v1574 = vpop.f32.mrf.mxu0
        %v1575 = vadd.f32 %v1486, %v1574
        %1576 = vmatmul.bf16.gmra.mxu0 %v678
        %v1577 = vpop.f32.mrf.mxu0
        %v1578 = vadd.f32 %v1489, %v1577
        %v1579 = vpop.f32.mrf.mxu0
        %v1580 = vadd.f32 %v1491, %v1579
        %1581 = vmatmul.bf16.gmra.mxu0 %v681
        %v1582 = vpop.f32.mrf.mxu0
        %v1583 = vadd.f32 %v1494, %v1582
        %v1584 = vpop.f32.mrf.mxu0
        %v1585 = vadd.f32 %v1496, %v1584
        %1586 = vmatmul.bf16.gmra.mxu0 %v684
        %v1587 = vpop.f32.mrf.mxu0
        %v1588 = vadd.f32 %v1499, %v1587
        %v1589 = vpop.f32.mrf.mxu0
        %v1590 = vadd.f32 %v1501, %v1589
        %1591 = vmatmul.bf16.gmra.mxu0 %v687
        %v1592 = vpop.f32.mrf.mxu0
        %v1593 = vadd.f32 %v1504, %v1592
        %v1594 = vpop.f32.mrf.mxu0
        %v1595 = vadd.f32 %v1506, %v1594
        %1596 = vmatmul.bf16.gmra.mxu0 %v690
        %v1597 = vpop.f32.mrf.mxu0
        %v1598 = vadd.f32 %v1509, %v1597
        %v1599 = vpop.f32.mrf.mxu0
        %v1600 = vadd.f32 %v1511, %v1599
        %1601 = vmatmul.bf16.gmra.mxu0 %v693
        %v1602 = vpop.f32.mrf.mxu0
        %v1603 = vadd.f32 %v1514, %v1602
        %v1604 = vpop.f32.mrf.mxu0
        %v1605 = vadd.f32 %v1516, %v1604
        %1606 = vmatmul.bf16.gmra.mxu0 %v696
        %v1607 = vpop.f32.mrf.mxu0
        %v1608 = vadd.f32 %v1519, %v1607
        %v1609 = vpop.f32.mrf.mxu0
        %v1610 = vadd.f32 %v1521, %v1609
        %1611 = vdwg.mxu0
        %1612 = vmatpush.bf16.msra.mxu0 %v1232
        %1613 = vmatpush.bf16.msra.mxu0 %v1231
        %1614 = vmatpush.bf16.msra.mxu0 %v1230
        %1615 = vmatpush.bf16.msra.mxu0 %v1229
        %1616 = vmatpush.bf16.msra.mxu0 %v1228
        %1617 = vmatpush.bf16.msra.mxu0 %v1227
        %1618 = vmatpush.bf16.msra.mxu0 %v1226
        %1619 = vmatpush.bf16.msra.mxu0 %v1225
        %1620 = vmatmul.bf16.gmra.mxu0 %v360
        %v1621 = vpop.f32.mrf.mxu0
        %v1622 = vadd.f32 %v1533, %v1621
        %v1623 = vpop.f32.mrf.mxu0
        %v1624 = vadd.f32 %v1535, %v1623
        %1625 = vmatmul.bf16.gmra.mxu0 %v361
        %v1626 = vpop.f32.mrf.mxu0
        %v1627 = vadd.f32 %v1538, %v1626
        %v1628 = vpop.f32.mrf.mxu0
        %v1629 = vadd.f32 %v1540, %v1628
        %1630 = vmatmul.bf16.gmra.mxu0 %v362
        %v1631 = vpop.f32.mrf.mxu0
        %v1632 = vadd.f32 %v1543, %v1631
        %v1633 = vpop.f32.mrf.mxu0
        %v1634 = vadd.f32 %v1545, %v1633
        %1635 = vmatmul.bf16.gmra.mxu0 %v363
        %v1636 = vpop.f32.mrf.mxu0
        %v1637 = vadd.f32 %v1548, %v1636
        %v1638 = vpop.f32.mrf.mxu0
        %v1639 = vadd.f32 %v1550, %v1638
        %1640 = vmatmul.bf16.gmra.mxu0 %v364
        %v1641 = vpop.f32.mrf.mxu0
        %v1642 = vadd.f32 %v1553, %v1641
        %v1643 = vpop.f32.mrf.mxu0
        %v1644 = vadd.f32 %v1555, %v1643
        %1645 = vmatmul.bf16.gmra.mxu0 %v365
        %v1646 = vpop.f32.mrf.mxu0
        %v1647 = vadd.f32 %v1558, %v1646
        %v1648 = vpop.f32.mrf.mxu0
        %v1649 = vadd.f32 %v1560, %v1648
        %1650 = vmatmul.bf16.gmra.mxu0 %v366
        %v1651 = vpop.f32.mrf.mxu0
        %v1652 = vadd.f32 %v1563, %v1651
        %v1653 = vpop.f32.mrf.mxu0
        %v1654 = vadd.f32 %v1565, %v1653
        %1655 = vmatmul.bf16.gmra.mxu0 %v367
        %v1656 = vpop.f32.mrf.mxu0
        %v1657 = vadd.f32 %v1568, %v1656
        %v1658 = vpop.f32.mrf.mxu0
        %v1659 = vadd.f32 %v1570, %v1658
        %1660 = vmatmul.bf16.gmra.mxu0 %v368
        %v1661 = vpop.f32.mrf.mxu0
        %v1662 = vadd.f32 %v1573, %v1661
        %v1663 = vpop.f32.mrf.mxu0
        %v1664 = vadd.f32 %v1575, %v1663
        %1665 = vmatmul.bf16.gmra.mxu0 %v369
        %v1666 = vpop.f32.mrf.mxu0
        %v1667 = vadd.f32 %v1578, %v1666
        %v1668 = vpop.f32.mrf.mxu0
        %v1669 = vadd.f32 %v1580, %v1668
        %1670 = vmatmul.bf16.gmra.mxu0 %v370
        %v1671 = vpop.f32.mrf.mxu0
        %v1672 = vadd.f32 %v1583, %v1671
        %v1673 = vpop.f32.mrf.mxu0
        %v1674 = vadd.f32 %v1585, %v1673
        %1675 = vmatmul.bf16.gmra.mxu0 %v371
        %v1676 = vpop.f32.mrf.mxu0
        %v1677 = vadd.f32 %v1588, %v1676
        %v1678 = vpop.f32.mrf.mxu0
        %v1679 = vadd.f32 %v1590, %v1678
        %1680 = vmatmul.bf16.gmra.mxu0 %v372
        %v1681 = vpop.f32.mrf.mxu0
        %v1682 = vadd.f32 %v1593, %v1681
        %v1683 = vpop.f32.mrf.mxu0
        %v1684 = vadd.f32 %v1595, %v1683
        %1685 = vmatmul.bf16.gmra.mxu0 %v373
        %v1686 = vpop.f32.mrf.mxu0
        %v1687 = vadd.f32 %v1598, %v1686
        %v1688 = vpop.f32.mrf.mxu0
        %v1689 = vadd.f32 %v1600, %v1688
        %1690 = vmatmul.bf16.gmra.mxu0 %v374
        %v1691 = vpop.f32.mrf.mxu0
        %v1692 = vadd.f32 %v1603, %v1691
        %v1693 = vpop.f32.mrf.mxu0
        %v1694 = vadd.f32 %v1605, %v1693
        %1695 = vmatmul.bf16.gmra.mxu0 %v717
        %v1696 = vpop.f32.mrf.mxu0
        %v1697 = vadd.f32 %v1608, %v1696
        %v1698 = vpop.f32.mrf.mxu0
        %v1699 = vadd.f32 %v1610, %v1698
        %1700 = vdwg.mxu0
        %1701 = vmatpush.bf16.msra.mxu0 %v1240
        %1702 = vmatpush.bf16.msra.mxu0 %v1239
        %1703 = vmatpush.bf16.msra.mxu0 %v1238
        %1704 = vmatpush.bf16.msra.mxu0 %v1237
        %1705 = vmatpush.bf16.msra.mxu0 %v1236
        %1706 = vmatpush.bf16.msra.mxu0 %v1235
        %1707 = vmatpush.bf16.msra.mxu0 %v1234
        %1708 = vmatpush.bf16.msra.mxu0 %v1233
        %1709 = vmatmul.bf16.gmra.mxu0 %v463
        %v1710 = vpop.f32.mrf.mxu0
        %v1711 = vadd.f32 %v1622, %v1710
        %v1712 = vpop.f32.mrf.mxu0
        %v1713 = vadd.f32 %v1624, %v1712
        %1714 = vmatmul.bf16.gmra.mxu0 %v475
        %v1715 = vpop.f32.mrf.mxu0
        %v1716 = vadd.f32 %v1627, %v1715
        %v1717 = vpop.f32.mrf.mxu0
        %v1718 = vadd.f32 %v1629, %v1717
        %1719 = vmatmul.bf16.gmra.mxu0 %v487
        %v1720 = vpop.f32.mrf.mxu0
        %v1721 = vadd.f32 %v1632, %v1720
        %v1722 = vpop.f32.mrf.mxu0
        %v1723 = vadd.f32 %v1634, %v1722
        %1724 = vmatmul.bf16.gmra.mxu0 %v499
        %v1725 = vpop.f32.mrf.mxu0
        %v1726 = vadd.f32 %v1637, %v1725
        %v1727 = vpop.f32.mrf.mxu0
        %v1728 = vadd.f32 %v1639, %v1727
        %1729 = vmatmul.bf16.gmra.mxu0 %v511
        %v1730 = vpop.f32.mrf.mxu0
        %v1731 = vadd.f32 %v1642, %v1730
        %v1732 = vpop.f32.mrf.mxu0
        %v1733 = vadd.f32 %v1644, %v1732
        %1734 = vmatmul.bf16.gmra.mxu0 %v523
        %v1735 = vpop.f32.mrf.mxu0
        %v1736 = vadd.f32 %v1647, %v1735
        %v1737 = vpop.f32.mrf.mxu0
        %v1738 = vadd.f32 %v1649, %v1737
        %1739 = vmatmul.bf16.gmra.mxu0 %v535
        %v1740 = vpop.f32.mrf.mxu0
        %v1741 = vadd.f32 %v1652, %v1740
        %v1742 = vpop.f32.mrf.mxu0
        %v1743 = vadd.f32 %v1654, %v1742
        %1744 = vmatmul.bf16.gmra.mxu0 %v547
        %v1745 = vpop.f32.mrf.mxu0
        %v1746 = vadd.f32 %v1657, %v1745
        %v1747 = vpop.f32.mrf.mxu0
        %v1748 = vadd.f32 %v1659, %v1747
        %1749 = vmatmul.bf16.gmra.mxu0 %v559
        %v1750 = vpop.f32.mrf.mxu0
        %v1751 = vadd.f32 %v1662, %v1750
        %v1752 = vpop.f32.mrf.mxu0
        %v1753 = vadd.f32 %v1664, %v1752
        %1754 = vmatmul.bf16.gmra.mxu0 %v571
        %v1755 = vpop.f32.mrf.mxu0
        %v1756 = vadd.f32 %v1667, %v1755
        %v1757 = vpop.f32.mrf.mxu0
        %v1758 = vadd.f32 %v1669, %v1757
        %1759 = vmatmul.bf16.gmra.mxu0 %v583
        %v1760 = vpop.f32.mrf.mxu0
        %v1761 = vadd.f32 %v1672, %v1760
        %v1762 = vpop.f32.mrf.mxu0
        %v1763 = vadd.f32 %v1674, %v1762
        %1764 = vmatmul.bf16.gmra.mxu0 %v595
        %v1765 = vpop.f32.mrf.mxu0
        %v1766 = vadd.f32 %v1677, %v1765
        %v1767 = vpop.f32.mrf.mxu0
        %v1768 = vadd.f32 %v1679, %v1767
        %1769 = vmatmul.bf16.gmra.mxu0 %v607
        %v1770 = vpop.f32.mrf.mxu0
        %v1771 = vadd.f32 %v1682, %v1770
        %v1772 = vpop.f32.mrf.mxu0
        %v1773 = vadd.f32 %v1684, %v1772
        %1774 = vmatmul.bf16.gmra.mxu0 %v619
        %v1775 = vpop.f32.mrf.mxu0
        %v1776 = vadd.f32 %v1687, %v1775
        %v1777 = vpop.f32.mrf.mxu0
        %v1778 = vadd.f32 %v1689, %v1777
        %1779 = vmatmul.bf16.gmra.mxu0 %v631
        %v1780 = vpop.f32.mrf.mxu0
        %v1781 = vadd.f32 %v1692, %v1780
        %v1782 = vpop.f32.mrf.mxu0
        %v1783 = vadd.f32 %v1694, %v1782
        %1784 = vmatmul.bf16.gmra.mxu0 %v733
        %v1785 = vpop.f32.mrf.mxu0
        %v1786 = vadd.f32 %v1697, %v1785
        %v1787 = vpop.f32.mrf.mxu0
        %v1788 = vadd.f32 %v1699, %v1787
        %1789 = vdwg.mxu0
        %1790 = vmatpush.bf16.msra.mxu0 %v1248
        %1791 = vmatpush.bf16.msra.mxu0 %v1247
        %1792 = vmatpush.bf16.msra.mxu0 %v1246
        %1793 = vmatpush.bf16.msra.mxu0 %v1245
        %1794 = vmatpush.bf16.msra.mxu0 %v1244
        %1795 = vmatpush.bf16.msra.mxu0 %v1243
        %1796 = vmatpush.bf16.msra.mxu0 %v1242
        %1797 = vmatpush.bf16.msra.mxu0 %v1241
        %1798 = vmatmul.bf16.gmra.mxu0 %v654
        %v1799 = vpop.f32.mrf.mxu0
        %v1800 = vadd.f32 %v1711, %v1799
        %v1801 = vpop.f32.mrf.mxu0
        %v1802 = vadd.f32 %v1713, %v1801
        %1803 = vmatmul.bf16.gmra.mxu0 %v657
        %v1804 = vpop.f32.mrf.mxu0
        %v1805 = vadd.f32 %v1716, %v1804
        %v1806 = vpop.f32.mrf.mxu0
        %v1807 = vadd.f32 %v1718, %v1806
        %1808 = vmatmul.bf16.gmra.mxu0 %v660
        %v1809 = vpop.f32.mrf.mxu0
        %v1810 = vadd.f32 %v1721, %v1809
        %v1811 = vpop.f32.mrf.mxu0
        %v1812 = vadd.f32 %v1723, %v1811
        %1813 = vmatmul.bf16.gmra.mxu0 %v663
        %v1814 = vpop.f32.mrf.mxu0
        %v1815 = vadd.f32 %v1726, %v1814
        %v1816 = vpop.f32.mrf.mxu0
        %v1817 = vadd.f32 %v1728, %v1816
        %1818 = vmatmul.bf16.gmra.mxu0 %v666
        %v1819 = vpop.f32.mrf.mxu0
        %v1820 = vadd.f32 %v1731, %v1819
        %v1821 = vpop.f32.mrf.mxu0
        %v1822 = vadd.f32 %v1733, %v1821
        %1823 = vmatmul.bf16.gmra.mxu0 %v669
        %v1824 = vpop.f32.mrf.mxu0
        %v1825 = vadd.f32 %v1736, %v1824
        %v1826 = vpop.f32.mrf.mxu0
        %v1827 = vadd.f32 %v1738, %v1826
        %1828 = vmatmul.bf16.gmra.mxu0 %v672
        %v1829 = vpop.f32.mrf.mxu0
        %v1830 = vadd.f32 %v1741, %v1829
        %v1831 = vpop.f32.mrf.mxu0
        %v1832 = vadd.f32 %v1743, %v1831
        %1833 = vmatmul.bf16.gmra.mxu0 %v675
        %v1834 = vpop.f32.mrf.mxu0
        %v1835 = vadd.f32 %v1746, %v1834
        %v1836 = vpop.f32.mrf.mxu0
        %v1837 = vadd.f32 %v1748, %v1836
        %1838 = vmatmul.bf16.gmra.mxu0 %v678
        %v1839 = vpop.f32.mrf.mxu0
        %v1840 = vadd.f32 %v1751, %v1839
        %v1841 = vpop.f32.mrf.mxu0
        %v1842 = vadd.f32 %v1753, %v1841
        %1843 = vmatmul.bf16.gmra.mxu0 %v681
        %v1844 = vpop.f32.mrf.mxu0
        %v1845 = vadd.f32 %v1756, %v1844
        %v1846 = vpop.f32.mrf.mxu0
        %v1847 = vadd.f32 %v1758, %v1846
        %1848 = vmatmul.bf16.gmra.mxu0 %v684
        %v1849 = vpop.f32.mrf.mxu0
        %v1850 = vadd.f32 %v1761, %v1849
        %v1851 = vpop.f32.mrf.mxu0
        %v1852 = vadd.f32 %v1763, %v1851
        %1853 = vmatmul.bf16.gmra.mxu0 %v687
        %v1854 = vpop.f32.mrf.mxu0
        %v1855 = vadd.f32 %v1766, %v1854
        %v1856 = vpop.f32.mrf.mxu0
        %v1857 = vadd.f32 %v1768, %v1856
        %1858 = vmatmul.bf16.gmra.mxu0 %v690
        %v1859 = vpop.f32.mrf.mxu0
        %v1860 = vadd.f32 %v1771, %v1859
        %v1861 = vpop.f32.mrf.mxu0
        %v1862 = vadd.f32 %v1773, %v1861
        %1863 = vmatmul.bf16.gmra.mxu0 %v693
        %v1864 = vpop.f32.mrf.mxu0
        %v1865 = vadd.f32 %v1776, %v1864
        %v1866 = vpop.f32.mrf.mxu0
        %v1867 = vadd.f32 %v1778, %v1866
        %1868 = vmatmul.bf16.gmra.mxu0 %v696
        %v1869 = vpop.f32.mrf.mxu0
        %v1870 = vadd.f32 %v1781, %v1869
        %v1871 = vpop.f32.mrf.mxu0
        %v1872 = vadd.f32 %v1783, %v1871
        %1873 = vmatmul.bf16.gmra.mxu0 %v737
        %v1874 = vpop.f32.mrf.mxu0
        %v1875 = vadd.f32 %v1786, %v1874
        %v1876 = vpop.f32.mrf.mxu0
        %v1877 = vadd.f32 %v1788, %v1876
        %1878 = vdwg.mxu0
        %1879 = vmatpush.bf16.msra.mxu0 %v1256
        %1880 = vmatpush.bf16.msra.mxu0 %v1255
        %1881 = vmatpush.bf16.msra.mxu0 %v1254
        %1882 = vmatpush.bf16.msra.mxu0 %v1253
        %1883 = vmatpush.bf16.msra.mxu0 %v1252
        %1884 = vmatpush.bf16.msra.mxu0 %v1251
        %1885 = vmatpush.bf16.msra.mxu0 %v1250
        %1886 = vmatpush.bf16.msra.mxu0 %v1249
        %1887 = vmatmul.bf16.gmra.mxu0 %v361
        %v1888 = vpop.f32.mrf.mxu0
        %v1889 = vadd.f32 %v1800, %v1888
        %v1890 = vpop.f32.mrf.mxu0
        %v1891 = vadd.f32 %v1802, %v1890
        %1892 = vmatmul.bf16.gmra.mxu0 %v362
        %v1893 = vpop.f32.mrf.mxu0
        %v1894 = vadd.f32 %v1805, %v1893
        %v1895 = vpop.f32.mrf.mxu0
        %v1896 = vadd.f32 %v1807, %v1895
        %1897 = vmatmul.bf16.gmra.mxu0 %v363
        %v1898 = vpop.f32.mrf.mxu0
        %v1899 = vadd.f32 %v1810, %v1898
        %v1900 = vpop.f32.mrf.mxu0
        %v1901 = vadd.f32 %v1812, %v1900
        %1902 = vmatmul.bf16.gmra.mxu0 %v364
        %v1903 = vpop.f32.mrf.mxu0
        %v1904 = vadd.f32 %v1815, %v1903
        %v1905 = vpop.f32.mrf.mxu0
        %v1906 = vadd.f32 %v1817, %v1905
        %1907 = vmatmul.bf16.gmra.mxu0 %v365
        %v1908 = vpop.f32.mrf.mxu0
        %v1909 = vadd.f32 %v1820, %v1908
        %v1910 = vpop.f32.mrf.mxu0
        %v1911 = vadd.f32 %v1822, %v1910
        %1912 = vmatmul.bf16.gmra.mxu0 %v366
        %v1913 = vpop.f32.mrf.mxu0
        %v1914 = vadd.f32 %v1825, %v1913
        %v1915 = vpop.f32.mrf.mxu0
        %v1916 = vadd.f32 %v1827, %v1915
        %1917 = vmatmul.bf16.gmra.mxu0 %v367
        %v1918 = vpop.f32.mrf.mxu0
        %v1919 = vadd.f32 %v1830, %v1918
        %v1920 = vpop.f32.mrf.mxu0
        %v1921 = vadd.f32 %v1832, %v1920
        %1922 = vmatmul.bf16.gmra.mxu0 %v368
        %v1923 = vpop.f32.mrf.mxu0
        %v1924 = vadd.f32 %v1835, %v1923
        %v1925 = vpop.f32.mrf.mxu0
        %v1926 = vadd.f32 %v1837, %v1925
        %1927 = vmatmul.bf16.gmra.mxu0 %v369
        %v1928 = vpop.f32.mrf.mxu0
        %v1929 = vadd.f32 %v1840, %v1928
        %v1930 = vpop.f32.mrf.mxu0
        %v1931 = vadd.f32 %v1842, %v1930
        %1932 = vmatmul.bf16.gmra.mxu0 %v370
        %v1933 = vpop.f32.mrf.mxu0
        %v1934 = vadd.f32 %v1845, %v1933
        %v1935 = vpop.f32.mrf.mxu0
        %v1936 = vadd.f32 %v1847, %v1935
        %1937 = vmatmul.bf16.gmra.mxu0 %v371
        %v1938 = vpop.f32.mrf.mxu0
        %v1939 = vadd.f32 %v1850, %v1938
        %v1940 = vpop.f32.mrf.mxu0
        %v1941 = vadd.f32 %v1852, %v1940
        %1942 = vmatmul.bf16.gmra.mxu0 %v372
        %v1943 = vpop.f32.mrf.mxu0
        %v1944 = vadd.f32 %v1855, %v1943
        %v1945 = vpop.f32.mrf.mxu0
        %v1946 = vadd.f32 %v1857, %v1945
        %1947 = vmatmul.bf16.gmra.mxu0 %v373
        %v1948 = vpop.f32.mrf.mxu0
        %v1949 = vadd.f32 %v1860, %v1948
        %v1950 = vpop.f32.mrf.mxu0
        %v1951 = vadd.f32 %v1862, %v1950
        %1952 = vmatmul.bf16.gmra.mxu0 %v374
        %v1953 = vpop.f32.mrf.mxu0
        %v1954 = vadd.f32 %v1865, %v1953
        %v1955 = vpop.f32.mrf.mxu0
        %v1956 = vadd.f32 %v1867, %v1955
        %1957 = vmatmul.bf16.gmra.mxu0 %v717
        %v1958 = vpop.f32.mrf.mxu0
        %v1959 = vadd.f32 %v1870, %v1958
        %v1960 = vpop.f32.mrf.mxu0
        %v1961 = vadd.f32 %v1872, %v1960
        %1962 = vmatmul.bf16.gmra.mxu0 %v743
        %v1963 = vpop.f32.mrf.mxu0
        %v1964 = vadd.f32 %v1875, %v1963
        %v1965 = vpop.f32.mrf.mxu0
        %v1966 = vadd.f32 %v1877, %v1965
        %1967 = vdwg.mxu0
        %1968 = vmatpush.bf16.msra.mxu0 %v1264
        %1969 = vmatpush.bf16.msra.mxu0 %v1263
        %1970 = vmatpush.bf16.msra.mxu0 %v1262
        %1971 = vmatpush.bf16.msra.mxu0 %v1261
        %1972 = vmatpush.bf16.msra.mxu0 %v1260
        %1973 = vmatpush.bf16.msra.mxu0 %v1259
        %1974 = vmatpush.bf16.msra.mxu0 %v1258
        %1975 = vmatpush.bf16.msra.mxu0 %v1257
        %1976 = vmatmul.bf16.gmra.mxu0 %v475
        %v1977 = vpop.f32.mrf.mxu0
        %v1978 = vadd.f32 %v1889, %v1977
        %v1979 = vpop.f32.mrf.mxu0
        %v1980 = vadd.f32 %v1891, %v1979
        %1981 = vmatmul.bf16.gmra.mxu0 %v487
        %v1982 = vpop.f32.mrf.mxu0
        %v1983 = vadd.f32 %v1894, %v1982
        %v1984 = vpop.f32.mrf.mxu0
        %v1985 = vadd.f32 %v1896, %v1984
        %1986 = vmatmul.bf16.gmra.mxu0 %v499
        %v1987 = vpop.f32.mrf.mxu0
        %v1988 = vadd.f32 %v1899, %v1987
        %v1989 = vpop.f32.mrf.mxu0
        %v1990 = vadd.f32 %v1901, %v1989
        %1991 = vmatmul.bf16.gmra.mxu0 %v511
        %v1992 = vpop.f32.mrf.mxu0
        %v1993 = vadd.f32 %v1904, %v1992
        %v1994 = vpop.f32.mrf.mxu0
        %v1995 = vadd.f32 %v1906, %v1994
        %1996 = vmatmul.bf16.gmra.mxu0 %v523
        %v1997 = vpop.f32.mrf.mxu0
        %v1998 = vadd.f32 %v1909, %v1997
        %v1999 = vpop.f32.mrf.mxu0
        %v2000 = vadd.f32 %v1911, %v1999
        %2001 = vmatmul.bf16.gmra.mxu0 %v535
        %v2002 = vpop.f32.mrf.mxu0
        %v2003 = vadd.f32 %v1914, %v2002
        %v2004 = vpop.f32.mrf.mxu0
        %v2005 = vadd.f32 %v1916, %v2004
        %2006 = vmatmul.bf16.gmra.mxu0 %v547
        %v2007 = vpop.f32.mrf.mxu0
        %v2008 = vadd.f32 %v1919, %v2007
        %v2009 = vpop.f32.mrf.mxu0
        %v2010 = vadd.f32 %v1921, %v2009
        %2011 = vmatmul.bf16.gmra.mxu0 %v559
        %v2012 = vpop.f32.mrf.mxu0
        %v2013 = vadd.f32 %v1924, %v2012
        %v2014 = vpop.f32.mrf.mxu0
        %v2015 = vadd.f32 %v1926, %v2014
        %2016 = vmatmul.bf16.gmra.mxu0 %v571
        %v2017 = vpop.f32.mrf.mxu0
        %v2018 = vadd.f32 %v1929, %v2017
        %v2019 = vpop.f32.mrf.mxu0
        %v2020 = vadd.f32 %v1931, %v2019
        %2021 = vmatmul.bf16.gmra.mxu0 %v583
        %v2022 = vpop.f32.mrf.mxu0
        %v2023 = vadd.f32 %v1934, %v2022
        %v2024 = vpop.f32.mrf.mxu0
        %v2025 = vadd.f32 %v1936, %v2024
        %2026 = vmatmul.bf16.gmra.mxu0 %v595
        %v2027 = vpop.f32.mrf.mxu0
        %v2028 = vadd.f32 %v1939, %v2027
        %v2029 = vpop.f32.mrf.mxu0
        %v2030 = vadd.f32 %v1941, %v2029
        %2031 = vmatmul.bf16.gmra.mxu0 %v607
        %v2032 = vpop.f32.mrf.mxu0
        %v2033 = vadd.f32 %v1944, %v2032
        %v2034 = vpop.f32.mrf.mxu0
        %v2035 = vadd.f32 %v1946, %v2034
        %2036 = vmatmul.bf16.gmra.mxu0 %v619
        %v2037 = vpop.f32.mrf.mxu0
        %v2038 = vadd.f32 %v1949, %v2037
        %v2039 = vpop.f32.mrf.mxu0
        %v2040 = vadd.f32 %v1951, %v2039
        %2041 = vmatmul.bf16.gmra.mxu0 %v631
        %v2042 = vpop.f32.mrf.mxu0
        %v2043 = vadd.f32 %v1954, %v2042
        %v2044 = vpop.f32.mrf.mxu0
        %v2045 = vadd.f32 %v1956, %v2044
        %2046 = vmatmul.bf16.gmra.mxu0 %v733
        %v2047 = vpop.f32.mrf.mxu0
        %v2048 = vadd.f32 %v1959, %v2047
        %v2049 = vpop.f32.mrf.mxu0
        %v2050 = vadd.f32 %v1961, %v2049
        %2051 = vmatmul.bf16.gmra.mxu0 %v759
        %v2052 = vpop.f32.mrf.mxu0
        %v2053 = vadd.f32 %v1964, %v2052
        %v2054 = vpop.f32.mrf.mxu0
        %v2055 = vadd.f32 %v1966, %v2054
        %2056 = vdwg.mxu0
        %2057 = vmatpush.bf16.msra.mxu0 %v1272
        %2058 = vmatpush.bf16.msra.mxu0 %v1271
        %2059 = vmatpush.bf16.msra.mxu0 %v1270
        %2060 = vmatpush.bf16.msra.mxu0 %v1269
        %2061 = vmatpush.bf16.msra.mxu0 %v1268
        %2062 = vmatpush.bf16.msra.mxu0 %v1267
        %2063 = vmatpush.bf16.msra.mxu0 %v1266
        %2064 = vmatpush.bf16.msra.mxu0 %v1265
        %2065 = vmatmul.bf16.gmra.mxu0 %v657
        %v2066 = vpop.f32.mrf.mxu0
        %v2067 = vadd.f32 %v1978, %v2066
        %v2068 = vpop.f32.mrf.mxu0
        %v2069 = vadd.f32 %v1980, %v2068
        %2070 = vmatmul.bf16.gmra.mxu0 %v660
        %v2071 = vpop.f32.mrf.mxu0
        %v2072 = vadd.f32 %v1983, %v2071
        %v2073 = vpop.f32.mrf.mxu0
        %v2074 = vadd.f32 %v1985, %v2073
        %2075 = vmatmul.bf16.gmra.mxu0 %v663
        %v2076 = vpop.f32.mrf.mxu0
        %v2077 = vadd.f32 %v1988, %v2076
        %v2078 = vpop.f32.mrf.mxu0
        %v2079 = vadd.f32 %v1990, %v2078
        %2080 = vmatmul.bf16.gmra.mxu0 %v666
        %v2081 = vpop.f32.mrf.mxu0
        %v2082 = vadd.f32 %v1993, %v2081
        %v2083 = vpop.f32.mrf.mxu0
        %v2084 = vadd.f32 %v1995, %v2083
        %2085 = vmatmul.bf16.gmra.mxu0 %v669
        %v2086 = vpop.f32.mrf.mxu0
        %v2087 = vadd.f32 %v1998, %v2086
        %v2088 = vpop.f32.mrf.mxu0
        %v2089 = vadd.f32 %v2000, %v2088
        %2090 = vmatmul.bf16.gmra.mxu0 %v672
        %v2091 = vpop.f32.mrf.mxu0
        %v2092 = vadd.f32 %v2003, %v2091
        %v2093 = vpop.f32.mrf.mxu0
        %v2094 = vadd.f32 %v2005, %v2093
        %2095 = vmatmul.bf16.gmra.mxu0 %v675
        %v2096 = vpop.f32.mrf.mxu0
        %v2097 = vadd.f32 %v2008, %v2096
        %v2098 = vpop.f32.mrf.mxu0
        %v2099 = vadd.f32 %v2010, %v2098
        %2100 = vmatmul.bf16.gmra.mxu0 %v678
        %v2101 = vpop.f32.mrf.mxu0
        %v2102 = vadd.f32 %v2013, %v2101
        %v2103 = vpop.f32.mrf.mxu0
        %v2104 = vadd.f32 %v2015, %v2103
        %2105 = vmatmul.bf16.gmra.mxu0 %v681
        %v2106 = vpop.f32.mrf.mxu0
        %v2107 = vadd.f32 %v2018, %v2106
        %v2108 = vpop.f32.mrf.mxu0
        %v2109 = vadd.f32 %v2020, %v2108
        %2110 = vmatmul.bf16.gmra.mxu0 %v684
        %v2111 = vpop.f32.mrf.mxu0
        %v2112 = vadd.f32 %v2023, %v2111
        %v2113 = vpop.f32.mrf.mxu0
        %v2114 = vadd.f32 %v2025, %v2113
        %2115 = vmatmul.bf16.gmra.mxu0 %v687
        %v2116 = vpop.f32.mrf.mxu0
        %v2117 = vadd.f32 %v2028, %v2116
        %v2118 = vpop.f32.mrf.mxu0
        %v2119 = vadd.f32 %v2030, %v2118
        %2120 = vmatmul.bf16.gmra.mxu0 %v690
        %v2121 = vpop.f32.mrf.mxu0
        %v2122 = vadd.f32 %v2033, %v2121
        %v2123 = vpop.f32.mrf.mxu0
        %v2124 = vadd.f32 %v2035, %v2123
        %2125 = vmatmul.bf16.gmra.mxu0 %v693
        %v2126 = vpop.f32.mrf.mxu0
        %v2127 = vadd.f32 %v2038, %v2126
        %v2128 = vpop.f32.mrf.mxu0
        %v2129 = vadd.f32 %v2040, %v2128
        %2130 = vmatmul.bf16.gmra.mxu0 %v696
        %v2131 = vpop.f32.mrf.mxu0
        %v2132 = vadd.f32 %v2043, %v2131
        %v2133 = vpop.f32.mrf.mxu0
        %v2134 = vadd.f32 %v2045, %v2133
        %2135 = vmatmul.bf16.gmra.mxu0 %v737
        %v2136 = vpop.f32.mrf.mxu0
        %v2137 = vadd.f32 %v2048, %v2136
        %v2138 = vpop.f32.mrf.mxu0
        %v2139 = vadd.f32 %v2050, %v2138
        %2140 = vmatmul.bf16.gmra.mxu0 %v763
        %v2141 = vpop.f32.mrf.mxu0
        %v2142 = vadd.f32 %v2053, %v2141
        %v2143 = vpop.f32.mrf.mxu0
        %v2144 = vadd.f32 %v2055, %v2143
        %2145 = vdwg.mxu0
        %v2146 = vmax.f32 %v2067, 0.0
        %v2147 = vmax.f32 %v2069, 0.0
        %v2148 = vmax.f32 %v2072, 0.0
        %v2149 = vmax.f32 %v2074, 0.0
        %v2150 = vmax.f32 %v2077, 0.0
        %v2151 = vmax.f32 %v2079, 0.0
        %v2152 = vmax.f32 %v2082, 0.0
        %v2153 = vmax.f32 %v2084, 0.0
        %v2154 = vmax.f32 %v2087, 0.0
        %v2155 = vmax.f32 %v2089, 0.0
        %v2156 = vmax.f32 %v2092, 0.0
        %v2157 = vmax.f32 %v2094, 0.0
        %v2158 = vmax.f32 %v2097, 0.0
        %v2159 = vmax.f32 %v2099, 0.0
        %v2160 = vmax.f32 %v2102, 0.0
        %v2161 = vmax.f32 %v2104, 0.0
        %v2162 = vmax.f32 %v2107, 0.0
        %v2163 = vmax.f32 %v2109, 0.0
        %v2164 = vmax.f32 %v2112, 0.0
        %v2165 = vmax.f32 %v2114, 0.0
        %v2166 = vmax.f32 %v2117, 0.0
        %v2167 = vmax.f32 %v2119, 0.0
        %v2168 = vmax.f32 %v2122, 0.0
        %v2169 = vmax.f32 %v2124, 0.0
        %v2170 = vmax.f32 %v2127, 0.0
        %v2171 = vmax.f32 %v2129, 0.0
        %v2172 = vmax.f32 %v2132, 0.0
        %v2173 = vmax.f32 %v2134, 0.0
        %v2174 = vmax.f32 %v2137, 0.0
        %v2175 = vmax.f32 %v2139, 0.0
        %v2176 = vmax.f32 %v2142, 0.0
        %v2177 = vmax.f32 %v2144, 0.0
        %2178 = vst [vmem:[#allocation2] sm:$0xf] 0
        %2179 = vst [vmem:[#allocation2 + $0x4] sm:$0xf] 0
        %2180 = vst [vmem:[#allocation2 + $0x8] sm:$0x1] 0
        %s2181 = scalar_lea.vmem [#allocation2], 204
        %2182 = vst [vmem:[%s2181] sm:$0xf] 0
        %2183 = vst [vmem:[%s2181 + $0x4] sm:$0xf] 0
        %2184 = vst [vmem:[%s2181 + $0x8] sm:$0x1] 0
        %vm2185 = vcmask 1040384
        %vm2186 = vsmask.f32 256
        %vm2187 = vmand %vm2185, %vm2186
        %v2188 = vld [vmem:[#allocation2] sm:$0x1]
        %v2189 = vsel %vm2187, 0, %v2188
        %2190 = vst [vmem:[#allocation2] sm:$0x1] %v2189
        %v2191 = vld [vmem:[#allocation2 + $0xc] sm:$0x1]
        %v2192 = vsel %vm2187, 0, %v2191
        %2193 = vst [vmem:[#allocation2 + $0xc] sm:$0x1] %v2192
        %v2194 = vld [vmem:[#allocation2 + $0x18] sm:$0x1]
        %v2195 = vsel %vm2187, 0, %v2194
        %2196 = vst [vmem:[#allocation2 + $0x18] sm:$0x1] %v2195
        %v2197 = vld [vmem:[#allocation2 + $0x24] sm:$0x1]
        %v2198 = vsel %vm2187, 0, %v2197
        %2199 = vst [vmem:[#allocation2 + $0x24] sm:$0x1] %v2198
        %v2200 = vld [vmem:[#allocation2 + $0x30] sm:$0x1]
        %v2201 = vsel %vm2187, 0, %v2200
        %2202 = vst [vmem:[#allocation2 + $0x30] sm:$0x1] %v2201
        %v2203 = vld [vmem:[#allocation2 + $0x3c] sm:$0x1]
        %v2204 = vsel %vm2187, 0, %v2203
        %2205 = vst [vmem:[#allocation2 + $0x3c] sm:$0x1] %v2204
        %v2206 = vld [vmem:[#allocation2 + $0x48] sm:$0x1]
        %v2207 = vsel %vm2187, 0, %v2206
        %2208 = vst [vmem:[#allocation2 + $0x48] sm:$0x1] %v2207
        %v2209 = vld [vmem:[#allocation2 + $0x54] sm:$0x1]
        %v2210 = vsel %vm2187, 0, %v2209
        %2211 = vst [vmem:[#allocation2 + $0x54] sm:$0x1] %v2210
        %v2212 = vld [vmem:[#allocation2 + $0x60] sm:$0x1]
        %v2213 = vsel %vm2187, 0, %v2212
        %2214 = vst [vmem:[#allocation2 + $0x60] sm:$0x1] %v2213
        %v2215 = vld [vmem:[#allocation2 + $0x6c] sm:$0x1]
        %v2216 = vsel %vm2187, 0, %v2215
        %2217 = vst [vmem:[#allocation2 + $0x6c] sm:$0x1] %v2216
        %v2218 = vld [vmem:[#allocation2 + $0x78] sm:$0x1]
        %v2219 = vsel %vm2187, 0, %v2218
        %2220 = vst [vmem:[#allocation2 + $0x78] sm:$0x1] %v2219
        %v2221 = vld [vmem:[#allocation2 + $0x84] sm:$0x1]
        %v2222 = vsel %vm2187, 0, %v2221
        %2223 = vst [vmem:[#allocation2 + $0x84] sm:$0x1] %v2222
        %v2224 = vld [vmem:[#allocation2 + $0x90] sm:$0x1]
        %v2225 = vsel %vm2187, 0, %v2224
        %2226 = vst [vmem:[#allocation2 + $0x90] sm:$0x1] %v2225
        %v2227 = vld [vmem:[#allocation2 + $0x9c] sm:$0x1]
        %v2228 = vsel %vm2187, 0, %v2227
        %2229 = vst [vmem:[#allocation2 + $0x9c] sm:$0x1] %v2228
        %v2230 = vld [vmem:[#allocation2 + $0xa8] sm:$0x1]
        %v2231 = vsel %vm2187, 0, %v2230
        %2232 = vst [vmem:[#allocation2 + $0xa8] sm:$0x1] %v2231
        %v2233 = vld [vmem:[#allocation2 + $0xb4] sm:$0x1]
        %v2234 = vsel %vm2187, 0, %v2233
        %2235 = vst [vmem:[#allocation2 + $0xb4] sm:$0x1] %v2234
        %v2236 = vld [vmem:[#allocation2 + $0xc0] sm:$0x1]
        %v2237 = vsel %vm2187, 0, %v2236
        %2238 = vst [vmem:[#allocation2 + $0xc0] sm:$0x1] %v2237
        %v2239 = vld [vmem:[#allocation2 + $0xcc] sm:$0x1]
        %v2240 = vsel %vm2187, 0, %v2239
        %2241 = vst [vmem:[#allocation2 + $0xcc] sm:$0x1] %v2240
        %vm2242 = vsmask.f32 7938
        %vm2243 = vmand %vm2185, %vm2242
        %v2244 = vld [vmem:[#allocation2 + $0x8] sm:$0x1]
        %v2245 = vsel %vm2243, 0, %v2244
        %2246 = vst [vmem:[#allocation2 + $0x8] sm:$0x1] %v2245
        %v2247 = vld [vmem:[#allocation2 + $0x14] sm:$0x1]
        %v2248 = vsel %vm2243, 0, %v2247
        %2249 = vst [vmem:[#allocation2 + $0x14] sm:$0x1] %v2248
        %v2250 = vld [vmem:[#allocation2 + $0x20] sm:$0x1]
        %v2251 = vsel %vm2243, 0, %v2250
        %2252 = vst [vmem:[#allocation2 + $0x20] sm:$0x1] %v2251
        %v2253 = vld [vmem:[#allocation2 + $0x2c] sm:$0x1]
        %v2254 = vsel %vm2243, 0, %v2253
        %2255 = vst [vmem:[#allocation2 + $0x2c] sm:$0x1] %v2254
        %v2256 = vld [vmem:[#allocation2 + $0x38] sm:$0x1]
        %v2257 = vsel %vm2243, 0, %v2256
        %2258 = vst [vmem:[#allocation2 + $0x38] sm:$0x1] %v2257
        %v2259 = vld [vmem:[#allocation2 + $0x44] sm:$0x1]
        %v2260 = vsel %vm2243, 0, %v2259
        %2261 = vst [vmem:[#allocation2 + $0x44] sm:$0x1] %v2260
        %v2262 = vld [vmem:[#allocation2 + $0x50] sm:$0x1]
        %v2263 = vsel %vm2243, 0, %v2262
        %2264 = vst [vmem:[#allocation2 + $0x50] sm:$0x1] %v2263
        %v2265 = vld [vmem:[#allocation2 + $0x5c] sm:$0x1]
        %v2266 = vsel %vm2243, 0, %v2265
        %2267 = vst [vmem:[#allocation2 + $0x5c] sm:$0x1] %v2266
        %v2268 = vld [vmem:[#allocation2 + $0x68] sm:$0x1]
        %v2269 = vsel %vm2243, 0, %v2268
        %2270 = vst [vmem:[#allocation2 + $0x68] sm:$0x1] %v2269
        %v2271 = vld [vmem:[#allocation2 + $0x74] sm:$0x1]
        %v2272 = vsel %vm2243, 0, %v2271
        %2273 = vst [vmem:[#allocation2 + $0x74] sm:$0x1] %v2272
        %v2274 = vld [vmem:[#allocation2 + $0x80] sm:$0x1]
        %v2275 = vsel %vm2243, 0, %v2274
        %2276 = vst [vmem:[#allocation2 + $0x80] sm:$0x1] %v2275
        %v2277 = vld [vmem:[#allocation2 + $0x8c] sm:$0x1]
        %v2278 = vsel %vm2243, 0, %v2277
        %2279 = vst [vmem:[#allocation2 + $0x8c] sm:$0x1] %v2278
        %v2280 = vld [vmem:[#allocation2 + $0x98] sm:$0x1]
        %v2281 = vsel %vm2243, 0, %v2280
        %2282 = vst [vmem:[#allocation2 + $0x98] sm:$0x1] %v2281
        %v2283 = vld [vmem:[#allocation2 + $0xa4] sm:$0x1]
        %v2284 = vsel %vm2243, 0, %v2283
        %2285 = vst [vmem:[#allocation2 + $0xa4] sm:$0x1] %v2284
        %v2286 = vld [vmem:[#allocation2 + $0xb0] sm:$0x1]
        %v2287 = vsel %vm2243, 0, %v2286
        %2288 = vst [vmem:[#allocation2 + $0xb0] sm:$0x1] %v2287
        %v2289 = vld [vmem:[#allocation2 + $0xbc] sm:$0x1]
        %v2290 = vsel %vm2243, 0, %v2289
        %2291 = vst [vmem:[#allocation2 + $0xbc] sm:$0x1] %v2290
        %v2292 = vld [vmem:[#allocation2 + $0xc8] sm:$0x1]
        %v2293 = vsel %vm2243, 0, %v2292
        %2294 = vst [vmem:[#allocation2 + $0xc8] sm:$0x1] %v2293
        %v2295 = vld [vmem:[#allocation2 + $0xd4] sm:$0x1]
        %v2296 = vsel %vm2243, 0, %v2295
        %2297 = vst [vmem:[#allocation2 + $0xd4] sm:$0x1] %v2296
        %v2298 = vpack.c.bf16 %v2146, %v2146
        %v2299 = vpack.c.bf16 %v2147, %v2147
        %v2300 = vpack.c.bf16 %v2148, %v2148
        %v2301 = vpack.c.bf16 %v2149, %v2149
        %v2302 = vpack.c.bf16 %v2150, %v2150
        %v2303 = vpack.c.bf16 %v2151, %v2151
        %v2304 = vpack.c.bf16 %v2152, %v2152
        %v2305 = vpack.c.bf16 %v2153, %v2153
        %v2306 = vpack.c.bf16 %v2154, %v2154
        %v2307 = vpack.c.bf16 %v2155, %v2155
        %v2308 = vpack.c.bf16 %v2156, %v2156
        %v2309 = vpack.c.bf16 %v2157, %v2157
        %v2310 = vpack.c.bf16 %v2158, %v2158
        %v2311 = vpack.c.bf16 %v2159, %v2159
        %v2312 = vpack.c.bf16 %v2160, %v2160
        %v2313 = vpack.c.bf16 %v2161, %v2161
        %v2314 = vpack.c.bf16 %v2162, %v2162
        %v2315 = vpack.c.bf16 %v2163, %v2163
        %v2316 = vpack.c.bf16 %v2164, %v2164
        %v2317 = vpack.c.bf16 %v2165, %v2165
        %v2318 = vpack.c.bf16 %v2166, %v2166
        %v2319 = vpack.c.bf16 %v2167, %v2167
        %v2320 = vpack.c.bf16 %v2168, %v2168
        %v2321 = vpack.c.bf16 %v2169, %v2169
        %v2322 = vpack.c.bf16 %v2170, %v2170
        %v2323 = vpack.c.bf16 %v2171, %v2171
        %v2324 = vpack.c.bf16 %v2172, %v2172
        %v2325 = vpack.c.bf16 %v2173, %v2173
        %v2326 = vpack.c.bf16 %v2174, %v2174
        %v2327 = vpack.c.bf16 %v2175, %v2175
        %v2328 = vpack.c.bf16 %v2176, %v2176
        %v2329 = vpack.c.bf16 %v2177, %v2177
        %vm2330 = vsmask.f32 4368
        %vm2331 = vmor %vm2186, %vm2330
        %v2333 = vshrl.u32 %v2298, 16
        %v2335 = vrot.slane %v2333, 7
        %v2336 = vshll.u32 %v2298, 16
        %v2338 = vor.u32 %v2335, %v2336
        %v2339 = vrot.slane %v2335, 4
        %v2341 = vshrl.u32 %v2299, 16
        %v2343 = vrot.slane %v2341, 7
        %v2344 = vshll.u32 %v2299, 16
        %v2346 = vor.u32 %v2343, %v2344
        %v2347 = vsel %vm2331, %v2339, %v2346
        %v2348 = vrot.slane %v2343, 4
        %v2350 = vshrl.u32 %v2300, 16
        %v2352 = vrot.slane %v2350, 7
        %v2353 = vshll.u32 %v2300, 16
        %v2355 = vor.u32 %v2352, %v2353
        %v2356 = vrot.slane %v2352, 4
        %v2358 = vshrl.u32 %v2301, 16
        %v2360 = vrot.slane %v2358, 7
        %v2361 = vshll.u32 %v2301, 16
        %v2363 = vor.u32 %v2360, %v2361
        %v2364 = vsel %vm2331, %v2356, %v2363
        %v2365 = vrot.slane %v2360, 4
        %v2367 = vshrl.u32 %v2302, 16
        %v2369 = vrot.slane %v2367, 7
        %v2370 = vshll.u32 %v2302, 16
        %v2372 = vor.u32 %v2369, %v2370
        %v2373 = vrot.slane %v2369, 4
        %v2375 = vshrl.u32 %v2303, 16
        %v2377 = vrot.slane %v2375, 7
        %v2378 = vshll.u32 %v2303, 16
        %v2380 = vor.u32 %v2377, %v2378
        %v2381 = vsel %vm2331, %v2373, %v2380
        %v2382 = vrot.slane %v2377, 4
        %v2384 = vshrl.u32 %v2304, 16
        %v2386 = vrot.slane %v2384, 7
        %v2387 = vshll.u32 %v2304, 16
        %v2389 = vor.u32 %v2386, %v2387
        %v2390 = vrot.slane %v2386, 4
        %v2392 = vshrl.u32 %v2305, 16
        %v2394 = vrot.slane %v2392, 7
        %v2395 = vshll.u32 %v2305, 16
        %v2397 = vor.u32 %v2394, %v2395
        %v2398 = vsel %vm2331, %v2390, %v2397
        %v2399 = vrot.slane %v2394, 4
        %v2401 = vshrl.u32 %v2306, 16
        %v2403 = vrot.slane %v2401, 7
        %v2404 = vshll.u32 %v2306, 16
        %v2406 = vor.u32 %v2403, %v2404
        %v2407 = vrot.slane %v2403, 4
        %v2409 = vshrl.u32 %v2307, 16
        %v2411 = vrot.slane %v2409, 7
        %v2412 = vshll.u32 %v2307, 16
        %v2414 = vor.u32 %v2411, %v2412
        %v2415 = vsel %vm2331, %v2407, %v2414
        %v2416 = vrot.slane %v2411, 4
        %v2418 = vshrl.u32 %v2308, 16
        %v2420 = vrot.slane %v2418, 7
        %v2421 = vshll.u32 %v2308, 16
        %v2423 = vor.u32 %v2420, %v2421
        %v2424 = vrot.slane %v2420, 4
        %v2426 = vshrl.u32 %v2309, 16
        %v2428 = vrot.slane %v2426, 7
        %v2429 = vshll.u32 %v2309, 16
        %v2431 = vor.u32 %v2428, %v2429
        %v2432 = vsel %vm2331, %v2424, %v2431
        %v2433 = vrot.slane %v2428, 4
        %v2435 = vshrl.u32 %v2310, 16
        %v2437 = vrot.slane %v2435, 7
        %v2438 = vshll.u32 %v2310, 16
        %v2440 = vor.u32 %v2437, %v2438
        %v2441 = vrot.slane %v2437, 4
        %v2443 = vshrl.u32 %v2311, 16
        %v2445 = vrot.slane %v2443, 7
        %v2446 = vshll.u32 %v2311, 16
        %v2448 = vor.u32 %v2445, %v2446
        %v2449 = vsel %vm2331, %v2441, %v2448
        %v2450 = vrot.slane %v2445, 4
        %v2452 = vshrl.u32 %v2312, 16
        %v2454 = vrot.slane %v2452, 7
        %v2455 = vshll.u32 %v2312, 16
        %v2457 = vor.u32 %v2454, %v2455
        %v2458 = vrot.slane %v2454, 4
        %v2460 = vshrl.u32 %v2313, 16
        %v2462 = vrot.slane %v2460, 7
        %v2463 = vshll.u32 %v2313, 16
        %v2465 = vor.u32 %v2462, %v2463
        %v2466 = vsel %vm2331, %v2458, %v2465
        %v2467 = vrot.slane %v2462, 4
        %v2469 = vshrl.u32 %v2314, 16
        %v2471 = vrot.slane %v2469, 7
        %v2472 = vshll.u32 %v2314, 16
        %v2474 = vor.u32 %v2471, %v2472
        %v2475 = vrot.slane %v2471, 4
        %v2477 = vshrl.u32 %v2315, 16
        %v2479 = vrot.slane %v2477, 7
        %v2480 = vshll.u32 %v2315, 16
        %v2482 = vor.u32 %v2479, %v2480
        %v2483 = vsel %vm2331, %v2475, %v2482
        %v2484 = vrot.slane %v2479, 4
        %v2486 = vshrl.u32 %v2316, 16
        %v2488 = vrot.slane %v2486, 7
        %v2489 = vshll.u32 %v2316, 16
        %v2491 = vor.u32 %v2488, %v2489
        %v2492 = vrot.slane %v2488, 4
        %v2494 = vshrl.u32 %v2317, 16
        %v2496 = vrot.slane %v2494, 7
        %v2497 = vshll.u32 %v2317, 16
        %v2499 = vor.u32 %v2496, %v2497
        %v2500 = vsel %vm2331, %v2492, %v2499
        %v2501 = vrot.slane %v2496, 4
        %v2503 = vshrl.u32 %v2318, 16
        %v2505 = vrot.slane %v2503, 7
        %v2506 = vshll.u32 %v2318, 16
        %v2508 = vor.u32 %v2505, %v2506
        %v2509 = vrot.slane %v2505, 4
        %v2511 = vshrl.u32 %v2319, 16
        %v2513 = vrot.slane %v2511, 7
        %v2514 = vshll.u32 %v2319, 16
        %v2516 = vor.u32 %v2513, %v2514
        %v2517 = vsel %vm2331, %v2509, %v2516
        %v2518 = vrot.slane %v2513, 4
        %v2520 = vshrl.u32 %v2320, 16
        %v2522 = vrot.slane %v2520, 7
        %v2523 = vshll.u32 %v2320, 16
        %v2525 = vor.u32 %v2522, %v2523
        %v2526 = vrot.slane %v2522, 4
        %v2528 = vshrl.u32 %v2321, 16
        %v2530 = vrot.slane %v2528, 7
        %v2531 = vshll.u32 %v2321, 16
        %v2533 = vor.u32 %v2530, %v2531
        %v2534 = vsel %vm2331, %v2526, %v2533
        %v2535 = vrot.slane %v2530, 4
        %v2537 = vshrl.u32 %v2322, 16
        %v2539 = vrot.slane %v2537, 7
        %v2540 = vshll.u32 %v2322, 16
        %v2542 = vor.u32 %v2539, %v2540
        %v2543 = vrot.slane %v2539, 4
        %v2545 = vshrl.u32 %v2323, 16
        %v2547 = vrot.slane %v2545, 7
        %v2548 = vshll.u32 %v2323, 16
        %v2550 = vor.u32 %v2547, %v2548
        %v2551 = vsel %vm2331, %v2543, %v2550
        %v2552 = vrot.slane %v2547, 4
        %v2554 = vshrl.u32 %v2324, 16
        %v2556 = vrot.slane %v2554, 7
        %v2557 = vshll.u32 %v2324, 16
        %v2559 = vor.u32 %v2556, %v2557
        %v2560 = vrot.slane %v2556, 4
        %v2562 = vshrl.u32 %v2325, 16
        %v2564 = vrot.slane %v2562, 7
        %v2565 = vshll.u32 %v2325, 16
        %v2567 = vor.u32 %v2564, %v2565
        %v2568 = vsel %vm2331, %v2560, %v2567
        %v2569 = vrot.slane %v2564, 4
        %v2571 = vshrl.u32 %v2326, 16
        %v2573 = vrot.slane %v2571, 7
        %v2574 = vshll.u32 %v2326, 16
        %v2576 = vor.u32 %v2573, %v2574
        %v2577 = vrot.slane %v2573, 4
        %v2579 = vshrl.u32 %v2327, 16
        %v2581 = vrot.slane %v2579, 7
        %v2582 = vshll.u32 %v2327, 16
        %v2584 = vor.u32 %v2581, %v2582
        %v2585 = vsel %vm2331, %v2577, %v2584
        %v2586 = vrot.slane %v2581, 4
        %v2588 = vshrl.u32 %v2328, 16
        %v2590 = vrot.slane %v2588, 7
        %v2591 = vshll.u32 %v2328, 16
        %v2593 = vor.u32 %v2590, %v2591
        %v2594 = vrot.slane %v2590, 4
        %v2596 = vshrl.u32 %v2329, 16
        %v2598 = vrot.slane %v2596, 7
        %v2599 = vshll.u32 %v2329, 16
        %v2601 = vor.u32 %v2598, %v2599
        %v2602 = vsel %vm2331, %v2594, %v2601
        %v2603 = vrot.slane %v2598, 4
        %s2652 = scalar_lea.vmem [#allocation2], 12
        %vm2653 = vcmask 1043456
        %vm2654 = vmand %vm2653, %vm2242
        %v2655 = vld [vmem:[%s2652] sm:$0xf]
        %v2656 = vsel %vm2654, %v2338, %v2655
        %2657 = vst [vmem:[%s2652] sm:$0xf] %v2656
        %2658 = vst [vmem:[%s2652 + $0x4] sm:$0xf] %v2347
        %v2659 = vld [vmem:[%s2652 + $0x8] sm:$0x1]
        %v2660 = vsel %vm2187, %v2348, %v2659
        %2661 = vst [vmem:[%s2652 + $0x8] sm:$0x1] %v2660
        %v2662 = vld [vmem:[%s2652 + $0xc] sm:$0xf]
        %v2663 = vsel %vm2654, %v2355, %v2662
        %2664 = vst [vmem:[%s2652 + $0xc] sm:$0xf] %v2663
        %2665 = vst [vmem:[%s2652 + $0x10] sm:$0xf] %v2364
        %v2666 = vld [vmem:[%s2652 + $0x14] sm:$0x1]
        %v2667 = vsel %vm2187, %v2365, %v2666
        %2668 = vst [vmem:[%s2652 + $0x14] sm:$0x1] %v2667
        %v2669 = vld [vmem:[%s2652 + $0x18] sm:$0xf]
        %v2670 = vsel %vm2654, %v2372, %v2669
        %2671 = vst [vmem:[%s2652 + $0x18] sm:$0xf] %v2670
        %2672 = vst [vmem:[%s2652 + $0x1c] sm:$0xf] %v2381
        %v2673 = vld [vmem:[%s2652 + $0x20] sm:$0x1]
        %v2674 = vsel %vm2187, %v2382, %v2673
        %2675 = vst [vmem:[%s2652 + $0x20] sm:$0x1] %v2674
        %v2676 = vld [vmem:[%s2652 + $0x24] sm:$0xf]
        %v2677 = vsel %vm2654, %v2389, %v2676
        %2678 = vst [vmem:[%s2652 + $0x24] sm:$0xf] %v2677
        %2679 = vst [vmem:[%s2652 + $0x28] sm:$0xf] %v2398
        %v2680 = vld [vmem:[%s2652 + $0x2c] sm:$0x1]
        %v2681 = vsel %vm2187, %v2399, %v2680
        %2682 = vst [vmem:[%s2652 + $0x2c] sm:$0x1] %v2681
        %v2683 = vld [vmem:[%s2652 + $0x30] sm:$0xf]
        %v2684 = vsel %vm2654, %v2406, %v2683
        %2685 = vst [vmem:[%s2652 + $0x30] sm:$0xf] %v2684
        %2686 = vst [vmem:[%s2652 + $0x34] sm:$0xf] %v2415
        %v2687 = vld [vmem:[%s2652 + $0x38] sm:$0x1]
        %v2688 = vsel %vm2187, %v2416, %v2687
        %2689 = vst [vmem:[%s2652 + $0x38] sm:$0x1] %v2688
        %v2690 = vld [vmem:[%s2652 + $0x3c] sm:$0xf]
        %v2691 = vsel %vm2654, %v2423, %v2690
        %2692 = vst [vmem:[%s2652 + $0x3c] sm:$0xf] %v2691
        %2693 = vst [vmem:[%s2652 + $0x40] sm:$0xf] %v2432
        %v2694 = vld [vmem:[%s2652 + $0x44] sm:$0x1]
        %v2695 = vsel %vm2187, %v2433, %v2694
        %2696 = vst [vmem:[%s2652 + $0x44] sm:$0x1] %v2695
        %v2697 = vld [vmem:[%s2652 + $0x48] sm:$0xf]
        %v2698 = vsel %vm2654, %v2440, %v2697
        %2699 = vst [vmem:[%s2652 + $0x48] sm:$0xf] %v2698
        %2700 = vst [vmem:[%s2652 + $0x4c] sm:$0xf] %v2449
        %v2701 = vld [vmem:[%s2652 + $0x50] sm:$0x1]
        %v2702 = vsel %vm2187, %v2450, %v2701
        %2703 = vst [vmem:[%s2652 + $0x50] sm:$0x1] %v2702
        %v2704 = vld [vmem:[%s2652 + $0x54] sm:$0xf]
        %v2705 = vsel %vm2654, %v2457, %v2704
        %2706 = vst [vmem:[%s2652 + $0x54] sm:$0xf] %v2705
        %2707 = vst [vmem:[%s2652 + $0x58] sm:$0xf] %v2466
        %v2708 = vld [vmem:[%s2652 + $0x5c] sm:$0x1]
        %v2709 = vsel %vm2187, %v2467, %v2708
        %2710 = vst [vmem:[%s2652 + $0x5c] sm:$0x1] %v2709
        %v2711 = vld [vmem:[%s2652 + $0x60] sm:$0xf]
        %v2712 = vsel %vm2654, %v2474, %v2711
        %2713 = vst [vmem:[%s2652 + $0x60] sm:$0xf] %v2712
        %2714 = vst [vmem:[%s2652 + $0x64] sm:$0xf] %v2483
        %v2715 = vld [vmem:[%s2652 + $0x68] sm:$0x1]
        %v2716 = vsel %vm2187, %v2484, %v2715
        %2717 = vst [vmem:[%s2652 + $0x68] sm:$0x1] %v2716
        %v2718 = vld [vmem:[%s2652 + $0x6c] sm:$0xf]
        %v2719 = vsel %vm2654, %v2491, %v2718
        %2720 = vst [vmem:[%s2652 + $0x6c] sm:$0xf] %v2719
        %2721 = vst [vmem:[%s2652 + $0x70] sm:$0xf] %v2500
        %v2722 = vld [vmem:[%s2652 + $0x74] sm:$0x1]
        %v2723 = vsel %vm2187, %v2501, %v2722
        %2724 = vst [vmem:[%s2652 + $0x74] sm:$0x1] %v2723
        %v2725 = vld [vmem:[%s2652 + $0x78] sm:$0xf]
        %v2726 = vsel %vm2654, %v2508, %v2725
        %2727 = vst [vmem:[%s2652 + $0x78] sm:$0xf] %v2726
        %2728 = vst [vmem:[%s2652 + $0x7c] sm:$0xf] %v2517
        %v2729 = vld [vmem:[%s2652 + $0x80] sm:$0x1]
        %v2730 = vsel %vm2187, %v2518, %v2729
        %2731 = vst [vmem:[%s2652 + $0x80] sm:$0x1] %v2730
        %v2732 = vld [vmem:[%s2652 + $0x84] sm:$0xf]
        %v2733 = vsel %vm2654, %v2525, %v2732
        %2734 = vst [vmem:[%s2652 + $0x84] sm:$0xf] %v2733
        %2735 = vst [vmem:[%s2652 + $0x88] sm:$0xf] %v2534
        %v2736 = vld [vmem:[%s2652 + $0x8c] sm:$0x1]
        %v2737 = vsel %vm2187, %v2535, %v2736
        %2738 = vst [vmem:[%s2652 + $0x8c] sm:$0x1] %v2737
        %v2739 = vld [vmem:[%s2652 + $0x90] sm:$0xf]
        %v2740 = vsel %vm2654, %v2542, %v2739
        %2741 = vst [vmem:[%s2652 + $0x90] sm:$0xf] %v2740
        %2742 = vst [vmem:[%s2652 + $0x94] sm:$0xf] %v2551
        %v2743 = vld [vmem:[%s2652 + $0x98] sm:$0x1]
        %v2744 = vsel %vm2187, %v2552, %v2743
        %2745 = vst [vmem:[%s2652 + $0x98] sm:$0x1] %v2744
        %v2746 = vld [vmem:[%s2652 + $0x9c] sm:$0xf]
        %v2747 = vsel %vm2654, %v2559, %v2746
        %2748 = vst [vmem:[%s2652 + $0x9c] sm:$0xf] %v2747
        %2749 = vst [vmem:[%s2652 + $0xa0] sm:$0xf] %v2568
        %v2750 = vld [vmem:[%s2652 + $0xa4] sm:$0x1]
        %v2751 = vsel %vm2187, %v2569, %v2750
        %2752 = vst [vmem:[%s2652 + $0xa4] sm:$0x1] %v2751
        %v2753 = vld [vmem:[%s2652 + $0xa8] sm:$0xf]
        %v2754 = vsel %vm2654, %v2576, %v2753
        %2755 = vst [vmem:[%s2652 + $0xa8] sm:$0xf] %v2754
        %2756 = vst [vmem:[%s2652 + $0xac] sm:$0xf] %v2585
        %v2757 = vld [vmem:[%s2652 + $0xb0] sm:$0x1]
        %v2758 = vsel %vm2187, %v2586, %v2757
        %2759 = vst [vmem:[%s2652 + $0xb0] sm:$0x1] %v2758
        %v2760 = vld [vmem:[%s2652 + $0xb4] sm:$0xf]
        %v2761 = vsel %vm2654, %v2593, %v2760
        %2762 = vst [vmem:[%s2652 + $0xb4] sm:$0xf] %v2761
        %2763 = vst [vmem:[%s2652 + $0xb8] sm:$0xf] %v2602
        %v2764 = vld [vmem:[%s2652 + $0xbc] sm:$0x1]
        %v2765 = vsel %vm2187, %v2603, %v2764
        %2766 = vst [vmem:[%s2652 + $0xbc] sm:$0x1] %v2765
        %v2767 = vld [vmem:[#allocation2] sm:$0xf]
        %v2768 = vld [vmem:[#allocation2 + $0x4] sm:$0xf]
        %v2769 = vld [vmem:[#allocation2 + $0x8] sm:$0x1]
        %v2770 = vld [vmem:[#allocation2 + $0xc] sm:$0xf]
        %v2771 = vld [vmem:[#allocation2 + $0x10] sm:$0xf]
        %v2772 = vld [vmem:[#allocation2 + $0x14] sm:$0x1]
        %v2773 = vld [vmem:[#allocation2 + $0x18] sm:$0xf]
        %v2774 = vld [vmem:[#allocation2 + $0x1c] sm:$0xf]
        %v2775 = vld [vmem:[#allocation2 + $0x20] sm:$0x1]
        %v2776 = vld [vmem:[#allocation2 + $0x24] sm:$0xf]
        %v2777 = vld [vmem:[#allocation2 + $0x28] sm:$0xf]
        %v2778 = vld [vmem:[#allocation2 + $0x2c] sm:$0x1]
        %v2779 = vld [vmem:[#allocation2 + $0x30] sm:$0xf]
        %v2780 = vld [vmem:[#allocation2 + $0x34] sm:$0xf]
        %v2781 = vld [vmem:[#allocation2 + $0x38] sm:$0x1]
        %v2782 = vld [vmem:[#allocation2 + $0x3c] sm:$0xf]
        %v2783 = vld [vmem:[#allocation2 + $0x40] sm:$0xf]
        %v2784 = vld [vmem:[#allocation2 + $0x44] sm:$0x1]
        %v2785 = vld [vmem:[#allocation2 + $0x48] sm:$0xf]
        %v2786 = vld [vmem:[#allocation2 + $0x4c] sm:$0xf]
        %v2787 = vld [vmem:[#allocation2 + $0x50] sm:$0x1]
        %v2788 = vld [vmem:[#allocation2 + $0x54] sm:$0xf]
        %v2789 = vld [vmem:[#allocation2 + $0x58] sm:$0xf]
        %v2790 = vld [vmem:[#allocation2 + $0x5c] sm:$0x1]
        %v2791 = vld [vmem:[#allocation2 + $0x60] sm:$0xf]
        %v2792 = vld [vmem:[#allocation2 + $0x64] sm:$0xf]
        %v2793 = vld [vmem:[#allocation2 + $0x68] sm:$0x1]
        %v2794 = vld [vmem:[#allocation2 + $0x6c] sm:$0xf]
        %v2795 = vld [vmem:[#allocation2 + $0x70] sm:$0xf]
        %v2796 = vld [vmem:[#allocation2 + $0x74] sm:$0x1]
        %v2797 = vld [vmem:[#allocation2 + $0x78] sm:$0xf]
        %v2798 = vld [vmem:[#allocation2 + $0x7c] sm:$0xf]
        %v2799 = vld [vmem:[#allocation2 + $0x80] sm:$0x1]
        %v2800 = vld [vmem:[#allocation2 + $0x84] sm:$0xf]
        %v2801 = vld [vmem:[#allocation2 + $0x88] sm:$0xf]
        %v2802 = vld [vmem:[#allocation2 + $0x8c] sm:$0x1]
        %v2803 = vld [vmem:[#allocation2 + $0x90] sm:$0xf]
        %v2804 = vld [vmem:[#allocation2 + $0x94] sm:$0xf]
        %v2805 = vld [vmem:[#allocation2 + $0x98] sm:$0x1]
        %v2806 = vld [vmem:[#allocation2 + $0x9c] sm:$0xf]
        %v2807 = vld [vmem:[#allocation2 + $0xa0] sm:$0xf]
        %v2808 = vld [vmem:[#allocation2 + $0xa4] sm:$0x1]
        %v2809 = vld [vmem:[#allocation2 + $0xa8] sm:$0xf]
        %v2810 = vld [vmem:[#allocation2 + $0xac] sm:$0xf]
        %v2811 = vld [vmem:[#allocation2 + $0xb0] sm:$0x1]
        %v2812 = vld [vmem:[#allocation2 + $0xb4] sm:$0xf]
        %v2813 = vld [vmem:[#allocation2 + $0xb8] sm:$0xf]
        %v2814 = vld [vmem:[#allocation2 + $0xbc] sm:$0x1]
        %v2815 = vld [vmem:[#allocation2 + $0xc0] sm:$0xf]
        %v2816 = vld [vmem:[#allocation2 + $0xc4] sm:$0xf]
        %v2817 = vld [vmem:[#allocation2 + $0xc8] sm:$0x1]
        %v2818 = vld [vmem:[#allocation2 + $0xcc] sm:$0xf]
        %v2819 = vld [vmem:[#allocation2 + $0xd0] sm:$0xf]
        %v2820 = vld [vmem:[#allocation2 + $0xd4] sm:$0x1]
        %v2853 = vunpack.c.l.b16 %v2767
        %v2854 = vunpack.c.l.b16 %v2768
        %v2855 = vunpack.c.l.b16 %v2770
        %v2856 = vunpack.c.l.b16 %v2771
        %v2857 = vunpack.c.l.b16 %v2773
        %v2858 = vunpack.c.l.b16 %v2774
        %v2859 = vunpack.c.l.b16 %v2776
        %v2860 = vunpack.c.l.b16 %v2777
        %v2861 = vunpack.c.l.b16 %v2779
        %v2862 = vunpack.c.l.b16 %v2780
        %v2863 = vunpack.c.l.b16 %v2782
        %v2864 = vunpack.c.l.b16 %v2783
        %v2865 = vunpack.c.l.b16 %v2785
        %v2866 = vunpack.c.l.b16 %v2786
        %v2867 = vunpack.c.l.b16 %v2788
        %v2868 = vunpack.c.l.b16 %v2789
        %v2869 = vunpack.c.l.b16 %v2791
        %v2870 = vunpack.c.l.b16 %v2792
        %v2871 = vunpack.c.l.b16 %v2794
        %v2872 = vunpack.c.l.b16 %v2795
        %v2873 = vunpack.c.l.b16 %v2797
        %v2874 = vunpack.c.l.b16 %v2798
        %v2875 = vunpack.c.l.b16 %v2800
        %v2876 = vunpack.c.l.b16 %v2801
        %v2877 = vunpack.c.l.b16 %v2803
        %v2878 = vunpack.c.l.b16 %v2804
        %v2879 = vunpack.c.l.b16 %v2806
        %v2880 = vunpack.c.l.b16 %v2807
        %v2881 = vunpack.c.l.b16 %v2809
        %v2882 = vunpack.c.l.b16 %v2810
        %v2883 = vunpack.c.l.b16 %v2812
        %v2884 = vunpack.c.l.b16 %v2813
        %v2885 = vpack.c.b16 %v2854, %v2853
        %v2886 = vpack.c.b16 %v2856, %v2855
        %v2887 = vpack.c.b16 %v2858, %v2857
        %v2888 = vpack.c.b16 %v2860, %v2859
        %v2889 = vpack.c.b16 %v2862, %v2861
        %v2890 = vpack.c.b16 %v2864, %v2863
        %v2891 = vpack.c.b16 %v2866, %v2865
        %v2892 = vpack.c.b16 %v2868, %v2867
        %v2893 = vpack.c.b16 %v2870, %v2869
        %v2894 = vpack.c.b16 %v2872, %v2871
        %v2895 = vpack.c.b16 %v2874, %v2873
        %v2896 = vpack.c.b16 %v2876, %v2875
        %v2897 = vpack.c.b16 %v2878, %v2877
        %v2898 = vpack.c.b16 %v2880, %v2879
        %v2899 = vpack.c.b16 %v2882, %v2881
        %v2900 = vpack.c.b16 %v2884, %v2883
        %v2933 = vunpack.c.l.b16 %v2769
        %v2934 = vunpack.c.l.b16 %v2772
        %v2935 = vunpack.c.l.b16 %v2775
        %v2936 = vunpack.c.l.b16 %v2778
        %v2937 = vunpack.c.l.b16 %v2781
        %v2938 = vunpack.c.l.b16 %v2784
        %v2939 = vunpack.c.l.b16 %v2787
        %v2940 = vunpack.c.l.b16 %v2790
        %v2941 = vunpack.c.l.b16 %v2793
        %v2942 = vunpack.c.l.b16 %v2796
        %v2943 = vunpack.c.l.b16 %v2799
        %v2944 = vunpack.c.l.b16 %v2802
        %v2945 = vunpack.c.l.b16 %v2805
        %v2946 = vunpack.c.l.b16 %v2808
        %v2947 = vunpack.c.l.b16 %v2811
        %v2948 = vunpack.c.l.b16 %v2814
        %v2949 = vpack.c.b16 %v2933, %v2933
        %v2950 = vpack.c.b16 %v2934, %v2934
        %v2951 = vpack.c.b16 %v2935, %v2935
        %v2952 = vpack.c.b16 %v2936, %v2936
        %v2953 = vpack.c.b16 %v2937, %v2937
        %v2954 = vpack.c.b16 %v2938, %v2938
        %v2955 = vpack.c.b16 %v2939, %v2939
        %v2956 = vpack.c.b16 %v2940, %v2940
        %v2957 = vpack.c.b16 %v2941, %v2941
        %v2958 = vpack.c.b16 %v2942, %v2942
        %v2959 = vpack.c.b16 %v2943, %v2943
        %v2960 = vpack.c.b16 %v2944, %v2944
        %v2961 = vpack.c.b16 %v2945, %v2945
        %v2962 = vpack.c.b16 %v2946, %v2946
        %v2963 = vpack.c.b16 %v2947, %v2947
        %v2964 = vpack.c.b16 %v2948, %v2948
        %v2966 = vshrl.u32 %v2885, 16
        %v2968 = vshll.u32 %v2885, 16
        %v2970 = vrot.slane %v2968, 1
        %v2971 = vor.u32 %v2966, %v2970
        %v2973 = vshll.u32 %v2949, 16
        %v2975 = vrot.slane %v2973, 1
        %v2976 = vsel %vm439, %v2971, %v2975
        %v2978 = vshrl.u32 %v2886, 16
        %v2980 = vshll.u32 %v2886, 16
        %v2982 = vrot.slane %v2980, 1
        %v2983 = vor.u32 %v2978, %v2982
        %v2985 = vshll.u32 %v2950, 16
        %v2987 = vrot.slane %v2985, 1
        %v2988 = vsel %vm439, %v2983, %v2987
        %v2990 = vshrl.u32 %v2887, 16
        %v2992 = vshll.u32 %v2887, 16
        %v2994 = vrot.slane %v2992, 1
        %v2995 = vor.u32 %v2990, %v2994
        %v2997 = vshll.u32 %v2951, 16
        %v2999 = vrot.slane %v2997, 1
        %v3000 = vsel %vm439, %v2995, %v2999
        %v3002 = vshrl.u32 %v2888, 16
        %v3004 = vshll.u32 %v2888, 16
        %v3006 = vrot.slane %v3004, 1
        %v3007 = vor.u32 %v3002, %v3006
        %v3009 = vshll.u32 %v2952, 16
        %v3011 = vrot.slane %v3009, 1
        %v3012 = vsel %vm439, %v3007, %v3011
        %v3014 = vshrl.u32 %v2889, 16
        %v3016 = vshll.u32 %v2889, 16
        %v3018 = vrot.slane %v3016, 1
        %v3019 = vor.u32 %v3014, %v3018
        %v3021 = vshll.u32 %v2953, 16
        %v3023 = vrot.slane %v3021, 1
        %v3024 = vsel %vm439, %v3019, %v3023
        %v3026 = vshrl.u32 %v2890, 16
        %v3028 = vshll.u32 %v2890, 16
        %v3030 = vrot.slane %v3028, 1
        %v3031 = vor.u32 %v3026, %v3030
        %v3033 = vshll.u32 %v2954, 16
        %v3035 = vrot.slane %v3033, 1
        %v3036 = vsel %vm439, %v3031, %v3035
        %v3038 = vshrl.u32 %v2891, 16
        %v3040 = vshll.u32 %v2891, 16
        %v3042 = vrot.slane %v3040, 1
        %v3043 = vor.u32 %v3038, %v3042
        %v3045 = vshll.u32 %v2955, 16
        %v3047 = vrot.slane %v3045, 1
        %v3048 = vsel %vm439, %v3043, %v3047
        %v3050 = vshrl.u32 %v2892, 16
        %v3052 = vshll.u32 %v2892, 16
        %v3054 = vrot.slane %v3052, 1
        %v3055 = vor.u32 %v3050, %v3054
        %v3057 = vshll.u32 %v2956, 16
        %v3059 = vrot.slane %v3057, 1
        %v3060 = vsel %vm439, %v3055, %v3059
        %v3062 = vshrl.u32 %v2893, 16
        %v3064 = vshll.u32 %v2893, 16
        %v3066 = vrot.slane %v3064, 1
        %v3067 = vor.u32 %v3062, %v3066
        %v3069 = vshll.u32 %v2957, 16
        %v3071 = vrot.slane %v3069, 1
        %v3072 = vsel %vm439, %v3067, %v3071
        %v3074 = vshrl.u32 %v2894, 16
        %v3076 = vshll.u32 %v2894, 16
        %v3078 = vrot.slane %v3076, 1
        %v3079 = vor.u32 %v3074, %v3078
        %v3081 = vshll.u32 %v2958, 16
        %v3083 = vrot.slane %v3081, 1
        %v3084 = vsel %vm439, %v3079, %v3083
        %v3086 = vshrl.u32 %v2895, 16
        %v3088 = vshll.u32 %v2895, 16
        %v3090 = vrot.slane %v3088, 1
        %v3091 = vor.u32 %v3086, %v3090
        %v3093 = vshll.u32 %v2959, 16
        %v3095 = vrot.slane %v3093, 1
        %v3096 = vsel %vm439, %v3091, %v3095
        %v3098 = vshrl.u32 %v2896, 16
        %v3100 = vshll.u32 %v2896, 16
        %v3102 = vrot.slane %v3100, 1
        %v3103 = vor.u32 %v3098, %v3102
        %v3105 = vshll.u32 %v2960, 16
        %v3107 = vrot.slane %v3105, 1
        %v3108 = vsel %vm439, %v3103, %v3107
        %v3110 = vshrl.u32 %v2897, 16
        %v3112 = vshll.u32 %v2897, 16
        %v3114 = vrot.slane %v3112, 1
        %v3115 = vor.u32 %v3110, %v3114
        %v3117 = vshll.u32 %v2961, 16
        %v3119 = vrot.slane %v3117, 1
        %v3120 = vsel %vm439, %v3115, %v3119
        %v3122 = vshrl.u32 %v2898, 16
        %v3124 = vshll.u32 %v2898, 16
        %v3126 = vrot.slane %v3124, 1
        %v3127 = vor.u32 %v3122, %v3126
        %v3129 = vshll.u32 %v2962, 16
        %v3131 = vrot.slane %v3129, 1
        %v3132 = vsel %vm439, %v3127, %v3131
        %v3134 = vshrl.u32 %v2899, 16
        %v3136 = vshll.u32 %v2899, 16
        %v3138 = vrot.slane %v3136, 1
        %v3139 = vor.u32 %v3134, %v3138
        %v3141 = vshll.u32 %v2963, 16
        %v3143 = vrot.slane %v3141, 1
        %v3144 = vsel %vm439, %v3139, %v3143
        %v3146 = vshrl.u32 %v2900, 16
        %v3148 = vshll.u32 %v2900, 16
        %v3150 = vrot.slane %v3148, 1
        %v3151 = vor.u32 %v3146, %v3150
        %v3153 = vshll.u32 %v2964, 16
        %v3155 = vrot.slane %v3153, 1
        %v3156 = vsel %vm439, %v3151, %v3155
        %v3173 = vrot.slane %v2885, 1
        %v3174 = vrot.slane %v2949, 1
        %v3175 = vsel %vm648, %v3173, %v3174
        %v3176 = vrot.slane %v2886, 1
        %v3177 = vrot.slane %v2950, 1
        %v3178 = vsel %vm648, %v3176, %v3177
        %v3179 = vrot.slane %v2887, 1
        %v3180 = vrot.slane %v2951, 1
        %v3181 = vsel %vm648, %v3179, %v3180
        %v3182 = vrot.slane %v2888, 1
        %v3183 = vrot.slane %v2952, 1
        %v3184 = vsel %vm648, %v3182, %v3183
        %v3185 = vrot.slane %v2889, 1
        %v3186 = vrot.slane %v2953, 1
        %v3187 = vsel %vm648, %v3185, %v3186
        %v3188 = vrot.slane %v2890, 1
        %v3189 = vrot.slane %v2954, 1
        %v3190 = vsel %vm648, %v3188, %v3189
        %v3191 = vrot.slane %v2891, 1
        %v3192 = vrot.slane %v2955, 1
        %v3193 = vsel %vm648, %v3191, %v3192
        %v3194 = vrot.slane %v2892, 1
        %v3195 = vrot.slane %v2956, 1
        %v3196 = vsel %vm648, %v3194, %v3195
        %v3197 = vrot.slane %v2893, 1
        %v3198 = vrot.slane %v2957, 1
        %v3199 = vsel %vm648, %v3197, %v3198
        %v3200 = vrot.slane %v2894, 1
        %v3201 = vrot.slane %v2958, 1
        %v3202 = vsel %vm648, %v3200, %v3201
        %v3203 = vrot.slane %v2895, 1
        %v3204 = vrot.slane %v2959, 1
        %v3205 = vsel %vm648, %v3203, %v3204
        %v3206 = vrot.slane %v2896, 1
        %v3207 = vrot.slane %v2960, 1
        %v3208 = vsel %vm648, %v3206, %v3207
        %v3209 = vrot.slane %v2897, 1
        %v3210 = vrot.slane %v2961, 1
        %v3211 = vsel %vm648, %v3209, %v3210
        %v3212 = vrot.slane %v2898, 1
        %v3213 = vrot.slane %v2962, 1
        %v3214 = vsel %vm648, %v3212, %v3213
        %v3215 = vrot.slane %v2899, 1
        %v3216 = vrot.slane %v2963, 1
        %v3217 = vsel %vm648, %v3215, %v3216
        %v3218 = vrot.slane %v2900, 1
        %v3219 = vrot.slane %v2964, 1
        %v3220 = vsel %vm648, %v3218, %v3219
        %v3239 = vunpack.c.l.b16 %v2815
        %v3240 = vunpack.c.l.b16 %v2816
        %v3241 = vpack.c.b16 %v3240, %v3239
        %v3244 = vunpack.c.l.b16 %v2817
        %v3245 = vpack.c.b16 %v3244, %v3244
        %v3247 = vshrl.u32 %v3241, 16
        %v3249 = vshll.u32 %v3241, 16
        %v3251 = vrot.slane %v3249, 1
        %v3252 = vor.u32 %v3247, %v3251
        %v3254 = vshll.u32 %v3245, 16
        %v3256 = vrot.slane %v3254, 1
        %v3257 = vsel %vm439, %v3252, %v3256
        %v3259 = vrot.slane %v3241, 1
        %v3260 = vrot.slane %v3245, 1
        %v3261 = vsel %vm648, %v3259, %v3260
        %v3265 = vunpack.c.l.b16 %v2818
        %v3266 = vunpack.c.l.b16 %v2819
        %v3267 = vpack.c.b16 %v3266, %v3265
        %v3270 = vunpack.c.l.b16 %v2820
        %v3271 = vpack.c.b16 %v3270, %v3270
        %v3273 = vshrl.u32 %v3267, 16
        %v3275 = vshll.u32 %v3267, 16
        %v3277 = vrot.slane %v3275, 1
        %v3278 = vor.u32 %v3273, %v3277
        %v3280 = vshll.u32 %v3271, 16
        %v3282 = vrot.slane %v3280, 1
        %v3283 = vsel %vm439, %v3278, %v3282
        %v3285 = vrot.slane %v3267, 1
        %v3286 = vrot.slane %v3271, 1
        %v3287 = vsel %vm648, %v3285, %v3286
        %v3289 = vld [vmem:[#allocation3] sm:$0xf]
        %v3290 = vld [vmem:[#allocation3 + $0x4] sm:$0xf]
        %v3291 = vld [vmem:[#allocation3 + $0x8] sm:$0xf]
        %v3292 = vld [vmem:[#allocation3 + $0xc] sm:$0xf]
        %v3293 = vld [vmem:[#allocation3 + $0x10] sm:$0xf]
        %v3294 = vld [vmem:[#allocation3 + $0x14] sm:$0xf]
        %v3295 = vld [vmem:[#allocation3 + $0x18] sm:$0xf]
        %v3296 = vld [vmem:[#allocation3 + $0x1c] sm:$0xf]
        %v3297 = vld [vmem:[#allocation3 + $0x20] sm:$0xf]
        %v3298 = vld [vmem:[#allocation3 + $0x24] sm:$0xf]
        %v3299 = vld [vmem:[#allocation3 + $0x28] sm:$0xf]
        %v3300 = vld [vmem:[#allocation3 + $0x2c] sm:$0xf]
        %v3301 = vld [vmem:[#allocation3 + $0x30] sm:$0xf]
        %v3302 = vld [vmem:[#allocation3 + $0x34] sm:$0xf]
        %v3303 = vld [vmem:[#allocation3 + $0x38] sm:$0xf]
        %v3304 = vld [vmem:[#allocation3 + $0x3c] sm:$0xf]
        %v3305 = vld [vmem:[#allocation3 + $0x40] sm:$0xf]
        %v3306 = vld [vmem:[#allocation3 + $0x44] sm:$0xf]
        %v3307 = vld [vmem:[#allocation3 + $0x48] sm:$0xf]
        %v3308 = vld [vmem:[#allocation3 + $0x4c] sm:$0xf]
        %v3309 = vld [vmem:[#allocation3 + $0x50] sm:$0xf]
        %v3310 = vld [vmem:[#allocation3 + $0x54] sm:$0xf]
        %v3311 = vld [vmem:[#allocation3 + $0x58] sm:$0xf]
        %v3312 = vld [vmem:[#allocation3 + $0x5c] sm:$0xf]
        %v3313 = vld [vmem:[#allocation3 + $0x60] sm:$0xf]
        %v3314 = vld [vmem:[#allocation3 + $0x64] sm:$0xf]
        %v3315 = vld [vmem:[#allocation3 + $0x68] sm:$0xf]
        %v3316 = vld [vmem:[#allocation3 + $0x6c] sm:$0xf]
        %v3317 = vld [vmem:[#allocation3 + $0x70] sm:$0xf]
        %v3318 = vld [vmem:[#allocation3 + $0x74] sm:$0xf]
        %v3319 = vld [vmem:[#allocation3 + $0x78] sm:$0xf]
        %v3320 = vld [vmem:[#allocation3 + $0x7c] sm:$0xf]
        %v3321 = vld [vmem:[#allocation3 + $0x80] sm:$0xf]
        %v3322 = vld [vmem:[#allocation3 + $0x84] sm:$0xf]
        %v3323 = vld [vmem:[#allocation3 + $0x88] sm:$0xf]
        %v3324 = vld [vmem:[#allocation3 + $0x8c] sm:$0xf]
        %v3325 = vld [vmem:[#allocation3 + $0x90] sm:$0xf]
        %v3326 = vld [vmem:[#allocation3 + $0x94] sm:$0xf]
        %v3327 = vld [vmem:[#allocation3 + $0x98] sm:$0xf]
        %v3328 = vld [vmem:[#allocation3 + $0x9c] sm:$0xf]
        %v3329 = vld [vmem:[#allocation3 + $0xa0] sm:$0xf]
        %v3330 = vld [vmem:[#allocation3 + $0xa4] sm:$0xf]
        %v3331 = vld [vmem:[#allocation3 + $0xa8] sm:$0xf]
        %v3332 = vld [vmem:[#allocation3 + $0xac] sm:$0xf]
        %v3333 = vld [vmem:[#allocation3 + $0xb0] sm:$0xf]
        %v3334 = vld [vmem:[#allocation3 + $0xb4] sm:$0xf]
        %v3335 = vld [vmem:[#allocation3 + $0xb8] sm:$0xf]
        %v3336 = vld [vmem:[#allocation3 + $0xbc] sm:$0xf]
        %v3337 = vld [vmem:[#allocation3 + $0xc0] sm:$0xf]
        %v3338 = vld [vmem:[#allocation3 + $0xc4] sm:$0xf]
        %v3339 = vld [vmem:[#allocation3 + $0xc8] sm:$0xf]
        %v3340 = vld [vmem:[#allocation3 + $0xcc] sm:$0xf]
        %v3341 = vld [vmem:[#allocation3 + $0xd0] sm:$0xf]
        %v3342 = vld [vmem:[#allocation3 + $0xd4] sm:$0xf]
        %v3343 = vld [vmem:[#allocation3 + $0xd8] sm:$0xf]
        %v3344 = vld [vmem:[#allocation3 + $0xdc] sm:$0xf]
        %v3345 = vld [vmem:[#allocation3 + $0xe0] sm:$0xf]
        %v3346 = vld [vmem:[#allocation3 + $0xe4] sm:$0xf]
        %v3347 = vld [vmem:[#allocation3 + $0xe8] sm:$0xf]
        %v3348 = vld [vmem:[#allocation3 + $0xec] sm:$0xf]
        %v3349 = vld [vmem:[#allocation3 + $0xf0] sm:$0xf]
        %v3350 = vld [vmem:[#allocation3 + $0xf4] sm:$0xf]
        %v3351 = vld [vmem:[#allocation3 + $0xf8] sm:$0xf]
        %v3352 = vld [vmem:[#allocation3 + $0xfc] sm:$0xf]
        %v3353 = vld [vmem:[#allocation3 + $0x100] sm:$0xf]
        %v3354 = vld [vmem:[#allocation3 + $0x104] sm:$0xf]
        %v3355 = vld [vmem:[#allocation3 + $0x108] sm:$0xf]
        %v3356 = vld [vmem:[#allocation3 + $0x10c] sm:$0xf]
        %v3357 = vld [vmem:[#allocation3 + $0x110] sm:$0xf]
        %v3358 = vld [vmem:[#allocation3 + $0x114] sm:$0xf]
        %v3359 = vld [vmem:[#allocation3 + $0x118] sm:$0xf]
        %v3360 = vld [vmem:[#allocation3 + $0x11c] sm:$0xf]
        %v3361 = vld [vmem:[#allocation3 + $0x120] sm:$0xf]
        %v3362 = vld [vmem:[#allocation3 + $0x124] sm:$0xf]
        %v3363 = vld [vmem:[#allocation3 + $0x128] sm:$0xf]
        %v3364 = vld [vmem:[#allocation3 + $0x12c] sm:$0xf]
        %v3365 = vld [vmem:[#allocation3 + $0x130] sm:$0xf]
        %v3366 = vld [vmem:[#allocation3 + $0x134] sm:$0xf]
        %v3367 = vld [vmem:[#allocation3 + $0x138] sm:$0xf]
        %v3368 = vld [vmem:[#allocation3 + $0x13c] sm:$0xf]
        %v3369 = vld [vmem:[#allocation3 + $0x140] sm:$0xf]
        %v3370 = vld [vmem:[#allocation3 + $0x144] sm:$0xf]
        %v3371 = vld [vmem:[#allocation3 + $0x148] sm:$0xf]
        %v3372 = vld [vmem:[#allocation3 + $0x14c] sm:$0xf]
        %v3373 = vld [vmem:[#allocation3 + $0x150] sm:$0xf]
        %v3374 = vld [vmem:[#allocation3 + $0x154] sm:$0xf]
        %v3375 = vld [vmem:[#allocation3 + $0x158] sm:$0xf]
        %v3376 = vld [vmem:[#allocation3 + $0x15c] sm:$0xf]
        %v3377 = vld [vmem:[#allocation3 + $0x160] sm:$0xf]
        %v3378 = vld [vmem:[#allocation3 + $0x164] sm:$0xf]
        %v3379 = vld [vmem:[#allocation3 + $0x168] sm:$0xf]
        %v3380 = vld [vmem:[#allocation3 + $0x16c] sm:$0xf]
        %v3381 = vld [vmem:[#allocation3 + $0x170] sm:$0xf]
        %v3382 = vld [vmem:[#allocation3 + $0x174] sm:$0xf]
        %v3383 = vld [vmem:[#allocation3 + $0x178] sm:$0xf]
        %v3384 = vld [vmem:[#allocation3 + $0x17c] sm:$0xf]
        %v3385 = vld [vmem:[#allocation3 + $0x180] sm:$0xf]
        %v3386 = vld [vmem:[#allocation3 + $0x184] sm:$0xf]
        %v3387 = vld [vmem:[#allocation3 + $0x188] sm:$0xf]
        %v3388 = vld [vmem:[#allocation3 + $0x18c] sm:$0xf]
        %v3389 = vld [vmem:[#allocation3 + $0x190] sm:$0xf]
        %v3390 = vld [vmem:[#allocation3 + $0x194] sm:$0xf]
        %v3391 = vld [vmem:[#allocation3 + $0x198] sm:$0xf]
        %v3392 = vld [vmem:[#allocation3 + $0x19c] sm:$0xf]
        %v3393 = vld [vmem:[#allocation3 + $0x1a0] sm:$0xf]
        %v3394 = vld [vmem:[#allocation3 + $0x1a4] sm:$0xf]
        %v3395 = vld [vmem:[#allocation3 + $0x1a8] sm:$0xf]
        %v3396 = vld [vmem:[#allocation3 + $0x1ac] sm:$0xf]
        %v3397 = vld [vmem:[#allocation3 + $0x1b0] sm:$0xf]
        %v3398 = vld [vmem:[#allocation3 + $0x1b4] sm:$0xf]
        %v3399 = vld [vmem:[#allocation3 + $0x1b8] sm:$0xf]
        %v3400 = vld [vmem:[#allocation3 + $0x1bc] sm:$0xf]
        %v3401 = vld [vmem:[#allocation3 + $0x1c0] sm:$0xf]
        %v3402 = vld [vmem:[#allocation3 + $0x1c4] sm:$0xf]
        %v3403 = vld [vmem:[#allocation3 + $0x1c8] sm:$0xf]
        %v3404 = vld [vmem:[#allocation3 + $0x1cc] sm:$0xf]
        %v3405 = vld [vmem:[#allocation3 + $0x1d0] sm:$0xf]
        %v3406 = vld [vmem:[#allocation3 + $0x1d4] sm:$0xf]
        %v3407 = vld [vmem:[#allocation3 + $0x1d8] sm:$0xf]
        %v3408 = vld [vmem:[#allocation3 + $0x1dc] sm:$0xf]
        %v3409 = vld [vmem:[#allocation3 + $0x1e0] sm:$0xf]
        %v3410 = vld [vmem:[#allocation3 + $0x1e4] sm:$0xf]
        %v3411 = vld [vmem:[#allocation3 + $0x1e8] sm:$0xf]
        %v3412 = vld [vmem:[#allocation3 + $0x1ec] sm:$0xf]
        %v3413 = vld [vmem:[#allocation3 + $0x1f0] sm:$0xf]
        %v3414 = vld [vmem:[#allocation3 + $0x1f4] sm:$0xf]
        %v3415 = vld [vmem:[#allocation3 + $0x1f8] sm:$0xf]
        %v3416 = vld [vmem:[#allocation3 + $0x1fc] sm:$0xf]
        %v3417 = vld [vmem:[#allocation3 + $0x200] sm:$0xf]
        %v3418 = vld [vmem:[#allocation3 + $0x204] sm:$0xf]
        %v3419 = vld [vmem:[#allocation3 + $0x208] sm:$0xf]
        %v3420 = vld [vmem:[#allocation3 + $0x20c] sm:$0xf]
        %v3421 = vld [vmem:[#allocation3 + $0x210] sm:$0xf]
        %v3422 = vld [vmem:[#allocation3 + $0x214] sm:$0xf]
        %v3423 = vld [vmem:[#allocation3 + $0x218] sm:$0xf]
        %v3424 = vld [vmem:[#allocation3 + $0x21c] sm:$0xf]
        %v3425 = vld [vmem:[#allocation3 + $0x220] sm:$0xf]
        %v3426 = vld [vmem:[#allocation3 + $0x224] sm:$0xf]
        %v3427 = vld [vmem:[#allocation3 + $0x228] sm:$0xf]
        %v3428 = vld [vmem:[#allocation3 + $0x22c] sm:$0xf]
        %v3429 = vld [vmem:[#allocation3 + $0x230] sm:$0xf]
        %v3430 = vld [vmem:[#allocation3 + $0x234] sm:$0xf]
        %v3431 = vld [vmem:[#allocation3 + $0x238] sm:$0xf]
        %v3432 = vld [vmem:[#allocation3 + $0x23c] sm:$0xf]
        %vm3433 = vsmask.f32 3328
        %vm3434 = vsmask.f32 7440
        %vm3435 = vmor %vm3433, %vm3434
        %v3437 = vshrl.u32 %v244, 16
        %v3439 = vrot.slane %v3437, 4
        %v3440 = vshll.u32 %v244, 16
        %v3442 = vrot.slane %v3440, 5
        %v3443 = vor.u32 %v3439, %v3442
        %v3444 = vrot.slane %v3443, 4
        %v3446 = vshll.u32 %v245, 16
        %v3448 = vrot.slane %v3446, 5
        %v3449 = vsel %vm3435, %v3444, %v3448
        %v3450 = vshrl.u32 %v245, 16
        %v3452 = vrot.slane %v3450, 4
        %v3453 = vor.u32 %v3452, %v3448
        %v3454 = vrot.slane %v3453, 4
        %v3456 = vshll.u32 %v246, 16
        %v3458 = vrot.slane %v3456, 5
        %v3459 = vsel %vm3435, %v3454, %v3458
        %v3461 = vshrl.u32 %v247, 16
        %v3463 = vrot.slane %v3461, 4
        %v3464 = vshll.u32 %v247, 16
        %v3466 = vrot.slane %v3464, 5
        %v3467 = vor.u32 %v3463, %v3466
        %v3468 = vrot.slane %v3467, 4
        %v3470 = vshll.u32 %v248, 16
        %v3472 = vrot.slane %v3470, 5
        %v3473 = vsel %vm3435, %v3468, %v3472
        %v3474 = vshrl.u32 %v248, 16
        %v3476 = vrot.slane %v3474, 4
        %v3477 = vor.u32 %v3476, %v3472
        %v3478 = vrot.slane %v3477, 4
        %v3480 = vshll.u32 %v249, 16
        %v3482 = vrot.slane %v3480, 5
        %v3483 = vsel %vm3435, %v3478, %v3482
        %v3485 = vshrl.u32 %v250, 16
        %v3487 = vrot.slane %v3485, 4
        %v3488 = vshll.u32 %v250, 16
        %v3490 = vrot.slane %v3488, 5
        %v3491 = vor.u32 %v3487, %v3490
        %v3492 = vrot.slane %v3491, 4
        %v3494 = vshll.u32 %v251, 16
        %v3496 = vrot.slane %v3494, 5
        %v3497 = vsel %vm3435, %v3492, %v3496
        %v3498 = vshrl.u32 %v251, 16
        %v3500 = vrot.slane %v3498, 4
        %v3501 = vor.u32 %v3500, %v3496
        %v3502 = vrot.slane %v3501, 4
        %v3504 = vshll.u32 %v252, 16
        %v3506 = vrot.slane %v3504, 5
        %v3507 = vsel %vm3435, %v3502, %v3506
        %v3509 = vshrl.u32 %v253, 16
        %v3511 = vrot.slane %v3509, 4
        %v3512 = vshll.u32 %v253, 16
        %v3514 = vrot.slane %v3512, 5
        %v3515 = vor.u32 %v3511, %v3514
        %v3516 = vrot.slane %v3515, 4
        %v3518 = vshll.u32 %v254, 16
        %v3520 = vrot.slane %v3518, 5
        %v3521 = vsel %vm3435, %v3516, %v3520
        %v3522 = vshrl.u32 %v254, 16
        %v3524 = vrot.slane %v3522, 4
        %v3525 = vor.u32 %v3524, %v3520
        %v3526 = vrot.slane %v3525, 4
        %v3528 = vshll.u32 %v255, 16
        %v3530 = vrot.slane %v3528, 5
        %v3531 = vsel %vm3435, %v3526, %v3530
        %v3533 = vshrl.u32 %v256, 16
        %v3535 = vrot.slane %v3533, 4
        %v3536 = vshll.u32 %v256, 16
        %v3538 = vrot.slane %v3536, 5
        %v3539 = vor.u32 %v3535, %v3538
        %v3540 = vrot.slane %v3539, 4
        %v3542 = vshll.u32 %v257, 16
        %v3544 = vrot.slane %v3542, 5
        %v3545 = vsel %vm3435, %v3540, %v3544
        %v3546 = vshrl.u32 %v257, 16
        %v3548 = vrot.slane %v3546, 4
        %v3549 = vor.u32 %v3548, %v3544
        %v3550 = vrot.slane %v3549, 4
        %v3552 = vshll.u32 %v258, 16
        %v3554 = vrot.slane %v3552, 5
        %v3555 = vsel %vm3435, %v3550, %v3554
        %v3557 = vshrl.u32 %v259, 16
        %v3559 = vrot.slane %v3557, 4
        %v3560 = vshll.u32 %v259, 16
        %v3562 = vrot.slane %v3560, 5
        %v3563 = vor.u32 %v3559, %v3562
        %v3564 = vrot.slane %v3563, 4
        %v3566 = vshll.u32 %v260, 16
        %v3568 = vrot.slane %v3566, 5
        %v3569 = vsel %vm3435, %v3564, %v3568
        %v3570 = vshrl.u32 %v260, 16
        %v3572 = vrot.slane %v3570, 4
        %v3573 = vor.u32 %v3572, %v3568
        %v3574 = vrot.slane %v3573, 4
        %v3576 = vshll.u32 %v261, 16
        %v3578 = vrot.slane %v3576, 5
        %v3579 = vsel %vm3435, %v3574, %v3578
        %v3581 = vshrl.u32 %v262, 16
        %v3583 = vrot.slane %v3581, 4
        %v3584 = vshll.u32 %v262, 16
        %v3586 = vrot.slane %v3584, 5
        %v3587 = vor.u32 %v3583, %v3586
        %v3588 = vrot.slane %v3587, 4
        %v3590 = vshll.u32 %v263, 16
        %v3592 = vrot.slane %v3590, 5
        %v3593 = vsel %vm3435, %v3588, %v3592
        %v3594 = vshrl.u32 %v263, 16
        %v3596 = vrot.slane %v3594, 4
        %v3597 = vor.u32 %v3596, %v3592
        %v3598 = vrot.slane %v3597, 4
        %v3600 = vshll.u32 %v264, 16
        %v3602 = vrot.slane %v3600, 5
        %v3603 = vsel %vm3435, %v3598, %v3602
        %v3605 = vshrl.u32 %v265, 16
        %v3607 = vrot.slane %v3605, 4
        %v3608 = vshll.u32 %v265, 16
        %v3610 = vrot.slane %v3608, 5
        %v3611 = vor.u32 %v3607, %v3610
        %v3612 = vrot.slane %v3611, 4
        %v3614 = vshll.u32 %v266, 16
        %v3616 = vrot.slane %v3614, 5
        %v3617 = vsel %vm3435, %v3612, %v3616
        %v3618 = vshrl.u32 %v266, 16
        %v3620 = vrot.slane %v3618, 4
        %v3621 = vor.u32 %v3620, %v3616
        %v3622 = vrot.slane %v3621, 4
        %v3624 = vshll.u32 %v267, 16
        %v3626 = vrot.slane %v3624, 5
        %v3627 = vsel %vm3435, %v3622, %v3626
        %v3629 = vshrl.u32 %v268, 16
        %v3631 = vrot.slane %v3629, 4
        %v3632 = vshll.u32 %v268, 16
        %v3634 = vrot.slane %v3632, 5
        %v3635 = vor.u32 %v3631, %v3634
        %v3636 = vrot.slane %v3635, 4
        %v3638 = vshll.u32 %v269, 16
        %v3640 = vrot.slane %v3638, 5
        %v3641 = vsel %vm3435, %v3636, %v3640
        %v3642 = vshrl.u32 %v269, 16
        %v3644 = vrot.slane %v3642, 4
        %v3645 = vor.u32 %v3644, %v3640
        %v3646 = vrot.slane %v3645, 4
        %v3648 = vshll.u32 %v270, 16
        %v3650 = vrot.slane %v3648, 5
        %v3651 = vsel %vm3435, %v3646, %v3650
        %v3653 = vshrl.u32 %v271, 16
        %v3655 = vrot.slane %v3653, 4
        %v3656 = vshll.u32 %v271, 16
        %v3658 = vrot.slane %v3656, 5
        %v3659 = vor.u32 %v3655, %v3658
        %v3660 = vrot.slane %v3659, 4
        %v3662 = vshll.u32 %v272, 16
        %v3664 = vrot.slane %v3662, 5
        %v3665 = vsel %vm3435, %v3660, %v3664
        %v3666 = vshrl.u32 %v272, 16
        %v3668 = vrot.slane %v3666, 4
        %v3669 = vor.u32 %v3668, %v3664
        %v3670 = vrot.slane %v3669, 4
        %v3672 = vshll.u32 %v273, 16
        %v3674 = vrot.slane %v3672, 5
        %v3675 = vsel %vm3435, %v3670, %v3674
        %v3677 = vshrl.u32 %v274, 16
        %v3679 = vrot.slane %v3677, 4
        %v3680 = vshll.u32 %v274, 16
        %v3682 = vrot.slane %v3680, 5
        %v3683 = vor.u32 %v3679, %v3682
        %v3684 = vrot.slane %v3683, 4
        %v3686 = vshll.u32 %v275, 16
        %v3688 = vrot.slane %v3686, 5
        %v3689 = vsel %vm3435, %v3684, %v3688
        %v3690 = vshrl.u32 %v275, 16
        %v3692 = vrot.slane %v3690, 4
        %v3693 = vor.u32 %v3692, %v3688
        %v3694 = vrot.slane %v3693, 4
        %v3696 = vshll.u32 %v276, 16
        %v3698 = vrot.slane %v3696, 5
        %v3699 = vsel %vm3435, %v3694, %v3698
        %v3701 = vshrl.u32 %v277, 16
        %v3703 = vrot.slane %v3701, 4
        %v3704 = vshll.u32 %v277, 16
        %v3706 = vrot.slane %v3704, 5
        %v3707 = vor.u32 %v3703, %v3706
        %v3708 = vrot.slane %v3707, 4
        %v3710 = vshll.u32 %v278, 16
        %v3712 = vrot.slane %v3710, 5
        %v3713 = vsel %vm3435, %v3708, %v3712
        %v3714 = vshrl.u32 %v278, 16
        %v3716 = vrot.slane %v3714, 4
        %v3717 = vor.u32 %v3716, %v3712
        %v3718 = vrot.slane %v3717, 4
        %v3720 = vshll.u32 %v279, 16
        %v3722 = vrot.slane %v3720, 5
        %v3723 = vsel %vm3435, %v3718, %v3722
        %v3725 = vshrl.u32 %v280, 16
        %v3727 = vrot.slane %v3725, 4
        %v3728 = vshll.u32 %v280, 16
        %v3730 = vrot.slane %v3728, 5
        %v3731 = vor.u32 %v3727, %v3730
        %v3732 = vrot.slane %v3731, 4
        %v3734 = vshll.u32 %v281, 16
        %v3736 = vrot.slane %v3734, 5
        %v3737 = vsel %vm3435, %v3732, %v3736
        %v3738 = vshrl.u32 %v281, 16
        %v3740 = vrot.slane %v3738, 4
        %v3741 = vor.u32 %v3740, %v3736
        %v3742 = vrot.slane %v3741, 4
        %v3744 = vshll.u32 %v282, 16
        %v3746 = vrot.slane %v3744, 5
        %v3747 = vsel %vm3435, %v3742, %v3746
        %v3749 = vshrl.u32 %v283, 16
        %v3751 = vrot.slane %v3749, 4
        %v3752 = vshll.u32 %v283, 16
        %v3754 = vrot.slane %v3752, 5
        %v3755 = vor.u32 %v3751, %v3754
        %v3756 = vrot.slane %v3755, 4
        %v3758 = vshll.u32 %v284, 16
        %v3760 = vrot.slane %v3758, 5
        %v3761 = vsel %vm3435, %v3756, %v3760
        %v3762 = vshrl.u32 %v284, 16
        %v3764 = vrot.slane %v3762, 4
        %v3765 = vor.u32 %v3764, %v3760
        %v3766 = vrot.slane %v3765, 4
        %v3768 = vshll.u32 %v285, 16
        %v3770 = vrot.slane %v3768, 5
        %v3771 = vsel %vm3435, %v3766, %v3770
        %v3773 = vshrl.u32 %v286, 16
        %v3775 = vrot.slane %v3773, 4
        %v3776 = vshll.u32 %v286, 16
        %v3778 = vrot.slane %v3776, 5
        %v3779 = vor.u32 %v3775, %v3778
        %v3780 = vrot.slane %v3779, 4
        %v3782 = vshll.u32 %v287, 16
        %v3784 = vrot.slane %v3782, 5
        %v3785 = vsel %vm3435, %v3780, %v3784
        %v3786 = vshrl.u32 %v287, 16
        %v3788 = vrot.slane %v3786, 4
        %v3789 = vor.u32 %v3788, %v3784
        %v3790 = vrot.slane %v3789, 4
        %v3792 = vshll.u32 %v288, 16
        %v3794 = vrot.slane %v3792, 5
        %v3795 = vsel %vm3435, %v3790, %v3794
        %v3797 = vshrl.u32 %v289, 16
        %v3799 = vrot.slane %v3797, 4
        %v3800 = vshll.u32 %v289, 16
        %v3802 = vrot.slane %v3800, 5
        %v3803 = vor.u32 %v3799, %v3802
        %v3804 = vrot.slane %v3803, 4
        %v3806 = vshll.u32 %v290, 16
        %v3808 = vrot.slane %v3806, 5
        %v3809 = vsel %vm3435, %v3804, %v3808
        %v3810 = vshrl.u32 %v290, 16
        %v3812 = vrot.slane %v3810, 4
        %v3813 = vor.u32 %v3812, %v3808
        %v3814 = vrot.slane %v3813, 4
        %v3816 = vshll.u32 %v291, 16
        %v3818 = vrot.slane %v3816, 5
        %v3819 = vsel %vm3435, %v3814, %v3818
        %v3852 = vunpack.c.l.bf16 %v3449
        %v3853 = vunpack.c.l.bf16 %v3459
        %v3854 = vunpack.c.l.bf16 %v3473
        %v3855 = vunpack.c.l.bf16 %v3483
        %v3856 = vunpack.c.l.bf16 %v3497
        %v3857 = vunpack.c.l.bf16 %v3507
        %v3858 = vunpack.c.l.bf16 %v3521
        %v3859 = vunpack.c.l.bf16 %v3531
        %v3860 = vunpack.c.l.bf16 %v3545
        %v3861 = vunpack.c.l.bf16 %v3555
        %v3862 = vunpack.c.l.bf16 %v3569
        %v3863 = vunpack.c.l.bf16 %v3579
        %v3864 = vunpack.c.l.bf16 %v3593
        %v3865 = vunpack.c.l.bf16 %v3603
        %v3866 = vunpack.c.l.bf16 %v3617
        %v3867 = vunpack.c.l.bf16 %v3627
        %v3868 = vunpack.c.l.bf16 %v3641
        %v3869 = vunpack.c.l.bf16 %v3651
        %v3870 = vunpack.c.l.bf16 %v3665
        %v3871 = vunpack.c.l.bf16 %v3675
        %v3872 = vunpack.c.l.bf16 %v3689
        %v3873 = vunpack.c.l.bf16 %v3699
        %v3874 = vunpack.c.l.bf16 %v3713
        %v3875 = vunpack.c.l.bf16 %v3723
        %v3876 = vunpack.c.l.bf16 %v3737
        %v3877 = vunpack.c.l.bf16 %v3747
        %v3878 = vunpack.c.l.bf16 %v3761
        %v3879 = vunpack.c.l.bf16 %v3771
        %v3880 = vunpack.c.l.bf16 %v3785
        %v3881 = vunpack.c.l.bf16 %v3795
        %v3882 = vunpack.c.l.bf16 %v3809
        %v3883 = vunpack.c.l.bf16 %v3819
        %v3884 = vld [vmem:[%s4] sm:$0x1]
        %v3886 = vperm.slane %v3884, 0
        %v4032 = vunpack.c.l.b16 %v3289
        %v4033 = vunpack.c.l.b16 %v3290
        %v4034 = vunpack.c.l.b16 %v3291
        %v4035 = vunpack.c.l.b16 %v3292
        %v4036 = vunpack.c.l.b16 %v3293
        %v4037 = vunpack.c.l.b16 %v3294
        %v4038 = vunpack.c.l.b16 %v3295
        %v4039 = vunpack.c.l.b16 %v3296
        %v4040 = vunpack.c.l.b16 %v3297
        %v4041 = vunpack.c.l.b16 %v3298
        %v4042 = vunpack.c.l.b16 %v3299
        %v4043 = vunpack.c.l.b16 %v3300
        %v4044 = vunpack.c.l.b16 %v3301
        %v4045 = vunpack.c.l.b16 %v3302
        %v4046 = vunpack.c.l.b16 %v3303
        %v4047 = vunpack.c.l.b16 %v3304
        %v4048 = vunpack.c.l.b16 %v3305
        %v4049 = vunpack.c.l.b16 %v3306
        %v4050 = vunpack.c.l.b16 %v3307
        %v4051 = vunpack.c.l.b16 %v3308
        %v4052 = vunpack.c.l.b16 %v3309
        %v4053 = vunpack.c.l.b16 %v3310
        %v4054 = vunpack.c.l.b16 %v3311
        %v4055 = vunpack.c.l.b16 %v3312
        %v4056 = vunpack.c.l.b16 %v3313
        %v4057 = vunpack.c.l.b16 %v3314
        %v4058 = vunpack.c.l.b16 %v3315
        %v4059 = vunpack.c.l.b16 %v3316
        %v4060 = vunpack.c.l.b16 %v3317
        %v4061 = vunpack.c.l.b16 %v3318
        %v4062 = vunpack.c.l.b16 %v3319
        %v4063 = vunpack.c.l.b16 %v3320
        %v4064 = vunpack.c.l.b16 %v3321
        %v4065 = vunpack.c.l.b16 %v3322
        %v4066 = vunpack.c.l.b16 %v3323
        %v4067 = vunpack.c.l.b16 %v3324
        %v4068 = vunpack.c.l.b16 %v3325
        %v4069 = vunpack.c.l.b16 %v3326
        %v4070 = vunpack.c.l.b16 %v3327
        %v4071 = vunpack.c.l.b16 %v3328
        %v4072 = vunpack.c.l.b16 %v3329
        %v4073 = vunpack.c.l.b16 %v3330
        %v4074 = vunpack.c.l.b16 %v3331
        %v4075 = vunpack.c.l.b16 %v3332
        %v4076 = vunpack.c.l.b16 %v3333
        %v4077 = vunpack.c.l.b16 %v3334
        %v4078 = vunpack.c.l.b16 %v3335
        %v4079 = vunpack.c.l.b16 %v3336
        %v4080 = vunpack.c.l.b16 %v3337
        %v4081 = vunpack.c.l.b16 %v3338
        %v4082 = vunpack.c.l.b16 %v3339
        %v4083 = vunpack.c.l.b16 %v3340
        %v4084 = vunpack.c.l.b16 %v3341
        %v4085 = vunpack.c.l.b16 %v3342
        %v4086 = vunpack.c.l.b16 %v3343
        %v4087 = vunpack.c.l.b16 %v3344
        %v4088 = vunpack.c.l.b16 %v3345
        %v4089 = vunpack.c.l.b16 %v3346
        %v4090 = vunpack.c.l.b16 %v3347
        %v4091 = vunpack.c.l.b16 %v3348
        %v4092 = vunpack.c.l.b16 %v3349
        %v4093 = vunpack.c.l.b16 %v3350
        %v4094 = vunpack.c.l.b16 %v3351
        %v4095 = vunpack.c.l.b16 %v3352
        %v4096 = vunpack.c.l.b16 %v3353
        %v4097 = vunpack.c.l.b16 %v3354
        %v4098 = vunpack.c.l.b16 %v3355
        %v4099 = vunpack.c.l.b16 %v3356
        %v4100 = vunpack.c.l.b16 %v3357
        %v4101 = vunpack.c.l.b16 %v3358
        %v4102 = vunpack.c.l.b16 %v3359
        %v4103 = vunpack.c.l.b16 %v3360
        %v4104 = vunpack.c.l.b16 %v3361
        %v4105 = vunpack.c.l.b16 %v3362
        %v4106 = vunpack.c.l.b16 %v3363
        %v4107 = vunpack.c.l.b16 %v3364
        %v4108 = vunpack.c.l.b16 %v3365
        %v4109 = vunpack.c.l.b16 %v3366
        %v4110 = vunpack.c.l.b16 %v3367
        %v4111 = vunpack.c.l.b16 %v3368
        %v4112 = vunpack.c.l.b16 %v3369
        %v4113 = vunpack.c.l.b16 %v3370
        %v4114 = vunpack.c.l.b16 %v3371
        %v4115 = vunpack.c.l.b16 %v3372
        %v4116 = vunpack.c.l.b16 %v3373
        %v4117 = vunpack.c.l.b16 %v3374
        %v4118 = vunpack.c.l.b16 %v3375
        %v4119 = vunpack.c.l.b16 %v3376
        %v4120 = vunpack.c.l.b16 %v3377
        %v4121 = vunpack.c.l.b16 %v3378
        %v4122 = vunpack.c.l.b16 %v3379
        %v4123 = vunpack.c.l.b16 %v3380
        %v4124 = vunpack.c.l.b16 %v3381
        %v4125 = vunpack.c.l.b16 %v3382
        %v4126 = vunpack.c.l.b16 %v3383
        %v4127 = vunpack.c.l.b16 %v3384
        %v4128 = vunpack.c.l.b16 %v3385
        %v4129 = vunpack.c.l.b16 %v3386
        %v4130 = vunpack.c.l.b16 %v3387
        %v4131 = vunpack.c.l.b16 %v3388
        %v4132 = vunpack.c.l.b16 %v3389
        %v4133 = vunpack.c.l.b16 %v3390
        %v4134 = vunpack.c.l.b16 %v3391
        %v4135 = vunpack.c.l.b16 %v3392
        %v4136 = vunpack.c.l.b16 %v3393
        %v4137 = vunpack.c.l.b16 %v3394
        %v4138 = vunpack.c.l.b16 %v3395
        %v4139 = vunpack.c.l.b16 %v3396
        %v4140 = vunpack.c.l.b16 %v3397
        %v4141 = vunpack.c.l.b16 %v3398
        %v4142 = vunpack.c.l.b16 %v3399
        %v4143 = vunpack.c.l.b16 %v3400
        %v4144 = vunpack.c.l.b16 %v3401
        %v4145 = vunpack.c.l.b16 %v3402
        %v4146 = vunpack.c.l.b16 %v3403
        %v4147 = vunpack.c.l.b16 %v3404
        %v4148 = vunpack.c.l.b16 %v3405
        %v4149 = vunpack.c.l.b16 %v3406
        %v4150 = vunpack.c.l.b16 %v3407
        %v4151 = vunpack.c.l.b16 %v3408
        %v4152 = vunpack.c.l.b16 %v3409
        %v4153 = vunpack.c.l.b16 %v3410
        %v4154 = vunpack.c.l.b16 %v3411
        %v4155 = vunpack.c.l.b16 %v3412
        %v4156 = vunpack.c.l.b16 %v3413
        %v4157 = vunpack.c.l.b16 %v3414
        %v4158 = vunpack.c.l.b16 %v3415
        %v4159 = vunpack.c.l.b16 %v3416
        %v4160 = vunpack.c.l.b16 %v3417
        %v4161 = vunpack.c.l.b16 %v3418
        %v4162 = vunpack.c.l.b16 %v3419
        %v4163 = vunpack.c.l.b16 %v3420
        %v4164 = vunpack.c.l.b16 %v3421
        %v4165 = vunpack.c.l.b16 %v3422
        %v4166 = vunpack.c.l.b16 %v3423
        %v4167 = vunpack.c.l.b16 %v3424
        %v4168 = vunpack.c.l.b16 %v3425
        %v4169 = vunpack.c.l.b16 %v3426
        %v4170 = vunpack.c.l.b16 %v3427
        %v4171 = vunpack.c.l.b16 %v3428
        %v4172 = vunpack.c.l.b16 %v3429
        %v4173 = vunpack.c.l.b16 %v3430
        %v4174 = vunpack.c.l.b16 %v3431
        %v4175 = vunpack.c.l.b16 %v3432
        %v4176 = vpack.c.b16 %v4033, %v4032
        %v4177 = vpack.c.b16 %v4035, %v4034
        %v4178 = vpack.c.b16 %v4037, %v4036
        %v4179 = vpack.c.b16 %v4039, %v4038
        %v4180 = vpack.c.b16 %v4041, %v4040
        %v4181 = vpack.c.b16 %v4043, %v4042
        %v4182 = vpack.c.b16 %v4045, %v4044
        %v4183 = vpack.c.b16 %v4047, %v4046
        %v4184 = vpack.c.b16 %v4049, %v4048
        %v4185 = vpack.c.b16 %v4051, %v4050
        %v4186 = vpack.c.b16 %v4053, %v4052
        %v4187 = vpack.c.b16 %v4055, %v4054
        %v4188 = vpack.c.b16 %v4057, %v4056
        %v4189 = vpack.c.b16 %v4059, %v4058
        %v4190 = vpack.c.b16 %v4061, %v4060
        %v4191 = vpack.c.b16 %v4063, %v4062
        %v4192 = vpack.c.b16 %v4065, %v4064
        %v4193 = vpack.c.b16 %v4067, %v4066
        %v4194 = vpack.c.b16 %v4069, %v4068
        %v4195 = vpack.c.b16 %v4071, %v4070
        %v4196 = vpack.c.b16 %v4073, %v4072
        %v4197 = vpack.c.b16 %v4075, %v4074
        %v4198 = vpack.c.b16 %v4077, %v4076
        %v4199 = vpack.c.b16 %v4079, %v4078
        %v4200 = vpack.c.b16 %v4081, %v4080
        %v4201 = vpack.c.b16 %v4083, %v4082
        %v4202 = vpack.c.b16 %v4085, %v4084
        %v4203 = vpack.c.b16 %v4087, %v4086
        %v4204 = vpack.c.b16 %v4089, %v4088
        %v4205 = vpack.c.b16 %v4091, %v4090
        %v4206 = vpack.c.b16 %v4093, %v4092
        %v4207 = vpack.c.b16 %v4095, %v4094
        %v4208 = vpack.c.b16 %v4097, %v4096
        %v4209 = vpack.c.b16 %v4099, %v4098
        %v4210 = vpack.c.b16 %v4101, %v4100
        %v4211 = vpack.c.b16 %v4103, %v4102
        %v4212 = vpack.c.b16 %v4105, %v4104
        %v4213 = vpack.c.b16 %v4107, %v4106
        %v4214 = vpack.c.b16 %v4109, %v4108
        %v4215 = vpack.c.b16 %v4111, %v4110
        %v4216 = vpack.c.b16 %v4113, %v4112
        %v4217 = vpack.c.b16 %v4115, %v4114
        %v4218 = vpack.c.b16 %v4117, %v4116
        %v4219 = vpack.c.b16 %v4119, %v4118
        %v4220 = vpack.c.b16 %v4121, %v4120
        %v4221 = vpack.c.b16 %v4123, %v4122
        %v4222 = vpack.c.b16 %v4125, %v4124
        %v4223 = vpack.c.b16 %v4127, %v4126
        %v4224 = vpack.c.b16 %v4129, %v4128
        %v4225 = vpack.c.b16 %v4131, %v4130
        %v4226 = vpack.c.b16 %v4133, %v4132
        %v4227 = vpack.c.b16 %v4135, %v4134
        %v4228 = vpack.c.b16 %v4137, %v4136
        %v4229 = vpack.c.b16 %v4139, %v4138
        %v4230 = vpack.c.b16 %v4141, %v4140
        %v4231 = vpack.c.b16 %v4143, %v4142
        %v4232 = vpack.c.b16 %v4145, %v4144
        %v4233 = vpack.c.b16 %v4147, %v4146
        %v4234 = vpack.c.b16 %v4149, %v4148
        %v4235 = vpack.c.b16 %v4151, %v4150
        %v4236 = vpack.c.b16 %v4153, %v4152
        %v4237 = vpack.c.b16 %v4155, %v4154
        %v4238 = vpack.c.b16 %v4157, %v4156
        %v4239 = vpack.c.b16 %v4159, %v4158
        %v4240 = vpack.c.b16 %v4161, %v4160
        %v4241 = vpack.c.b16 %v4163, %v4162
        %v4242 = vpack.c.b16 %v4165, %v4164
        %v4243 = vpack.c.b16 %v4167, %v4166
        %v4244 = vpack.c.b16 %v4169, %v4168
        %v4245 = vpack.c.b16 %v4171, %v4170
        %v4246 = vpack.c.b16 %v4173, %v4172
        %v4247 = vpack.c.b16 %v4175, %v4174
        %4320 = vmatpush.bf16.msra.mxu0 %v4183
        %4321 = vmatpush.bf16.msra.mxu0 %v4182
        %4322 = vmatpush.bf16.msra.mxu0 %v4181
        %4323 = vmatpush.bf16.msra.mxu0 %v4180
        %4324 = vmatpush.bf16.msra.mxu0 %v4179
        %4325 = vmatpush.bf16.msra.mxu0 %v4178
        %4326 = vmatpush.bf16.msra.mxu0 %v4177
        %4327 = vmatpush.bf16.msra.mxu0 %v4176
        %4328 = vmatmul.bf16.gmra.mxu0 %v2885
        %v4329 = vpop.f32.mrf.mxu0
        %v4330 = vadd.f32 %v3886, %v4329
        %v4331 = vpop.f32.mrf.mxu0
        %v4332 = vadd.f32 %v3886, %v4331
        %4333 = vmatmul.bf16.gmra.mxu0 %v2886
        %v4334 = vpop.f32.mrf.mxu0
        %v4335 = vadd.f32 %v3886, %v4334
        %v4336 = vpop.f32.mrf.mxu0
        %v4337 = vadd.f32 %v3886, %v4336
        %4338 = vmatmul.bf16.gmra.mxu0 %v2887
        %v4339 = vpop.f32.mrf.mxu0
        %v4340 = vadd.f32 %v3886, %v4339
        %v4341 = vpop.f32.mrf.mxu0
        %v4342 = vadd.f32 %v3886, %v4341
        %4343 = vmatmul.bf16.gmra.mxu0 %v2888
        %v4344 = vpop.f32.mrf.mxu0
        %v4345 = vadd.f32 %v3886, %v4344
        %v4346 = vpop.f32.mrf.mxu0
        %v4347 = vadd.f32 %v3886, %v4346
        %4348 = vmatmul.bf16.gmra.mxu0 %v2889
        %v4349 = vpop.f32.mrf.mxu0
        %v4350 = vadd.f32 %v3886, %v4349
        %v4351 = vpop.f32.mrf.mxu0
        %v4352 = vadd.f32 %v3886, %v4351
        %4353 = vmatmul.bf16.gmra.mxu0 %v2890
        %v4354 = vpop.f32.mrf.mxu0
        %v4355 = vadd.f32 %v3886, %v4354
        %v4356 = vpop.f32.mrf.mxu0
        %v4357 = vadd.f32 %v3886, %v4356
        %4358 = vmatmul.bf16.gmra.mxu0 %v2891
        %v4359 = vpop.f32.mrf.mxu0
        %v4360 = vadd.f32 %v3886, %v4359
        %v4361 = vpop.f32.mrf.mxu0
        %v4362 = vadd.f32 %v3886, %v4361
        %4363 = vmatmul.bf16.gmra.mxu0 %v2892
        %v4364 = vpop.f32.mrf.mxu0
        %v4365 = vadd.f32 %v3886, %v4364
        %v4366 = vpop.f32.mrf.mxu0
        %v4367 = vadd.f32 %v3886, %v4366
        %4368 = vmatmul.bf16.gmra.mxu0 %v2893
        %v4369 = vpop.f32.mrf.mxu0
        %v4370 = vadd.f32 %v3886, %v4369
        %v4371 = vpop.f32.mrf.mxu0
        %v4372 = vadd.f32 %v3886, %v4371
        %4373 = vmatmul.bf16.gmra.mxu0 %v2894
        %v4374 = vpop.f32.mrf.mxu0
        %v4375 = vadd.f32 %v3886, %v4374
        %v4376 = vpop.f32.mrf.mxu0
        %v4377 = vadd.f32 %v3886, %v4376
        %4378 = vmatmul.bf16.gmra.mxu0 %v2895
        %v4379 = vpop.f32.mrf.mxu0
        %v4380 = vadd.f32 %v3886, %v4379
        %v4381 = vpop.f32.mrf.mxu0
        %v4382 = vadd.f32 %v3886, %v4381
        %4383 = vmatmul.bf16.gmra.mxu0 %v2896
        %v4384 = vpop.f32.mrf.mxu0
        %v4385 = vadd.f32 %v3886, %v4384
        %v4386 = vpop.f32.mrf.mxu0
        %v4387 = vadd.f32 %v3886, %v4386
        %4388 = vmatmul.bf16.gmra.mxu0 %v2897
        %v4389 = vpop.f32.mrf.mxu0
        %v4390 = vadd.f32 %v3886, %v4389
        %v4391 = vpop.f32.mrf.mxu0
        %v4392 = vadd.f32 %v3886, %v4391
        %4393 = vmatmul.bf16.gmra.mxu0 %v2898
        %v4394 = vpop.f32.mrf.mxu0
        %v4395 = vadd.f32 %v3886, %v4394
        %v4396 = vpop.f32.mrf.mxu0
        %v4397 = vadd.f32 %v3886, %v4396
        %4398 = vmatmul.bf16.gmra.mxu0 %v2899
        %v4399 = vpop.f32.mrf.mxu0
        %v4400 = vadd.f32 %v3886, %v4399
        %v4401 = vpop.f32.mrf.mxu0
        %v4402 = vadd.f32 %v3886, %v4401
        %4403 = vmatmul.bf16.gmra.mxu0 %v2900
        %v4404 = vpop.f32.mrf.mxu0
        %v4405 = vadd.f32 %v3886, %v4404
        %v4406 = vpop.f32.mrf.mxu0
        %v4407 = vadd.f32 %v3886, %v4406
        %4408 = vdwg.mxu0
        %4409 = vmatpush.bf16.msra.mxu0 %v4191
        %4410 = vmatpush.bf16.msra.mxu0 %v4190
        %4411 = vmatpush.bf16.msra.mxu0 %v4189
        %4412 = vmatpush.bf16.msra.mxu0 %v4188
        %4413 = vmatpush.bf16.msra.mxu0 %v4187
        %4414 = vmatpush.bf16.msra.mxu0 %v4186
        %4415 = vmatpush.bf16.msra.mxu0 %v4185
        %4416 = vmatpush.bf16.msra.mxu0 %v4184
        %4417 = vmatmul.bf16.gmra.mxu0 %v2976
        %v4418 = vpop.f32.mrf.mxu0
        %v4419 = vadd.f32 %v4330, %v4418
        %v4420 = vpop.f32.mrf.mxu0
        %v4421 = vadd.f32 %v4332, %v4420
        %4422 = vmatmul.bf16.gmra.mxu0 %v2988
        %v4423 = vpop.f32.mrf.mxu0
        %v4424 = vadd.f32 %v4335, %v4423
        %v4425 = vpop.f32.mrf.mxu0
        %v4426 = vadd.f32 %v4337, %v4425
        %4427 = vmatmul.bf16.gmra.mxu0 %v3000
        %v4428 = vpop.f32.mrf.mxu0
        %v4429 = vadd.f32 %v4340, %v4428
        %v4430 = vpop.f32.mrf.mxu0
        %v4431 = vadd.f32 %v4342, %v4430
        %4432 = vmatmul.bf16.gmra.mxu0 %v3012
        %v4433 = vpop.f32.mrf.mxu0
        %v4434 = vadd.f32 %v4345, %v4433
        %v4435 = vpop.f32.mrf.mxu0
        %v4436 = vadd.f32 %v4347, %v4435
        %4437 = vmatmul.bf16.gmra.mxu0 %v3024
        %v4438 = vpop.f32.mrf.mxu0
        %v4439 = vadd.f32 %v4350, %v4438
        %v4440 = vpop.f32.mrf.mxu0
        %v4441 = vadd.f32 %v4352, %v4440
        %4442 = vmatmul.bf16.gmra.mxu0 %v3036
        %v4443 = vpop.f32.mrf.mxu0
        %v4444 = vadd.f32 %v4355, %v4443
        %v4445 = vpop.f32.mrf.mxu0
        %v4446 = vadd.f32 %v4357, %v4445
        %4447 = vmatmul.bf16.gmra.mxu0 %v3048
        %v4448 = vpop.f32.mrf.mxu0
        %v4449 = vadd.f32 %v4360, %v4448
        %v4450 = vpop.f32.mrf.mxu0
        %v4451 = vadd.f32 %v4362, %v4450
        %4452 = vmatmul.bf16.gmra.mxu0 %v3060
        %v4453 = vpop.f32.mrf.mxu0
        %v4454 = vadd.f32 %v4365, %v4453
        %v4455 = vpop.f32.mrf.mxu0
        %v4456 = vadd.f32 %v4367, %v4455
        %4457 = vmatmul.bf16.gmra.mxu0 %v3072
        %v4458 = vpop.f32.mrf.mxu0
        %v4459 = vadd.f32 %v4370, %v4458
        %v4460 = vpop.f32.mrf.mxu0
        %v4461 = vadd.f32 %v4372, %v4460
        %4462 = vmatmul.bf16.gmra.mxu0 %v3084
        %v4463 = vpop.f32.mrf.mxu0
        %v4464 = vadd.f32 %v4375, %v4463
        %v4465 = vpop.f32.mrf.mxu0
        %v4466 = vadd.f32 %v4377, %v4465
        %4467 = vmatmul.bf16.gmra.mxu0 %v3096
        %v4468 = vpop.f32.mrf.mxu0
        %v4469 = vadd.f32 %v4380, %v4468
        %v4470 = vpop.f32.mrf.mxu0
        %v4471 = vadd.f32 %v4382, %v4470
        %4472 = vmatmul.bf16.gmra.mxu0 %v3108
        %v4473 = vpop.f32.mrf.mxu0
        %v4474 = vadd.f32 %v4385, %v4473
        %v4475 = vpop.f32.mrf.mxu0
        %v4476 = vadd.f32 %v4387, %v4475
        %4477 = vmatmul.bf16.gmra.mxu0 %v3120
        %v4478 = vpop.f32.mrf.mxu0
        %v4479 = vadd.f32 %v4390, %v4478
        %v4480 = vpop.f32.mrf.mxu0
        %v4481 = vadd.f32 %v4392, %v4480
        %4482 = vmatmul.bf16.gmra.mxu0 %v3132
        %v4483 = vpop.f32.mrf.mxu0
        %v4484 = vadd.f32 %v4395, %v4483
        %v4485 = vpop.f32.mrf.mxu0
        %v4486 = vadd.f32 %v4397, %v4485
        %4487 = vmatmul.bf16.gmra.mxu0 %v3144
        %v4488 = vpop.f32.mrf.mxu0
        %v4489 = vadd.f32 %v4400, %v4488
        %v4490 = vpop.f32.mrf.mxu0
        %v4491 = vadd.f32 %v4402, %v4490
        %4492 = vmatmul.bf16.gmra.mxu0 %v3156
        %v4493 = vpop.f32.mrf.mxu0
        %v4494 = vadd.f32 %v4405, %v4493
        %v4495 = vpop.f32.mrf.mxu0
        %v4496 = vadd.f32 %v4407, %v4495
        %4497 = vdwg.mxu0
        %4498 = vmatpush.bf16.msra.mxu0 %v4199
        %4499 = vmatpush.bf16.msra.mxu0 %v4198
        %4500 = vmatpush.bf16.msra.mxu0 %v4197
        %4501 = vmatpush.bf16.msra.mxu0 %v4196
        %4502 = vmatpush.bf16.msra.mxu0 %v4195
        %4503 = vmatpush.bf16.msra.mxu0 %v4194
        %4504 = vmatpush.bf16.msra.mxu0 %v4193
        %4505 = vmatpush.bf16.msra.mxu0 %v4192
        %4506 = vmatmul.bf16.gmra.mxu0 %v3175
        %v4507 = vpop.f32.mrf.mxu0
        %v4508 = vadd.f32 %v4419, %v4507
        %v4509 = vpop.f32.mrf.mxu0
        %v4510 = vadd.f32 %v4421, %v4509
        %4511 = vmatmul.bf16.gmra.mxu0 %v3178
        %v4512 = vpop.f32.mrf.mxu0
        %v4513 = vadd.f32 %v4424, %v4512
        %v4514 = vpop.f32.mrf.mxu0
        %v4515 = vadd.f32 %v4426, %v4514
        %4516 = vmatmul.bf16.gmra.mxu0 %v3181
        %v4517 = vpop.f32.mrf.mxu0
        %v4518 = vadd.f32 %v4429, %v4517
        %v4519 = vpop.f32.mrf.mxu0
        %v4520 = vadd.f32 %v4431, %v4519
        %4521 = vmatmul.bf16.gmra.mxu0 %v3184
        %v4522 = vpop.f32.mrf.mxu0
        %v4523 = vadd.f32 %v4434, %v4522
        %v4524 = vpop.f32.mrf.mxu0
        %v4525 = vadd.f32 %v4436, %v4524
        %4526 = vmatmul.bf16.gmra.mxu0 %v3187
        %v4527 = vpop.f32.mrf.mxu0
        %v4528 = vadd.f32 %v4439, %v4527
        %v4529 = vpop.f32.mrf.mxu0
        %v4530 = vadd.f32 %v4441, %v4529
        %4531 = vmatmul.bf16.gmra.mxu0 %v3190
        %v4532 = vpop.f32.mrf.mxu0
        %v4533 = vadd.f32 %v4444, %v4532
        %v4534 = vpop.f32.mrf.mxu0
        %v4535 = vadd.f32 %v4446, %v4534
        %4536 = vmatmul.bf16.gmra.mxu0 %v3193
        %v4537 = vpop.f32.mrf.mxu0
        %v4538 = vadd.f32 %v4449, %v4537
        %v4539 = vpop.f32.mrf.mxu0
        %v4540 = vadd.f32 %v4451, %v4539
        %4541 = vmatmul.bf16.gmra.mxu0 %v3196
        %v4542 = vpop.f32.mrf.mxu0
        %v4543 = vadd.f32 %v4454, %v4542
        %v4544 = vpop.f32.mrf.mxu0
        %v4545 = vadd.f32 %v4456, %v4544
        %4546 = vmatmul.bf16.gmra.mxu0 %v3199
        %v4547 = vpop.f32.mrf.mxu0
        %v4548 = vadd.f32 %v4459, %v4547
        %v4549 = vpop.f32.mrf.mxu0
        %v4550 = vadd.f32 %v4461, %v4549
        %4551 = vmatmul.bf16.gmra.mxu0 %v3202
        %v4552 = vpop.f32.mrf.mxu0
        %v4553 = vadd.f32 %v4464, %v4552
        %v4554 = vpop.f32.mrf.mxu0
        %v4555 = vadd.f32 %v4466, %v4554
        %4556 = vmatmul.bf16.gmra.mxu0 %v3205
        %v4557 = vpop.f32.mrf.mxu0
        %v4558 = vadd.f32 %v4469, %v4557
        %v4559 = vpop.f32.mrf.mxu0
        %v4560 = vadd.f32 %v4471, %v4559
        %4561 = vmatmul.bf16.gmra.mxu0 %v3208
        %v4562 = vpop.f32.mrf.mxu0
        %v4563 = vadd.f32 %v4474, %v4562
        %v4564 = vpop.f32.mrf.mxu0
        %v4565 = vadd.f32 %v4476, %v4564
        %4566 = vmatmul.bf16.gmra.mxu0 %v3211
        %v4567 = vpop.f32.mrf.mxu0
        %v4568 = vadd.f32 %v4479, %v4567
        %v4569 = vpop.f32.mrf.mxu0
        %v4570 = vadd.f32 %v4481, %v4569
        %4571 = vmatmul.bf16.gmra.mxu0 %v3214
        %v4572 = vpop.f32.mrf.mxu0
        %v4573 = vadd.f32 %v4484, %v4572
        %v4574 = vpop.f32.mrf.mxu0
        %v4575 = vadd.f32 %v4486, %v4574
        %4576 = vmatmul.bf16.gmra.mxu0 %v3217
        %v4577 = vpop.f32.mrf.mxu0
        %v4578 = vadd.f32 %v4489, %v4577
        %v4579 = vpop.f32.mrf.mxu0
        %v4580 = vadd.f32 %v4491, %v4579
        %4581 = vmatmul.bf16.gmra.mxu0 %v3220
        %v4582 = vpop.f32.mrf.mxu0
        %v4583 = vadd.f32 %v4494, %v4582
        %v4584 = vpop.f32.mrf.mxu0
        %v4585 = vadd.f32 %v4496, %v4584
        %4586 = vdwg.mxu0
        %4587 = vmatpush.bf16.msra.mxu0 %v4207
        %4588 = vmatpush.bf16.msra.mxu0 %v4206
        %4589 = vmatpush.bf16.msra.mxu0 %v4205
        %4590 = vmatpush.bf16.msra.mxu0 %v4204
        %4591 = vmatpush.bf16.msra.mxu0 %v4203
        %4592 = vmatpush.bf16.msra.mxu0 %v4202
        %4593 = vmatpush.bf16.msra.mxu0 %v4201
        %4594 = vmatpush.bf16.msra.mxu0 %v4200
        %4595 = vmatmul.bf16.gmra.mxu0 %v2886
        %v4596 = vpop.f32.mrf.mxu0
        %v4597 = vadd.f32 %v4508, %v4596
        %v4598 = vpop.f32.mrf.mxu0
        %v4599 = vadd.f32 %v4510, %v4598
        %4600 = vmatmul.bf16.gmra.mxu0 %v2887
        %v4601 = vpop.f32.mrf.mxu0
        %v4602 = vadd.f32 %v4513, %v4601
        %v4603 = vpop.f32.mrf.mxu0
        %v4604 = vadd.f32 %v4515, %v4603
        %4605 = vmatmul.bf16.gmra.mxu0 %v2888
        %v4606 = vpop.f32.mrf.mxu0
        %v4607 = vadd.f32 %v4518, %v4606
        %v4608 = vpop.f32.mrf.mxu0
        %v4609 = vadd.f32 %v4520, %v4608
        %4610 = vmatmul.bf16.gmra.mxu0 %v2889
        %v4611 = vpop.f32.mrf.mxu0
        %v4612 = vadd.f32 %v4523, %v4611
        %v4613 = vpop.f32.mrf.mxu0
        %v4614 = vadd.f32 %v4525, %v4613
        %4615 = vmatmul.bf16.gmra.mxu0 %v2890
        %v4616 = vpop.f32.mrf.mxu0
        %v4617 = vadd.f32 %v4528, %v4616
        %v4618 = vpop.f32.mrf.mxu0
        %v4619 = vadd.f32 %v4530, %v4618
        %4620 = vmatmul.bf16.gmra.mxu0 %v2891
        %v4621 = vpop.f32.mrf.mxu0
        %v4622 = vadd.f32 %v4533, %v4621
        %v4623 = vpop.f32.mrf.mxu0
        %v4624 = vadd.f32 %v4535, %v4623
        %4625 = vmatmul.bf16.gmra.mxu0 %v2892
        %v4626 = vpop.f32.mrf.mxu0
        %v4627 = vadd.f32 %v4538, %v4626
        %v4628 = vpop.f32.mrf.mxu0
        %v4629 = vadd.f32 %v4540, %v4628
        %4630 = vmatmul.bf16.gmra.mxu0 %v2893
        %v4631 = vpop.f32.mrf.mxu0
        %v4632 = vadd.f32 %v4543, %v4631
        %v4633 = vpop.f32.mrf.mxu0
        %v4634 = vadd.f32 %v4545, %v4633
        %4635 = vmatmul.bf16.gmra.mxu0 %v2894
        %v4636 = vpop.f32.mrf.mxu0
        %v4637 = vadd.f32 %v4548, %v4636
        %v4638 = vpop.f32.mrf.mxu0
        %v4639 = vadd.f32 %v4550, %v4638
        %4640 = vmatmul.bf16.gmra.mxu0 %v2895
        %v4641 = vpop.f32.mrf.mxu0
        %v4642 = vadd.f32 %v4553, %v4641
        %v4643 = vpop.f32.mrf.mxu0
        %v4644 = vadd.f32 %v4555, %v4643
        %4645 = vmatmul.bf16.gmra.mxu0 %v2896
        %v4646 = vpop.f32.mrf.mxu0
        %v4647 = vadd.f32 %v4558, %v4646
        %v4648 = vpop.f32.mrf.mxu0
        %v4649 = vadd.f32 %v4560, %v4648
        %4650 = vmatmul.bf16.gmra.mxu0 %v2897
        %v4651 = vpop.f32.mrf.mxu0
        %v4652 = vadd.f32 %v4563, %v4651
        %v4653 = vpop.f32.mrf.mxu0
        %v4654 = vadd.f32 %v4565, %v4653
        %4655 = vmatmul.bf16.gmra.mxu0 %v2898
        %v4656 = vpop.f32.mrf.mxu0
        %v4657 = vadd.f32 %v4568, %v4656
        %v4658 = vpop.f32.mrf.mxu0
        %v4659 = vadd.f32 %v4570, %v4658
        %4660 = vmatmul.bf16.gmra.mxu0 %v2899
        %v4661 = vpop.f32.mrf.mxu0
        %v4662 = vadd.f32 %v4573, %v4661
        %v4663 = vpop.f32.mrf.mxu0
        %v4664 = vadd.f32 %v4575, %v4663
        %4665 = vmatmul.bf16.gmra.mxu0 %v2900
        %v4666 = vpop.f32.mrf.mxu0
        %v4667 = vadd.f32 %v4578, %v4666
        %v4668 = vpop.f32.mrf.mxu0
        %v4669 = vadd.f32 %v4580, %v4668
        %4670 = vmatmul.bf16.gmra.mxu0 %v3241
        %v4671 = vpop.f32.mrf.mxu0
        %v4672 = vadd.f32 %v4583, %v4671
        %v4673 = vpop.f32.mrf.mxu0
        %v4674 = vadd.f32 %v4585, %v4673
        %4675 = vdwg.mxu0
        %4676 = vmatpush.bf16.msra.mxu0 %v4215
        %4677 = vmatpush.bf16.msra.mxu0 %v4214
        %4678 = vmatpush.bf16.msra.mxu0 %v4213
        %4679 = vmatpush.bf16.msra.mxu0 %v4212
        %4680 = vmatpush.bf16.msra.mxu0 %v4211
        %4681 = vmatpush.bf16.msra.mxu0 %v4210
        %4682 = vmatpush.bf16.msra.mxu0 %v4209
        %4683 = vmatpush.bf16.msra.mxu0 %v4208
        %4684 = vmatmul.bf16.gmra.mxu0 %v2988
        %v4685 = vpop.f32.mrf.mxu0
        %v4686 = vadd.f32 %v4597, %v4685
        %v4687 = vpop.f32.mrf.mxu0
        %v4688 = vadd.f32 %v4599, %v4687
        %4689 = vmatmul.bf16.gmra.mxu0 %v3000
        %v4690 = vpop.f32.mrf.mxu0
        %v4691 = vadd.f32 %v4602, %v4690
        %v4692 = vpop.f32.mrf.mxu0
        %v4693 = vadd.f32 %v4604, %v4692
        %4694 = vmatmul.bf16.gmra.mxu0 %v3012
        %v4695 = vpop.f32.mrf.mxu0
        %v4696 = vadd.f32 %v4607, %v4695
        %v4697 = vpop.f32.mrf.mxu0
        %v4698 = vadd.f32 %v4609, %v4697
        %4699 = vmatmul.bf16.gmra.mxu0 %v3024
        %v4700 = vpop.f32.mrf.mxu0
        %v4701 = vadd.f32 %v4612, %v4700
        %v4702 = vpop.f32.mrf.mxu0
        %v4703 = vadd.f32 %v4614, %v4702
        %4704 = vmatmul.bf16.gmra.mxu0 %v3036
        %v4705 = vpop.f32.mrf.mxu0
        %v4706 = vadd.f32 %v4617, %v4705
        %v4707 = vpop.f32.mrf.mxu0
        %v4708 = vadd.f32 %v4619, %v4707
        %4709 = vmatmul.bf16.gmra.mxu0 %v3048
        %v4710 = vpop.f32.mrf.mxu0
        %v4711 = vadd.f32 %v4622, %v4710
        %v4712 = vpop.f32.mrf.mxu0
        %v4713 = vadd.f32 %v4624, %v4712
        %4714 = vmatmul.bf16.gmra.mxu0 %v3060
        %v4715 = vpop.f32.mrf.mxu0
        %v4716 = vadd.f32 %v4627, %v4715
        %v4717 = vpop.f32.mrf.mxu0
        %v4718 = vadd.f32 %v4629, %v4717
        %4719 = vmatmul.bf16.gmra.mxu0 %v3072
        %v4720 = vpop.f32.mrf.mxu0
        %v4721 = vadd.f32 %v4632, %v4720
        %v4722 = vpop.f32.mrf.mxu0
        %v4723 = vadd.f32 %v4634, %v4722
        %4724 = vmatmul.bf16.gmra.mxu0 %v3084
        %v4725 = vpop.f32.mrf.mxu0
        %v4726 = vadd.f32 %v4637, %v4725
        %v4727 = vpop.f32.mrf.mxu0
        %v4728 = vadd.f32 %v4639, %v4727
        %4729 = vmatmul.bf16.gmra.mxu0 %v3096
        %v4730 = vpop.f32.mrf.mxu0
        %v4731 = vadd.f32 %v4642, %v4730
        %v4732 = vpop.f32.mrf.mxu0
        %v4733 = vadd.f32 %v4644, %v4732
        %4734 = vmatmul.bf16.gmra.mxu0 %v3108
        %v4735 = vpop.f32.mrf.mxu0
        %v4736 = vadd.f32 %v4647, %v4735
        %v4737 = vpop.f32.mrf.mxu0
        %v4738 = vadd.f32 %v4649, %v4737
        %4739 = vmatmul.bf16.gmra.mxu0 %v3120
        %v4740 = vpop.f32.mrf.mxu0
        %v4741 = vadd.f32 %v4652, %v4740
        %v4742 = vpop.f32.mrf.mxu0
        %v4743 = vadd.f32 %v4654, %v4742
        %4744 = vmatmul.bf16.gmra.mxu0 %v3132
        %v4745 = vpop.f32.mrf.mxu0
        %v4746 = vadd.f32 %v4657, %v4745
        %v4747 = vpop.f32.mrf.mxu0
        %v4748 = vadd.f32 %v4659, %v4747
        %4749 = vmatmul.bf16.gmra.mxu0 %v3144
        %v4750 = vpop.f32.mrf.mxu0
        %v4751 = vadd.f32 %v4662, %v4750
        %v4752 = vpop.f32.mrf.mxu0
        %v4753 = vadd.f32 %v4664, %v4752
        %4754 = vmatmul.bf16.gmra.mxu0 %v3156
        %v4755 = vpop.f32.mrf.mxu0
        %v4756 = vadd.f32 %v4667, %v4755
        %v4757 = vpop.f32.mrf.mxu0
        %v4758 = vadd.f32 %v4669, %v4757
        %4759 = vmatmul.bf16.gmra.mxu0 %v3257
        %v4760 = vpop.f32.mrf.mxu0
        %v4761 = vadd.f32 %v4672, %v4760
        %v4762 = vpop.f32.mrf.mxu0
        %v4763 = vadd.f32 %v4674, %v4762
        %4764 = vdwg.mxu0
        %4765 = vmatpush.bf16.msra.mxu0 %v4223
        %4766 = vmatpush.bf16.msra.mxu0 %v4222
        %4767 = vmatpush.bf16.msra.mxu0 %v4221
        %4768 = vmatpush.bf16.msra.mxu0 %v4220
        %4769 = vmatpush.bf16.msra.mxu0 %v4219
        %4770 = vmatpush.bf16.msra.mxu0 %v4218
        %4771 = vmatpush.bf16.msra.mxu0 %v4217
        %4772 = vmatpush.bf16.msra.mxu0 %v4216
        %4773 = vmatmul.bf16.gmra.mxu0 %v3178
        %v4774 = vpop.f32.mrf.mxu0
        %v4775 = vadd.f32 %v4686, %v4774
        %v4776 = vpop.f32.mrf.mxu0
        %v4777 = vadd.f32 %v4688, %v4776
        %4778 = vmatmul.bf16.gmra.mxu0 %v3181
        %v4779 = vpop.f32.mrf.mxu0
        %v4780 = vadd.f32 %v4691, %v4779
        %v4781 = vpop.f32.mrf.mxu0
        %v4782 = vadd.f32 %v4693, %v4781
        %4783 = vmatmul.bf16.gmra.mxu0 %v3184
        %v4784 = vpop.f32.mrf.mxu0
        %v4785 = vadd.f32 %v4696, %v4784
        %v4786 = vpop.f32.mrf.mxu0
        %v4787 = vadd.f32 %v4698, %v4786
        %4788 = vmatmul.bf16.gmra.mxu0 %v3187
        %v4789 = vpop.f32.mrf.mxu0
        %v4790 = vadd.f32 %v4701, %v4789
        %v4791 = vpop.f32.mrf.mxu0
        %v4792 = vadd.f32 %v4703, %v4791
        %4793 = vmatmul.bf16.gmra.mxu0 %v3190
        %v4794 = vpop.f32.mrf.mxu0
        %v4795 = vadd.f32 %v4706, %v4794
        %v4796 = vpop.f32.mrf.mxu0
        %v4797 = vadd.f32 %v4708, %v4796
        %4798 = vmatmul.bf16.gmra.mxu0 %v3193
        %v4799 = vpop.f32.mrf.mxu0
        %v4800 = vadd.f32 %v4711, %v4799
        %v4801 = vpop.f32.mrf.mxu0
        %v4802 = vadd.f32 %v4713, %v4801
        %4803 = vmatmul.bf16.gmra.mxu0 %v3196
        %v4804 = vpop.f32.mrf.mxu0
        %v4805 = vadd.f32 %v4716, %v4804
        %v4806 = vpop.f32.mrf.mxu0
        %v4807 = vadd.f32 %v4718, %v4806
        %4808 = vmatmul.bf16.gmra.mxu0 %v3199
        %v4809 = vpop.f32.mrf.mxu0
        %v4810 = vadd.f32 %v4721, %v4809
        %v4811 = vpop.f32.mrf.mxu0
        %v4812 = vadd.f32 %v4723, %v4811
        %4813 = vmatmul.bf16.gmra.mxu0 %v3202
        %v4814 = vpop.f32.mrf.mxu0
        %v4815 = vadd.f32 %v4726, %v4814
        %v4816 = vpop.f32.mrf.mxu0
        %v4817 = vadd.f32 %v4728, %v4816
        %4818 = vmatmul.bf16.gmra.mxu0 %v3205
        %v4819 = vpop.f32.mrf.mxu0
        %v4820 = vadd.f32 %v4731, %v4819
        %v4821 = vpop.f32.mrf.mxu0
        %v4822 = vadd.f32 %v4733, %v4821
        %4823 = vmatmul.bf16.gmra.mxu0 %v3208
        %v4824 = vpop.f32.mrf.mxu0
        %v4825 = vadd.f32 %v4736, %v4824
        %v4826 = vpop.f32.mrf.mxu0
        %v4827 = vadd.f32 %v4738, %v4826
        %4828 = vmatmul.bf16.gmra.mxu0 %v3211
        %v4829 = vpop.f32.mrf.mxu0
        %v4830 = vadd.f32 %v4741, %v4829
        %v4831 = vpop.f32.mrf.mxu0
        %v4832 = vadd.f32 %v4743, %v4831
        %4833 = vmatmul.bf16.gmra.mxu0 %v3214
        %v4834 = vpop.f32.mrf.mxu0
        %v4835 = vadd.f32 %v4746, %v4834
        %v4836 = vpop.f32.mrf.mxu0
        %v4837 = vadd.f32 %v4748, %v4836
        %4838 = vmatmul.bf16.gmra.mxu0 %v3217
        %v4839 = vpop.f32.mrf.mxu0
        %v4840 = vadd.f32 %v4751, %v4839
        %v4841 = vpop.f32.mrf.mxu0
        %v4842 = vadd.f32 %v4753, %v4841
        %4843 = vmatmul.bf16.gmra.mxu0 %v3220
        %v4844 = vpop.f32.mrf.mxu0
        %v4845 = vadd.f32 %v4756, %v4844
        %v4846 = vpop.f32.mrf.mxu0
        %v4847 = vadd.f32 %v4758, %v4846
        %4848 = vmatmul.bf16.gmra.mxu0 %v3261
        %v4849 = vpop.f32.mrf.mxu0
        %v4850 = vadd.f32 %v4761, %v4849
        %v4851 = vpop.f32.mrf.mxu0
        %v4852 = vadd.f32 %v4763, %v4851
        %4853 = vdwg.mxu0
        %4854 = vmatpush.bf16.msra.mxu0 %v4231
        %4855 = vmatpush.bf16.msra.mxu0 %v4230
        %4856 = vmatpush.bf16.msra.mxu0 %v4229
        %4857 = vmatpush.bf16.msra.mxu0 %v4228
        %4858 = vmatpush.bf16.msra.mxu0 %v4227
        %4859 = vmatpush.bf16.msra.mxu0 %v4226
        %4860 = vmatpush.bf16.msra.mxu0 %v4225
        %4861 = vmatpush.bf16.msra.mxu0 %v4224
        %4862 = vmatmul.bf16.gmra.mxu0 %v2887
        %v4863 = vpop.f32.mrf.mxu0
        %v4864 = vadd.f32 %v4775, %v4863
        %v4865 = vpop.f32.mrf.mxu0
        %v4866 = vadd.f32 %v4777, %v4865
        %4867 = vmatmul.bf16.gmra.mxu0 %v2888
        %v4868 = vpop.f32.mrf.mxu0
        %v4869 = vadd.f32 %v4780, %v4868
        %v4870 = vpop.f32.mrf.mxu0
        %v4871 = vadd.f32 %v4782, %v4870
        %4872 = vmatmul.bf16.gmra.mxu0 %v2889
        %v4873 = vpop.f32.mrf.mxu0
        %v4874 = vadd.f32 %v4785, %v4873
        %v4875 = vpop.f32.mrf.mxu0
        %v4876 = vadd.f32 %v4787, %v4875
        %4877 = vmatmul.bf16.gmra.mxu0 %v2890
        %v4878 = vpop.f32.mrf.mxu0
        %v4879 = vadd.f32 %v4790, %v4878
        %v4880 = vpop.f32.mrf.mxu0
        %v4881 = vadd.f32 %v4792, %v4880
        %4882 = vmatmul.bf16.gmra.mxu0 %v2891
        %v4883 = vpop.f32.mrf.mxu0
        %v4884 = vadd.f32 %v4795, %v4883
        %v4885 = vpop.f32.mrf.mxu0
        %v4886 = vadd.f32 %v4797, %v4885
        %4887 = vmatmul.bf16.gmra.mxu0 %v2892
        %v4888 = vpop.f32.mrf.mxu0
        %v4889 = vadd.f32 %v4800, %v4888
        %v4890 = vpop.f32.mrf.mxu0
        %v4891 = vadd.f32 %v4802, %v4890
        %4892 = vmatmul.bf16.gmra.mxu0 %v2893
        %v4893 = vpop.f32.mrf.mxu0
        %v4894 = vadd.f32 %v4805, %v4893
        %v4895 = vpop.f32.mrf.mxu0
        %v4896 = vadd.f32 %v4807, %v4895
        %4897 = vmatmul.bf16.gmra.mxu0 %v2894
        %v4898 = vpop.f32.mrf.mxu0
        %v4899 = vadd.f32 %v4810, %v4898
        %v4900 = vpop.f32.mrf.mxu0
        %v4901 = vadd.f32 %v4812, %v4900
        %4902 = vmatmul.bf16.gmra.mxu0 %v2895
        %v4903 = vpop.f32.mrf.mxu0
        %v4904 = vadd.f32 %v4815, %v4903
        %v4905 = vpop.f32.mrf.mxu0
        %v4906 = vadd.f32 %v4817, %v4905
        %4907 = vmatmul.bf16.gmra.mxu0 %v2896
        %v4908 = vpop.f32.mrf.mxu0
        %v4909 = vadd.f32 %v4820, %v4908
        %v4910 = vpop.f32.mrf.mxu0
        %v4911 = vadd.f32 %v4822, %v4910
        %4912 = vmatmul.bf16.gmra.mxu0 %v2897
        %v4913 = vpop.f32.mrf.mxu0
        %v4914 = vadd.f32 %v4825, %v4913
        %v4915 = vpop.f32.mrf.mxu0
        %v4916 = vadd.f32 %v4827, %v4915
        %4917 = vmatmul.bf16.gmra.mxu0 %v2898
        %v4918 = vpop.f32.mrf.mxu0
        %v4919 = vadd.f32 %v4830, %v4918
        %v4920 = vpop.f32.mrf.mxu0
        %v4921 = vadd.f32 %v4832, %v4920
        %4922 = vmatmul.bf16.gmra.mxu0 %v2899
        %v4923 = vpop.f32.mrf.mxu0
        %v4924 = vadd.f32 %v4835, %v4923
        %v4925 = vpop.f32.mrf.mxu0
        %v4926 = vadd.f32 %v4837, %v4925
        %4927 = vmatmul.bf16.gmra.mxu0 %v2900
        %v4928 = vpop.f32.mrf.mxu0
        %v4929 = vadd.f32 %v4840, %v4928
        %v4930 = vpop.f32.mrf.mxu0
        %v4931 = vadd.f32 %v4842, %v4930
        %4932 = vmatmul.bf16.gmra.mxu0 %v3241
        %v4933 = vpop.f32.mrf.mxu0
        %v4934 = vadd.f32 %v4845, %v4933
        %v4935 = vpop.f32.mrf.mxu0
        %v4936 = vadd.f32 %v4847, %v4935
        %4937 = vmatmul.bf16.gmra.mxu0 %v3267
        %v4938 = vpop.f32.mrf.mxu0
        %v4939 = vadd.f32 %v4850, %v4938
        %v4940 = vpop.f32.mrf.mxu0
        %v4941 = vadd.f32 %v4852, %v4940
        %4942 = vdwg.mxu0
        %4943 = vmatpush.bf16.msra.mxu0 %v4239
        %4944 = vmatpush.bf16.msra.mxu0 %v4238
        %4945 = vmatpush.bf16.msra.mxu0 %v4237
        %4946 = vmatpush.bf16.msra.mxu0 %v4236
        %4947 = vmatpush.bf16.msra.mxu0 %v4235
        %4948 = vmatpush.bf16.msra.mxu0 %v4234
        %4949 = vmatpush.bf16.msra.mxu0 %v4233
        %4950 = vmatpush.bf16.msra.mxu0 %v4232
        %4951 = vmatmul.bf16.gmra.mxu0 %v3000
        %v4952 = vpop.f32.mrf.mxu0
        %v4953 = vadd.f32 %v4864, %v4952
        %v4954 = vpop.f32.mrf.mxu0
        %v4955 = vadd.f32 %v4866, %v4954
        %4956 = vmatmul.bf16.gmra.mxu0 %v3012
        %v4957 = vpop.f32.mrf.mxu0
        %v4958 = vadd.f32 %v4869, %v4957
        %v4959 = vpop.f32.mrf.mxu0
        %v4960 = vadd.f32 %v4871, %v4959
        %4961 = vmatmul.bf16.gmra.mxu0 %v3024
        %v4962 = vpop.f32.mrf.mxu0
        %v4963 = vadd.f32 %v4874, %v4962
        %v4964 = vpop.f32.mrf.mxu0
        %v4965 = vadd.f32 %v4876, %v4964
        %4966 = vmatmul.bf16.gmra.mxu0 %v3036
        %v4967 = vpop.f32.mrf.mxu0
        %v4968 = vadd.f32 %v4879, %v4967
        %v4969 = vpop.f32.mrf.mxu0
        %v4970 = vadd.f32 %v4881, %v4969
        %4971 = vmatmul.bf16.gmra.mxu0 %v3048
        %v4972 = vpop.f32.mrf.mxu0
        %v4973 = vadd.f32 %v4884, %v4972
        %v4974 = vpop.f32.mrf.mxu0
        %v4975 = vadd.f32 %v4886, %v4974
        %4976 = vmatmul.bf16.gmra.mxu0 %v3060
        %v4977 = vpop.f32.mrf.mxu0
        %v4978 = vadd.f32 %v4889, %v4977
        %v4979 = vpop.f32.mrf.mxu0
        %v4980 = vadd.f32 %v4891, %v4979
        %4981 = vmatmul.bf16.gmra.mxu0 %v3072
        %v4982 = vpop.f32.mrf.mxu0
        %v4983 = vadd.f32 %v4894, %v4982
        %v4984 = vpop.f32.mrf.mxu0
        %v4985 = vadd.f32 %v4896, %v4984
        %4986 = vmatmul.bf16.gmra.mxu0 %v3084
        %v4987 = vpop.f32.mrf.mxu0
        %v4988 = vadd.f32 %v4899, %v4987
        %v4989 = vpop.f32.mrf.mxu0
        %v4990 = vadd.f32 %v4901, %v4989
        %4991 = vmatmul.bf16.gmra.mxu0 %v3096
        %v4992 = vpop.f32.mrf.mxu0
        %v4993 = vadd.f32 %v4904, %v4992
        %v4994 = vpop.f32.mrf.mxu0
        %v4995 = vadd.f32 %v4906, %v4994
        %4996 = vmatmul.bf16.gmra.mxu0 %v3108
        %v4997 = vpop.f32.mrf.mxu0
        %v4998 = vadd.f32 %v4909, %v4997
        %v4999 = vpop.f32.mrf.mxu0
        %v5000 = vadd.f32 %v4911, %v4999
        %5001 = vmatmul.bf16.gmra.mxu0 %v3120
        %v5002 = vpop.f32.mrf.mxu0
        %v5003 = vadd.f32 %v4914, %v5002
        %v5004 = vpop.f32.mrf.mxu0
        %v5005 = vadd.f32 %v4916, %v5004
        %5006 = vmatmul.bf16.gmra.mxu0 %v3132
        %v5007 = vpop.f32.mrf.mxu0
        %v5008 = vadd.f32 %v4919, %v5007
        %v5009 = vpop.f32.mrf.mxu0
        %v5010 = vadd.f32 %v4921, %v5009
        %5011 = vmatmul.bf16.gmra.mxu0 %v3144
        %v5012 = vpop.f32.mrf.mxu0
        %v5013 = vadd.f32 %v4924, %v5012
        %v5014 = vpop.f32.mrf.mxu0
        %v5015 = vadd.f32 %v4926, %v5014
        %5016 = vmatmul.bf16.gmra.mxu0 %v3156
        %v5017 = vpop.f32.mrf.mxu0
        %v5018 = vadd.f32 %v4929, %v5017
        %v5019 = vpop.f32.mrf.mxu0
        %v5020 = vadd.f32 %v4931, %v5019
        %5021 = vmatmul.bf16.gmra.mxu0 %v3257
        %v5022 = vpop.f32.mrf.mxu0
        %v5023 = vadd.f32 %v4934, %v5022
        %v5024 = vpop.f32.mrf.mxu0
        %v5025 = vadd.f32 %v4936, %v5024
        %5026 = vmatmul.bf16.gmra.mxu0 %v3283
        %v5027 = vpop.f32.mrf.mxu0
        %v5028 = vadd.f32 %v4939, %v5027
        %v5029 = vpop.f32.mrf.mxu0
        %v5030 = vadd.f32 %v4941, %v5029
        %5031 = vdwg.mxu0
        %5032 = vmatpush.bf16.msra.mxu0 %v4247
        %5033 = vmatpush.bf16.msra.mxu0 %v4246
        %5034 = vmatpush.bf16.msra.mxu0 %v4245
        %5035 = vmatpush.bf16.msra.mxu0 %v4244
        %5036 = vmatpush.bf16.msra.mxu0 %v4243
        %5037 = vmatpush.bf16.msra.mxu0 %v4242
        %5038 = vmatpush.bf16.msra.mxu0 %v4241
        %5039 = vmatpush.bf16.msra.mxu0 %v4240
        %5040 = vmatmul.bf16.gmra.mxu0 %v3181
        %v5041 = vpop.f32.mrf.mxu0
        %v5042 = vadd.f32 %v4953, %v5041
        %v5043 = vpop.f32.mrf.mxu0
        %v5044 = vadd.f32 %v4955, %v5043
        %5045 = vmatmul.bf16.gmra.mxu0 %v3184
        %v5046 = vpop.f32.mrf.mxu0
        %v5047 = vadd.f32 %v4958, %v5046
        %v5048 = vpop.f32.mrf.mxu0
        %v5049 = vadd.f32 %v4960, %v5048
        %5050 = vmatmul.bf16.gmra.mxu0 %v3187
        %v5051 = vpop.f32.mrf.mxu0
        %v5052 = vadd.f32 %v4963, %v5051
        %v5053 = vpop.f32.mrf.mxu0
        %v5054 = vadd.f32 %v4965, %v5053
        %5055 = vmatmul.bf16.gmra.mxu0 %v3190
        %v5056 = vpop.f32.mrf.mxu0
        %v5057 = vadd.f32 %v4968, %v5056
        %v5058 = vpop.f32.mrf.mxu0
        %v5059 = vadd.f32 %v4970, %v5058
        %5060 = vmatmul.bf16.gmra.mxu0 %v3193
        %v5061 = vpop.f32.mrf.mxu0
        %v5062 = vadd.f32 %v4973, %v5061
        %v5063 = vpop.f32.mrf.mxu0
        %v5064 = vadd.f32 %v4975, %v5063
        %5065 = vmatmul.bf16.gmra.mxu0 %v3196
        %v5066 = vpop.f32.mrf.mxu0
        %v5067 = vadd.f32 %v4978, %v5066
        %v5068 = vpop.f32.mrf.mxu0
        %v5069 = vadd.f32 %v4980, %v5068
        %5070 = vmatmul.bf16.gmra.mxu0 %v3199
        %v5071 = vpop.f32.mrf.mxu0
        %v5072 = vadd.f32 %v4983, %v5071
        %v5073 = vpop.f32.mrf.mxu0
        %v5074 = vadd.f32 %v4985, %v5073
        %5075 = vmatmul.bf16.gmra.mxu0 %v3202
        %v5076 = vpop.f32.mrf.mxu0
        %v5077 = vadd.f32 %v4988, %v5076
        %v5078 = vpop.f32.mrf.mxu0
        %v5079 = vadd.f32 %v4990, %v5078
        %5080 = vmatmul.bf16.gmra.mxu0 %v3205
        %v5081 = vpop.f32.mrf.mxu0
        %v5082 = vadd.f32 %v4993, %v5081
        %v5083 = vpop.f32.mrf.mxu0
        %v5084 = vadd.f32 %v4995, %v5083
        %5085 = vmatmul.bf16.gmra.mxu0 %v3208
        %v5086 = vpop.f32.mrf.mxu0
        %v5087 = vadd.f32 %v4998, %v5086
        %v5088 = vpop.f32.mrf.mxu0
        %v5089 = vadd.f32 %v5000, %v5088
        %5090 = vmatmul.bf16.gmra.mxu0 %v3211
        %v5091 = vpop.f32.mrf.mxu0
        %v5092 = vadd.f32 %v5003, %v5091
        %v5093 = vpop.f32.mrf.mxu0
        %v5094 = vadd.f32 %v5005, %v5093
        %5095 = vmatmul.bf16.gmra.mxu0 %v3214
        %v5096 = vpop.f32.mrf.mxu0
        %v5097 = vadd.f32 %v5008, %v5096
        %v5098 = vpop.f32.mrf.mxu0
        %v5099 = vadd.f32 %v5010, %v5098
        %5100 = vmatmul.bf16.gmra.mxu0 %v3217
        %v5101 = vpop.f32.mrf.mxu0
        %v5102 = vadd.f32 %v5013, %v5101
        %v5103 = vpop.f32.mrf.mxu0
        %v5104 = vadd.f32 %v5015, %v5103
        %5105 = vmatmul.bf16.gmra.mxu0 %v3220
        %v5106 = vpop.f32.mrf.mxu0
        %v5107 = vadd.f32 %v5018, %v5106
        %v5108 = vpop.f32.mrf.mxu0
        %v5109 = vadd.f32 %v5020, %v5108
        %5110 = vmatmul.bf16.gmra.mxu0 %v3261
        %v5111 = vpop.f32.mrf.mxu0
        %v5112 = vadd.f32 %v5023, %v5111
        %v5113 = vpop.f32.mrf.mxu0
        %v5114 = vadd.f32 %v5025, %v5113
        %5115 = vmatmul.bf16.gmra.mxu0 %v3287
        %v5116 = vpop.f32.mrf.mxu0
        %v5117 = vadd.f32 %v5028, %v5116
        %v5118 = vpop.f32.mrf.mxu0
        %v5119 = vadd.f32 %v5030, %v5118
        %5120 = vdwg.mxu0
        %v5121 = vadd.f32 %v5042, %v3852
        %v5122 = vadd.f32 %v5044, %v3853
        %v5123 = vadd.f32 %v5047, %v3854
        %v5124 = vadd.f32 %v5049, %v3855
        %v5125 = vadd.f32 %v5052, %v3856
        %v5126 = vadd.f32 %v5054, %v3857
        %v5127 = vadd.f32 %v5057, %v3858
        %v5128 = vadd.f32 %v5059, %v3859
        %v5129 = vadd.f32 %v5062, %v3860
        %v5130 = vadd.f32 %v5064, %v3861
        %v5131 = vadd.f32 %v5067, %v3862
        %v5132 = vadd.f32 %v5069, %v3863
        %v5133 = vadd.f32 %v5072, %v3864
        %v5134 = vadd.f32 %v5074, %v3865
        %v5135 = vadd.f32 %v5077, %v3866
        %v5136 = vadd.f32 %v5079, %v3867
        %v5137 = vadd.f32 %v5082, %v3868
        %v5138 = vadd.f32 %v5084, %v3869
        %v5139 = vadd.f32 %v5087, %v3870
        %v5140 = vadd.f32 %v5089, %v3871
        %v5141 = vadd.f32 %v5092, %v3872
        %v5142 = vadd.f32 %v5094, %v3873
        %v5143 = vadd.f32 %v5097, %v3874
        %v5144 = vadd.f32 %v5099, %v3875
        %v5145 = vadd.f32 %v5102, %v3876
        %v5146 = vadd.f32 %v5104, %v3877
        %v5147 = vadd.f32 %v5107, %v3878
        %v5148 = vadd.f32 %v5109, %v3879
        %v5149 = vadd.f32 %v5112, %v3880
        %v5150 = vadd.f32 %v5114, %v3881
        %v5151 = vadd.f32 %v5117, %v3882
        %v5152 = vadd.f32 %v5119, %v3883
        %v5153 = vmax.f32 %v5121, 0.0
        %v5154 = vmax.f32 %v5122, 0.0
        %v5155 = vmax.f32 %v5123, 0.0
        %v5156 = vmax.f32 %v5124, 0.0
        %v5157 = vmax.f32 %v5125, 0.0
        %v5158 = vmax.f32 %v5126, 0.0
        %v5159 = vmax.f32 %v5127, 0.0
        %v5160 = vmax.f32 %v5128, 0.0
        %v5161 = vmax.f32 %v5129, 0.0
        %v5162 = vmax.f32 %v5130, 0.0
        %v5163 = vmax.f32 %v5131, 0.0
        %v5164 = vmax.f32 %v5132, 0.0
        %v5165 = vmax.f32 %v5133, 0.0
        %v5166 = vmax.f32 %v5134, 0.0
        %v5167 = vmax.f32 %v5135, 0.0
        %v5168 = vmax.f32 %v5136, 0.0
        %v5169 = vmax.f32 %v5137, 0.0
        %v5170 = vmax.f32 %v5138, 0.0
        %v5171 = vmax.f32 %v5139, 0.0
        %v5172 = vmax.f32 %v5140, 0.0
        %v5173 = vmax.f32 %v5141, 0.0
        %v5174 = vmax.f32 %v5142, 0.0
        %v5175 = vmax.f32 %v5143, 0.0
        %v5176 = vmax.f32 %v5144, 0.0
        %v5177 = vmax.f32 %v5145, 0.0
        %v5178 = vmax.f32 %v5146, 0.0
        %v5179 = vmax.f32 %v5147, 0.0
        %v5180 = vmax.f32 %v5148, 0.0
        %v5181 = vmax.f32 %v5149, 0.0
        %v5182 = vmax.f32 %v5150, 0.0
        %v5183 = vmax.f32 %v5151, 0.0
        %v5184 = vmax.f32 %v5152, 0.0
        %5185 = vst [vmem:[%s234] sm:$0xff] %v5153
        %5186 = vst [vmem:[%s234 + $0x8] sm:$0xff] %v5154
        %5187 = vst [vmem:[%s234 + $0x10] sm:$0xff] %v5155
        %5188 = vst [vmem:[%s234 + $0x18] sm:$0xff] %v5156
        %5189 = vst [vmem:[%s234 + $0x20] sm:$0xff] %v5157
        %5190 = vst [vmem:[%s234 + $0x28] sm:$0xff] %v5158
        %5191 = vst [vmem:[%s234 + $0x30] sm:$0xff] %v5159
        %5192 = vst [vmem:[%s234 + $0x38] sm:$0xff] %v5160
        %5193 = vst [vmem:[%s234 + $0x40] sm:$0xff] %v5161
        %5194 = vst [vmem:[%s234 + $0x48] sm:$0xff] %v5162
        %5195 = vst [vmem:[%s234 + $0x50] sm:$0xff] %v5163
        %5196 = vst [vmem:[%s234 + $0x58] sm:$0xff] %v5164
        %5197 = vst [vmem:[%s234 + $0x60] sm:$0xff] %v5165
        %5198 = vst [vmem:[%s234 + $0x68] sm:$0xff] %v5166
        %5199 = vst [vmem:[%s234 + $0x70] sm:$0xff] %v5167
        %5200 = vst [vmem:[%s234 + $0x78] sm:$0xff] %v5168
        %5201 = vst [vmem:[%s234 + $0x80] sm:$0xff] %v5169
        %5202 = vst [vmem:[%s234 + $0x88] sm:$0xff] %v5170
        %5203 = vst [vmem:[%s234 + $0x90] sm:$0xff] %v5171
        %5204 = vst [vmem:[%s234 + $0x98] sm:$0xff] %v5172
        %5205 = vst [vmem:[%s234 + $0xa0] sm:$0xff] %v5173
        %5206 = vst [vmem:[%s234 + $0xa8] sm:$0xff] %v5174
        %5207 = vst [vmem:[%s234 + $0xb0] sm:$0xff] %v5175
        %5208 = vst [vmem:[%s234 + $0xb8] sm:$0xff] %v5176
        %5209 = vst [vmem:[%s234 + $0xc0] sm:$0xff] %v5177
        %5210 = vst [vmem:[%s234 + $0xc8] sm:$0xff] %v5178
        %5211 = vst [vmem:[%s234 + $0xd0] sm:$0xff] %v5179
        %5212 = vst [vmem:[%s234 + $0xd8] sm:$0xff] %v5180
        %5213 = vst [vmem:[%s234 + $0xe0] sm:$0xff] %v5181
        %5214 = vst [vmem:[%s234 + $0xe8] sm:$0xff] %v5182
        %5215 = vst [vmem:[%s234 + $0xf0] sm:$0xff] %v5183
        %5216 = vst [vmem:[%s234 + $0xf8] sm:$0xff] %v5184
        %s5217 = sand.u32 %s138, 1
        %s5218 = scalar_lea.sflag [#allocation5], %s5217
        %s5219 = sand.u32 %s138, 1
        %s5220 = smul.addr %s5219, 256
        %s5221 = scalar_lea.vmem [#allocation6], %s5220
        // Predicated region
        $region45: #{tpu_custom_call.1} parent=39 // pred_check
          %p5222 = pneg %p148
        $region46: #{tpu_custom_call.1} parent=39 // pred_check_branch
          %5224 = sbr.rel (%p5222) target = $region48
        $region47: #{tpu_custom_call.1} parent=39 // pred_region
          %5226 = vsyncadd %s5218, 0
          %s5227 = smul.addr %s20, 32
          %s5228 = smul.addr %s5227, 8
          %s5229 = scalar_lea.hbm %s5, %s5228
          %s5230 = sshll.u32 %s5221, 4
          %s5231 = int_to_ptr.vmem [resolvable:$true] %s5230
          %s5232 = sshll.u32 %s5229, 4
          %s5233 = int_to_ptr.hbm [resolvable:$true] %s5232
          %5238 = dma.vmem_to_hbm [thread:$0]  %s5231, 4096, %s5233, %s5218, 128, 128, 8
        $region48: #{tpu_custom_call.1} parent=39 // pred_fallthru
          _
      $region40: #{tpu_custom_call.1} parent=5 // pred_fallthru
        _
      %p5239 = scmp.le.s32.totalorder 2, %s15
      // Predicated region
      $region49: #{tpu_custom_call.1} parent=5 // pred_check
        %p5240 = pneg %p5239
      $region50: #{tpu_custom_call.1} parent=5 // pred_check_branch
        %5242 = sbr.rel (%p5240) target = $region52
      $region51: #{tpu_custom_call.1} parent=5 // pred_region
        %s5243 = ssub.s32 %s15, 2
        // Predicated region
        $region53: #{tpu_custom_call.1} parent=51 // pred_check
          %p5244 = pneg %p154
        $region54: #{tpu_custom_call.1} parent=51 // pred_check_branch
          %5246 = sbr.rel (%p5244) target = $region56
        $region55: #{tpu_custom_call.1} parent=51 // pred_region
          %s5247 = sand.u32 %s139, 1
          %s5248 = scalar_lea.sflag [#allocation5], %s5247
          %s5249 = sand.u32 %s139, 1
          %s5250 = smul.addr %s5249, 256
          %s5251 = scalar_lea.vmem [#allocation6], %s5250
          %5253 = dma.done %s5248, 4096
        $region56: #{tpu_custom_call.1} parent=51 // pred_fallthru
          _
      $region52: #{tpu_custom_call.1} parent=5 // pred_fallthru
        _
    $region6: #{tpu_custom_call.1} parent=1 // loop_footer
      %s19 = sadd.s32 1, %s15
    $region7: #{tpu_custom_call.1} parent=1 // loop_footer_branch
      %14 = sbr.rel target = $region3
    $region8: #{tpu_custom_call.1} parent=1 // loop_exit
      _
    %5254 = vsyncpa [#allocation4], 1
    %s5255 = scalar_lea.sflag [#allocation4], 1
    %5256 = vsyncpa %s5255, 1
    %5257 = vsyncpa [#allocation5], 1
    %s5258 = scalar_lea.sflag [#allocation5], 1
    %5259 = vsyncpa %s5258, 1

</llo_original>
